<compile_context>
chip_gen: v5e
topology: v5e:2x2
jax: 0.10.0
libtpu: 0.0.40
codegen_flags: <defaults>
</compile_context>

<pallas_src>
import functools

import jax
import jax.numpy as jnp
from jax import lax
from jax.experimental import pallas as pl
from jax.experimental.pallas import tpu as pltpu


def _round_up(x, m):
    return ((x + m - 1) // m) * m


# -----------------------------------------------------------------------------
# Pallas kernel
# -----------------------------------------------------------------------------
def _seq2seq_kernel(
    enc_x_ref,     # [T_enc*Bp, I]   f32  (time-major, batch padded to 8)
    dec_x_ref,     # [T_dec*Bp, I]   f32
    w_ih_enc_ref,  # [I, 4Hp]        f32  (gate-padded, transposed)
    w_hh_enc_ref,  # [Hp, 4Hp]       bf16
    b_enc_ref,     # [1, 4Hp]        f32  (bias_ih + bias_hh, gate-padded)
    w_ih_dec_ref,  # [I, 4Hp]        f32
    w_hh_dec_ref,  # [Hp, 4Hp]       bf16
    b_dec_ref,     # [1, 4Hp]        f32
    w_fc_ref,      # [Hp, 1]         f32
    b_fc_ref,      # [1, 1]          f32
    out_ref,       # [T_dec*Bp, 1]   f32
    xg_enc_ref,    # scratch [T_enc*Bp, 4Hp] f32
    xg_dec_ref,    # scratch [T_dec*Bp, 4Hp] f32
    h_all_ref,     # scratch [T_dec*Bp, Hp]  f32
    *,
    batch,         # padded batch (multiple of 8)
    hidden,        # padded hidden (multiple of 128)
    t_enc,
    t_dec,
):
    b = batch
    hp = hidden

    # ---- hoisted weight loads (once, not per timestep) -----------------------
    w_hh_e = w_hh_enc_ref[...]
    w_hh_d = w_hh_dec_ref[...]

    # ---- precompute x @ W_ih + bias for every timestep (one matmul each) -----
    xg_enc_ref[...] = (
        jnp.dot(enc_x_ref[...], w_ih_enc_ref[...],
                preferred_element_type=jnp.float32)
        + b_enc_ref[...]
    )
    xg_dec_ref[...] = (
        jnp.dot(dec_x_ref[...], w_ih_dec_ref[...],
                preferred_element_type=jnp.float32)
        + b_dec_ref[...]
    )

    def lstm_step(xg_t, h, c, w_hh):
        # PyTorch gate order: i, f, g, o.  Each gate block is Hp wide, so every
        # slice below is a full 128-lane-aligned block.
        gates = xg_t + jnp.dot(h.astype(w_hh.dtype), w_hh,
                               preferred_element_type=jnp.float32)
        i_g = jax.nn.sigmoid(gates[:, 0 * hp:1 * hp])
        f_g = jax.nn.sigmoid(gates[:, 1 * hp:2 * hp])
        g_g = jnp.tanh(gates[:, 2 * hp:3 * hp])
        o_g = jax.nn.sigmoid(gates[:, 3 * hp:4 * hp])
        c_new = f_g * c + i_g * g_g
        h_new = o_g * jnp.tanh(c_new)
        return h_new, c_new

    # Initial hidden/cell state = zeros (PyTorch default when not provided).
    h0 = jnp.zeros((b, hp), jnp.float32)
    c0 = jnp.zeros((b, hp), jnp.float32)

    # ------------------------------ encoder -----------------------------------
    def enc_body(t, carry):
        h, c = carry
        row = pl.multiple_of(t * b, b)
        xg_t = xg_enc_ref[pl.ds(row, b), :]
        return lstm_step(xg_t, h, c, w_hh_e)

    h_enc, c_enc = lax.fori_loop(0, t_enc, enc_body, (h0, c0), unroll=True)

    # ------------------------------ decoder -----------------------------------
    def dec_body(t, carry):
        h, c = carry
        row = pl.multiple_of(t * b, b)
        xg_t = xg_dec_ref[pl.ds(row, b), :]
        h_new, c_new = lstm_step(xg_t, h, c, w_hh_d)
        h_all_ref[pl.ds(row, b), :] = h_new
        return h_new, c_new

    lax.fori_loop(0, t_dec, dec_body, (h_enc, c_enc), unroll=True)

    # ---------- FC head: one matmul + one store over all decoder steps --------
    out_ref[...] = (
        jnp.dot(h_all_ref[...], w_fc_ref[...],
                preferred_element_type=jnp.float32)
        + b_fc_ref[...]
    )


# -----------------------------------------------------------------------------
# Wrapper (batch-first in/out, exactly like the PyTorch module)
# -----------------------------------------------------------------------------
@jax.jit
def seq2seq_forward(encoder_input, decoder_input, params):
    """encoder_input / decoder_input: [B, T, input_size] (batch_first=True)."""
    b, t_enc, i_sz = encoder_input.shape
    _, t_dec, _ = decoder_input.shape
    hp = params["w_hh_enc_t"].shape[0]          # padded hidden (multiple of 128)
    b_pad = _round_up(max(b, 8), 8)             # pad batch to sublane width

    def prep(x, t):
        x = jnp.transpose(x, (1, 0, 2)).astype(jnp.float32)        # [T, B, I]
        x = jnp.pad(x, ((0, 0), (0, b_pad - b), (0, 0)))           # [T, Bp, I]
        return x.reshape(t * b_pad, i_sz)                          # [T*Bp, I]

    enc_flat = prep(encoder_input, t_enc)
    dec_flat = prep(decoder_input, t_dec)

    kernel = functools.partial(
        _seq2seq_kernel, batch=b_pad, hidden=hp, t_enc=t_enc, t_dec=t_dec)

    vmem_spec = pl.BlockSpec(memory_space=pltpu.MemorySpace.VMEM)

    out_flat = pl.pallas_call(
        kernel,
        out_shape=jax.ShapeDtypeStruct((t_dec * b_pad, 1), jnp.float32),
        in_specs=[vmem_spec] * 10,
        out_specs=vmem_spec,
        scratch_shapes=[
            pltpu.VMEM((t_enc * b_pad, 4 * hp), jnp.float32),  # enc x-proj slab
            pltpu.VMEM((t_dec * b_pad, 4 * hp), jnp.float32),  # dec x-proj slab
            pltpu.VMEM((t_dec * b_pad, hp), jnp.float32),      # decoder h slab
        ],
        compiler_params=pltpu.CompilerParams(
            vmem_limit_bytes=32 * 1024 * 1024),
    )(
        enc_flat, dec_flat,
        params["w_ih_enc_t"], params["w_hh_enc_t"], params["b_enc"],
        params["w_ih_dec_t"], params["w_hh_dec_t"], params["b_dec"],
        params["w_fc_t"], params["b_fc"],
    )

    out = out_flat.reshape(t_dec, b_pad, 1)[:, :b, :]   # [T_dec, B, 1]
    return jnp.transpose(out, (1, 0, 2))                # [B, T_dec, 1]


# -----------------------------------------------------------------------------
# Parameter construction: PyTorch layout + kernel layout (transposed,
# gate-padded to Hp = round_up(H, 128), recurrent weights in bf16).
# Padding is exact: padded hidden units stay identically zero.
# -----------------------------------------------------------------------------
def make_params(key, input_size, hidden_size):
    h = hidden_size
    hp = _round_up(hidden_size, 128)
    bound = 1.0 / jnp.sqrt(jnp.float32(hidden_size))
    ks = jax.random.split(key, 10)

    def u(k, shape):
        return jax.random.uniform(k, shape, jnp.float32, -bound, bound)

    # PyTorch layout
    w_ih_enc = u(ks[0], (4 * h, input_size))
    w_hh_enc = u(ks[1], (4 * h, h))
    b_ih_enc = u(ks[2], (4 * h,))
    b_hh_enc = u(ks[3], (4 * h,))
    w_ih_dec = u(ks[4], (4 * h, input_size))
    w_hh_dec = u(ks[5], (4 * h, h))
    b_ih_dec = u(ks[6], (4 * h,))
    b_hh_dec = u(ks[7], (4 * h,))
    w_fc = u(ks[8], (1, h))
    b_fc = u(ks[9], (1,))

    torch_layout = dict(
        w_ih_enc=w_ih_enc, w_hh_enc=w_hh_enc, b_ih_enc=b_ih_enc, b_hh_enc=b_hh_enc,
        w_ih_dec=w_ih_dec, w_hh_dec=w_hh_dec, b_ih_dec=b_ih_dec, b_hh_dec=b_hh_dec,
        w_fc=w_fc, b_fc=b_fc,
    )

    def pad_gate_cols(w_t):
        """[rows, 4H] -> [rows, 4Hp]: each (i,f,g,o) gate block padded to Hp."""
        blocks = []
        for g in range(4):
            blk = w_t[:, g * h:(g + 1) * h]
            blocks.append(jnp.pad(blk, ((0, 0), (0, hp - h))))
        return jnp.concatenate(blocks, axis=1)

    def prep_ih(w):                                     # [4H, I] -> [I, 4Hp] f32
        return pad_gate_cols(w.T)

    def prep_hh(w):                                     # [4H, H] -> [Hp, 4Hp] bf16
        w_t = pad_gate_cols(w.T)                        # [H, 4Hp]
        return jnp.pad(w_t, ((0, hp - h), (0, 0))).astype(jnp.bfloat16)

    def prep_b(b_ih, b_hh):                             # -> [1, 4Hp] f32
        return pad_gate_cols((b_ih + b_hh)[None, :])

    kernel_params = dict(
        w_ih_enc_t=prep_ih(w_ih_enc),
        w_hh_enc_t=prep_hh(w_hh_enc),
        b_enc=prep_b(b_ih_enc, b_hh_enc),
        w_ih_dec_t=prep_ih(w_ih_dec),
        w_hh_dec_t=prep_hh(w_hh_dec),
        b_dec=prep_b(b_ih_dec, b_hh_dec),
        w_fc_t=jnp.pad(w_fc.T, ((0, hp - h), (0, 0))),  # [Hp, 1] f32
        b_fc=b_fc[None, :],                             # [1, 1]  f32
    )
    return torch_layout, kernel_params


# -----------------------------------------------------------------------------
# Pure-JAX reference (PyTorch LSTM semantics, f32) for correctness check.
# -----------------------------------------------------------------------------
def _lstm_ref(x, h0, c0, w_ih, w_hh, b_ih, b_hh):
    def step(carry, x_t):
        h, c = carry
        gates = x_t @ w_ih.T + h @ w_hh.T + b_ih + b_hh
        i, f, g, o = jnp.split(gates, 4, axis=-1)
        i = jax.nn.sigmoid(i)
        f = jax.nn.sigmoid(f)
        g = jnp.tanh(g)
        o = jax.nn.sigmoid(o)
        c = f * c + i * g
        h = o * jnp.tanh(c)
        return (h, c), h

    (h, c), ys = lax.scan(step, (h0, c0), jnp.transpose(x, (1, 0, 2)))
    return jnp.transpose(ys, (1, 0, 2)), (h, c)


def seq2seq_reference(encoder_input, decoder_input, p):
    b = encoder_input.shape[0]
    hidden = p["w_hh_enc"].shape[1]
    h0 = jnp.zeros((b, hidden), jnp.float32)
    c0 = jnp.zeros((b, hidden), jnp.float32)
    _, (h, c) = _lstm_ref(encoder_input, h0, c0,
                          p["w_ih_enc"], p["w_hh_enc"], p["b_ih_enc"], p["b_hh_enc"])
    dec_out, _ = _lstm_ref(decoder_input, h, c,
                           p["w_ih_dec"], p["w_hh_dec"], p["b_ih_dec"], p["b_hh_dec"])
    return dec_out @ p["w_fc"].T + p["b_fc"]


if __name__ == "__main__":
    BATCH = 2
    T_ENC = 8
    T_DEC = 8
    INPUT_SIZE = 1
    HIDDEN = 32   # padded internally to 128 for lane alignment

    key = jax.random.PRNGKey(0)
    k_enc, k_dec, k_par = jax.random.split(key, 3)

    encoder_input = jax.random.normal(k_enc, (BATCH, T_ENC, INPUT_SIZE), jnp.float32)
    decoder_input = jax.random.normal(k_dec, (BATCH, T_DEC, INPUT_SIZE), jnp.float32)

    torch_layout, kernel_params = make_params(k_par, INPUT_SIZE, HIDDEN)

    out = seq2seq_forward(encoder_input, decoder_input, kernel_params)
    out = jax.block_until_ready(out)

    ref = seq2seq_reference(encoder_input, decoder_input, torch_layout)
    assert out.shape == (BATCH, T_DEC, 1), out.shape
    # Tolerance loosened slightly because the recurrent matmul runs with bf16
    # operands (f32 accumulation), as recommended by the perf review.
    assert jnp.allclose(out, ref, rtol=2e-2, atol=2e-2), (
        f"max abs diff {jnp.max(jnp.abs(out - ref))}"
    )

    print("KERNEL_OK")
</pallas_src>

<mosaic_0001>
module attributes {stable_mosaic.version = 11 : i64} {
  func.func @_seq2seq_kernel(%arg0: memref<64x1xf32, #tpu.memory_space<vmem>>, %arg1: memref<64x1xf32, #tpu.memory_space<vmem>>, %arg2: memref<1x512xf32, #tpu.memory_space<vmem>>, %arg3: memref<128x512xbf16, #tpu.memory_space<vmem>>, %arg4: memref<1x512xf32, #tpu.memory_space<vmem>>, %arg5: memref<1x512xf32, #tpu.memory_space<vmem>>, %arg6: memref<128x512xbf16, #tpu.memory_space<vmem>>, %arg7: memref<1x512xf32, #tpu.memory_space<vmem>>, %arg8: memref<128x1xf32, #tpu.memory_space<vmem>>, %arg9: memref<1x1xf32, #tpu.memory_space<vmem>>, %arg10: memref<64x1xf32, #tpu.memory_space<vmem>>, %arg11: memref<64x512xf32, #tpu.memory_space<vmem>>, %arg12: memref<64x512xf32, #tpu.memory_space<vmem>>, %arg13: memref<64x128xf32, #tpu.memory_space<vmem>>) attributes {dimension_semantics = [], scalar_prefetch = 0 : i64, scratch_operands = 3 : i64, tpu.core_type = #tpu.core_type<tc>} {
    %c0 = arith.constant 0 : index
    %c0_0 = arith.constant 0 : index
    %0 = vector.load %arg3[%c0, %c0_0] : memref<128x512xbf16, #tpu.memory_space<vmem>>, vector<128x512xbf16>
    %c0_1 = arith.constant 0 : index
    %c0_2 = arith.constant 0 : index
    %1 = vector.load %arg6[%c0_1, %c0_2] : memref<128x512xbf16, #tpu.memory_space<vmem>>, vector<128x512xbf16>
    %c0_3 = arith.constant 0 : index
    %c0_4 = arith.constant 0 : index
    %2 = vector.load %arg0[%c0_3, %c0_4] : memref<64x1xf32, #tpu.memory_space<vmem>>, vector<64x1xf32>
    %c0_5 = arith.constant 0 : index
    %c0_6 = arith.constant 0 : index
    %3 = vector.load %arg2[%c0_5, %c0_6] : memref<1x512xf32, #tpu.memory_space<vmem>>, vector<1x512xf32>
    %cst = arith.constant dense<0.000000e+00> : vector<64x512xf32>
    %4 = tpu.matmul %2, %3, %cst {dimension_numbers = #tpu.dot_dimension_numbers<[1], [0], [0], [1], [0, 0, 1, 1], [], []>} : vector<64x1xf32>, vector<1x512xf32>, vector<64x512xf32> -> vector<64x512xf32>
    %c0_7 = arith.constant 0 : index
    %c0_8 = arith.constant 0 : index
    %5 = vector.load %arg4[%c0_7, %c0_8] : memref<1x512xf32, #tpu.memory_space<vmem>>, vector<1x512xf32>
    %6 = vector.broadcast %5 : vector<1x512xf32> to vector<64x512xf32>
    %7 = arith.addf %4, %6 : vector<64x512xf32>
    %c0_9 = arith.constant 0 : index
    %c0_10 = arith.constant 0 : index
    %8 = vector.load %arg11[%c0_9, %c0_10] : memref<64x512xf32, #tpu.memory_space<vmem>>, vector<64x512xf32>
    tpu.vector_store %arg11[%c0_9, %c0_10], %7 {strides = array<i32>} : memref<64x512xf32, #tpu.memory_space<vmem>>, vector<64x512xf32>,
    %c0_11 = arith.constant 0 : index
    %c0_12 = arith.constant 0 : index
    %9 = vector.load %arg1[%c0_11, %c0_12] : memref<64x1xf32, #tpu.memory_space<vmem>>, vector<64x1xf32>
    %c0_13 = arith.constant 0 : index
    %c0_14 = arith.constant 0 : index
    %10 = vector.load %arg5[%c0_13, %c0_14] : memref<1x512xf32, #tpu.memory_space<vmem>>, vector<1x512xf32>
    %cst_15 = arith.constant dense<0.000000e+00> : vector<64x512xf32>
    %11 = tpu.matmul %9, %10, %cst_15 {dimension_numbers = #tpu.dot_dimension_numbers<[1], [0], [0], [1], [0, 0, 1, 1], [], []>} : vector<64x1xf32>, vector<1x512xf32>, vector<64x512xf32> -> vector<64x512xf32>
    %c0_16 = arith.constant 0 : index
    %c0_17 = arith.constant 0 : index
    %12 = vector.load %arg7[%c0_16, %c0_17] : memref<1x512xf32, #tpu.memory_space<vmem>>, vector<1x512xf32>
    %13 = vector.broadcast %12 : vector<1x512xf32> to vector<64x512xf32>
    %14 = arith.addf %11, %13 : vector<64x512xf32>
    %c0_18 = arith.constant 0 : index
    %c0_19 = arith.constant 0 : index
    %15 = vector.load %arg12[%c0_18, %c0_19] : memref<64x512xf32, #tpu.memory_space<vmem>>, vector<64x512xf32>
    tpu.vector_store %arg12[%c0_18, %c0_19], %14 {strides = array<i32>} : memref<64x512xf32, #tpu.memory_space<vmem>>, vector<64x512xf32>,
    %cst_20 = arith.constant 0.000000e+00 : f32
    %16 = vector.broadcast %cst_20 : f32 to vector<8x128xf32>
    %cst_21 = arith.constant 0.000000e+00 : f32
    %17 = vector.broadcast %cst_21 : f32 to vector<8x128xf32>
    %c0_i32 = arith.constant 0 : i32
    %c8_i32 = arith.constant 8 : i32
    %18 = arith.muli %c0_i32, %c8_i32 : i32
    %19 = tpu.assume_multiple %18, 8 : i32
    %20 = arith.index_cast %19 : i32 to index
    %c0_22 = arith.constant 0 : index
    %21 = vector.load %arg11[%20, %c0_22] : memref<64x512xf32, #tpu.memory_space<vmem>>, vector<8x512xf32>
    %22 = arith.truncf %16 : vector<8x128xf32> to vector<8x128xbf16>
    %cst_23 = arith.constant dense<0.000000e+00> : vector<8x512xf32>
    %23 = tpu.matmul %22, %0, %cst_23 {dimension_numbers = #tpu.dot_dimension_numbers<[1], [0], [0], [1], [0, 0, 1, 1], [], []>} : vector<8x128xbf16>, vector<128x512xbf16>, vector<8x512xf32> -> vector<8x512xf32>
    %24 = arith.addf %21, %23 : vector<8x512xf32>
    %25 = vector.extract_strided_slice %24 {offsets = [0, 0], sizes = [8, 128], strides = [1, 1]} : vector<8x512xf32> to vector<8x128xf32>
    %26 = arith.negf %25 : vector<8x128xf32>
    %27 = math.exp %26 : vector<8x128xf32>
    %cst_24 = arith.constant 1.000000e+00 : f32
    %28 = vector.broadcast %cst_24 : f32 to vector<8x128xf32>
    %29 = arith.addf %28, %27 : vector<8x128xf32>
    %30 = arith.divf %28, %29 : vector<8x128xf32>
    %31 = vector.extract_strided_slice %24 {offsets = [0, 128], sizes = [8, 128], strides = [1, 1]} : vector<8x512xf32> to vector<8x128xf32>
    %32 = arith.negf %31 : vector<8x128xf32>
    %33 = math.exp %32 : vector<8x128xf32>
    %cst_25 = arith.constant 1.000000e+00 : f32
    %34 = vector.broadcast %cst_25 : f32 to vector<8x128xf32>
    %35 = arith.addf %34, %33 : vector<8x128xf32>
    %36 = arith.divf %34, %35 : vector<8x128xf32>
    %37 = vector.extract_strided_slice %24 {offsets = [0, 256], sizes = [8, 128], strides = [1, 1]} : vector<8x512xf32> to vector<8x128xf32>
    %38 = math.tanh %37 : vector<8x128xf32>
    %39 = vector.extract_strided_slice %24 {offsets = [0, 384], sizes = [8, 128], strides = [1, 1]} : vector<8x512xf32> to vector<8x128xf32>
    %40 = arith.negf %39 : vector<8x128xf32>
    %41 = math.exp %40 : vector<8x128xf32>
    %cst_26 = arith.constant 1.000000e+00 : f32
    %42 = vector.broadcast %cst_26 : f32 to vector<8x128xf32>
    %43 = arith.addf %42, %41 : vector<8x128xf32>
    %44 = arith.divf %42, %43 : vector<8x128xf32>
    %45 = arith.mulf %36, %17 : vector<8x128xf32>
    %46 = arith.mulf %30, %38 : vector<8x128xf32>
    %47 = arith.addf %45, %46 : vector<8x128xf32>
    %48 = math.tanh %47 : vector<8x128xf32>
    %49 = arith.mulf %44, %48 : vector<8x128xf32>
    %c1_i32 = arith.constant 1 : i32
    %c8_i32_27 = arith.constant 8 : i32
    %50 = arith.muli %c1_i32, %c8_i32_27 : i32
    %51 = tpu.assume_multiple %50, 8 : i32
    %52 = arith.index_cast %51 : i32 to index
    %c0_28 = arith.constant 0 : index
    %53 = vector.load %arg11[%52, %c0_28] : memref<64x512xf32, #tpu.memory_space<vmem>>, vector<8x512xf32>
    %54 = arith.truncf %49 : vector<8x128xf32> to vector<8x128xbf16>
    %cst_29 = arith.constant dense<0.000000e+00> : vector<8x512xf32>
    %55 = tpu.matmul %54, %0, %cst_29 {dimension_numbers = #tpu.dot_dimension_numbers<[1], [0], [0], [1], [0, 0, 1, 1], [], []>} : vector<8x128xbf16>, vector<128x512xbf16>, vector<8x512xf32> -> vector<8x512xf32>
    %56 = arith.addf %53, %55 : vector<8x512xf32>
    %57 = vector.extract_strided_slice %56 {offsets = [0, 0], sizes = [8, 128], strides = [1, 1]} : vector<8x512xf32> to vector<8x128xf32>
    %58 = arith.negf %57 : vector<8x128xf32>
    %59 = math.exp %58 : vector<8x128xf32>
    %cst_30 = arith.constant 1.000000e+00 : f32
    %60 = vector.broadcast %cst_30 : f32 to vector<8x128xf32>
    %61 = arith.addf %60, %59 : vector<8x128xf32>
    %62 = arith.divf %60, %61 : vector<8x128xf32>
    %63 = vector.extract_strided_slice %56 {offsets = [0, 128], sizes = [8, 128], strides = [1, 1]} : vector<8x512xf32> to vector<8x128xf32>
    %64 = arith.negf %63 : vector<8x128xf32>
    %65 = math.exp %64 : vector<8x128xf32>
    %cst_31 = arith.constant 1.000000e+00 : f32
    %66 = vector.broadcast %cst_31 : f32 to vector<8x128xf32>
    %67 = arith.addf %66, %65 : vector<8x128xf32>
    %68 = arith.divf %66, %67 : vector<8x128xf32>
    %69 = vector.extract_strided_slice %56 {offsets = [0, 256], sizes = [8, 128], strides = [1, 1]} : vector<8x512xf32> to vector<8x128xf32>
    %70 = math.tanh %69 : vector<8x128xf32>
    %71 = vector.extract_strided_slice %56 {offsets = [0, 384], sizes = [8, 128], strides = [1, 1]} : vector<8x512xf32> to vector<8x128xf32>
    %72 = arith.negf %71 : vector<8x128xf32>
    %73 = math.exp %72 : vector<8x128xf32>
    %cst_32 = arith.constant 1.000000e+00 : f32
    %74 = vector.broadcast %cst_32 : f32 to vector<8x128xf32>
    %75 = arith.addf %74, %73 : vector<8x128xf32>
    %76 = arith.divf %74, %75 : vector<8x128xf32>
    %77 = arith.mulf %68, %47 : vector<8x128xf32>
    %78 = arith.mulf %62, %70 : vector<8x128xf32>
    %79 = arith.addf %77, %78 : vector<8x128xf32>
    %80 = math.tanh %79 : vector<8x128xf32>
    %81 = arith.mulf %76, %80 : vector<8x128xf32>
    %c2_i32 = arith.constant 2 : i32
    %c8_i32_33 = arith.constant 8 : i32
    %82 = arith.muli %c2_i32, %c8_i32_33 : i32
    %83 = tpu.assume_multiple %82, 8 : i32
    %84 = arith.index_cast %83 : i32 to index
    %c0_34 = arith.constant 0 : index
    %85 = vector.load %arg11[%84, %c0_34] : memref<64x512xf32, #tpu.memory_space<vmem>>, vector<8x512xf32>
    %86 = arith.truncf %81 : vector<8x128xf32> to vector<8x128xbf16>
    %cst_35 = arith.constant dense<0.000000e+00> : vector<8x512xf32>
    %87 = tpu.matmul %86, %0, %cst_35 {dimension_numbers = #tpu.dot_dimension_numbers<[1], [0], [0], [1], [0, 0, 1, 1], [], []>} : vector<8x128xbf16>, vector<128x512xbf16>, vector<8x512xf32> -> vector<8x512xf32>
    %88 = arith.addf %85, %87 : vector<8x512xf32>
    %89 = vector.extract_strided_slice %88 {offsets = [0, 0], sizes = [8, 128], strides = [1, 1]} : vector<8x512xf32> to vector<8x128xf32>
    %90 = arith.negf %89 : vector<8x128xf32>
    %91 = math.exp %90 : vector<8x128xf32>
    %cst_36 = arith.constant 1.000000e+00 : f32
    %92 = vector.broadcast %cst_36 : f32 to vector<8x128xf32>
    %93 = arith.addf %92, %91 : vector<8x128xf32>
    %94 = arith.divf %92, %93 : vector<8x128xf32>
    %95 = vector.extract_strided_slice %88 {offsets = [0, 128], sizes = [8, 128], strides = [1, 1]} : vector<8x512xf32> to vector<8x128xf32>
    %96 = arith.negf %95 : vector<8x128xf32>
    %97 = math.exp %96 : vector<8x128xf32>
    %cst_37 = arith.constant 1.000000e+00 : f32
    %98 = vector.broadcast %cst_37 : f32 to vector<8x128xf32>
    %99 = arith.addf %98, %97 : vector<8x128xf32>
    %100 = arith.divf %98, %99 : vector<8x128xf32>
    %101 = vector.extract_strided_slice %88 {offsets = [0, 256], sizes = [8, 128], strides = [1, 1]} : vector<8x512xf32> to vector<8x128xf32>
    %102 = math.tanh %101 : vector<8x128xf32>
    %103 = vector.extract_strided_slice %88 {offsets = [0, 384], sizes = [8, 128], strides = [1, 1]} : vector<8x512xf32> to vector<8x128xf32>
    %104 = arith.negf %103 : vector<8x128xf32>
    %105 = math.exp %104 : vector<8x128xf32>
    %cst_38 = arith.constant 1.000000e+00 : f32
    %106 = vector.broadcast %cst_38 : f32 to vector<8x128xf32>
    %107 = arith.addf %106, %105 : vector<8x128xf32>
    %108 = arith.divf %106, %107 : vector<8x128xf32>
    %109 = arith.mulf %100, %79 : vector<8x128xf32>
    %110 = arith.mulf %94, %102 : vector<8x128xf32>
    %111 = arith.addf %109, %110 : vector<8x128xf32>
    %112 = math.tanh %111 : vector<8x128xf32>
    %113 = arith.mulf %108, %112 : vector<8x128xf32>
    %c3_i32 = arith.constant 3 : i32
    %c8_i32_39 = arith.constant 8 : i32
    %114 = arith.muli %c3_i32, %c8_i32_39 : i32
    %115 = tpu.assume_multiple %114, 8 : i32
    %116 = arith.index_cast %115 : i32 to index
    %c0_40 = arith.constant 0 : index
    %117 = vector.load %arg11[%116, %c0_40] : memref<64x512xf32, #tpu.memory_space<vmem>>, vector<8x512xf32>
    %118 = arith.truncf %113 : vector<8x128xf32> to vector<8x128xbf16>
    %cst_41 = arith.constant dense<0.000000e+00> : vector<8x512xf32>
    %119 = tpu.matmul %118, %0, %cst_41 {dimension_numbers = #tpu.dot_dimension_numbers<[1], [0], [0], [1], [0, 0, 1, 1], [], []>} : vector<8x128xbf16>, vector<128x512xbf16>, vector<8x512xf32> -> vector<8x512xf32>
    %120 = arith.addf %117, %119 : vector<8x512xf32>
    %121 = vector.extract_strided_slice %120 {offsets = [0, 0], sizes = [8, 128], strides = [1, 1]} : vector<8x512xf32> to vector<8x128xf32>
    %122 = arith.negf %121 : vector<8x128xf32>
    %123 = math.exp %122 : vector<8x128xf32>
    %cst_42 = arith.constant 1.000000e+00 : f32
    %124 = vector.broadcast %cst_42 : f32 to vector<8x128xf32>
    %125 = arith.addf %124, %123 : vector<8x128xf32>
    %126 = arith.divf %124, %125 : vector<8x128xf32>
    %127 = vector.extract_strided_slice %120 {offsets = [0, 128], sizes = [8, 128], strides = [1, 1]} : vector<8x512xf32> to vector<8x128xf32>
    %128 = arith.negf %127 : vector<8x128xf32>
    %129 = math.exp %128 : vector<8x128xf32>
    %cst_43 = arith.constant 1.000000e+00 : f32
    %130 = vector.broadcast %cst_43 : f32 to vector<8x128xf32>
    %131 = arith.addf %130, %129 : vector<8x128xf32>
    %132 = arith.divf %130, %131 : vector<8x128xf32>
    %133 = vector.extract_strided_slice %120 {offsets = [0, 256], sizes = [8, 128], strides = [1, 1]} : vector<8x512xf32> to vector<8x128xf32>
    %134 = math.tanh %133 : vector<8x128xf32>
    %135 = vector.extract_strided_slice %120 {offsets = [0, 384], sizes = [8, 128], strides = [1, 1]} : vector<8x512xf32> to vector<8x128xf32>
    %136 = arith.negf %135 : vector<8x128xf32>
    %137 = math.exp %136 : vector<8x128xf32>
    %cst_44 = arith.constant 1.000000e+00 : f32
    %138 = vector.broadcast %cst_44 : f32 to vector<8x128xf32>
    %139 = arith.addf %138, %137 : vector<8x128xf32>
    %140 = arith.divf %138, %139 : vector<8x128xf32>
    %141 = arith.mulf %132, %111 : vector<8x128xf32>
    %142 = arith.mulf %126, %134 : vector<8x128xf32>
    %143 = arith.addf %141, %142 : vector<8x128xf32>
    %144 = math.tanh %143 : vector<8x128xf32>
    %145 = arith.mulf %140, %144 : vector<8x128xf32>
    %c4_i32 = arith.constant 4 : i32
    %c8_i32_45 = arith.constant 8 : i32
    %146 = arith.muli %c4_i32, %c8_i32_45 : i32
    %147 = tpu.assume_multiple %146, 8 : i32
    %148 = arith.index_cast %147 : i32 to index
    %c0_46 = arith.constant 0 : index
    %149 = vector.load %arg11[%148, %c0_46] : memref<64x512xf32, #tpu.memory_space<vmem>>, vector<8x512xf32>
    %150 = arith.truncf %145 : vector<8x128xf32> to vector<8x128xbf16>
    %cst_47 = arith.constant dense<0.000000e+00> : vector<8x512xf32>
    %151 = tpu.matmul %150, %0, %cst_47 {dimension_numbers = #tpu.dot_dimension_numbers<[1], [0], [0], [1], [0, 0, 1, 1], [], []>} : vector<8x128xbf16>, vector<128x512xbf16>, vector<8x512xf32> -> vector<8x512xf32>
    %152 = arith.addf %149, %151 : vector<8x512xf32>
    %153 = vector.extract_strided_slice %152 {offsets = [0, 0], sizes = [8, 128], strides = [1, 1]} : vector<8x512xf32> to vector<8x128xf32>
    %154 = arith.negf %153 : vector<8x128xf32>
    %155 = math.exp %154 : vector<8x128xf32>
    %cst_48 = arith.constant 1.000000e+00 : f32
    %156 = vector.broadcast %cst_48 : f32 to vector<8x128xf32>
    %157 = arith.addf %156, %155 : vector<8x128xf32>
    %158 = arith.divf %156, %157 : vector<8x128xf32>
    %159 = vector.extract_strided_slice %152 {offsets = [0, 128], sizes = [8, 128], strides = [1, 1]} : vector<8x512xf32> to vector<8x128xf32>
    %160 = arith.negf %159 : vector<8x128xf32>
    %161 = math.exp %160 : vector<8x128xf32>
    %cst_49 = arith.constant 1.000000e+00 : f32
    %162 = vector.broadcast %cst_49 : f32 to vector<8x128xf32>
    %163 = arith.addf %162, %161 : vector<8x128xf32>
    %164 = arith.divf %162, %163 : vector<8x128xf32>
    %165 = vector.extract_strided_slice %152 {offsets = [0, 256], sizes = [8, 128], strides = [1, 1]} : vector<8x512xf32> to vector<8x128xf32>
    %166 = math.tanh %165 : vector<8x128xf32>
    %167 = vector.extract_strided_slice %152 {offsets = [0, 384], sizes = [8, 128], strides = [1, 1]} : vector<8x512xf32> to vector<8x128xf32>
    %168 = arith.negf %167 : vector<8x128xf32>
    %169 = math.exp %168 : vector<8x128xf32>
    %cst_50 = arith.constant 1.000000e+00 : f32
    %170 = vector.broadcast %cst_50 : f32 to vector<8x128xf32>
    %171 = arith.addf %170, %169 : vector<8x128xf32>
    %172 = arith.divf %170, %171 : vector<8x128xf32>
    %173 = arith.mulf %164, %143 : vector<8x128xf32>
    %174 = arith.mulf %158, %166 : vector<8x128xf32>
    %175 = arith.addf %173, %174 : vector<8x128xf32>
    %176 = math.tanh %175 : vector<8x128xf32>
    %177 = arith.mulf %172, %176 : vector<8x128xf32>
    %c5_i32 = arith.constant 5 : i32
    %c8_i32_51 = arith.constant 8 : i32
    %178 = arith.muli %c5_i32, %c8_i32_51 : i32
    %179 = tpu.assume_multiple %178, 8 : i32
    %180 = arith.index_cast %179 : i32 to index
    %c0_52 = arith.constant 0 : index
    %181 = vector.load %arg11[%180, %c0_52] : memref<64x512xf32, #tpu.memory_space<vmem>>, vector<8x512xf32>
    %182 = arith.truncf %177 : vector<8x128xf32> to vector<8x128xbf16>
    %cst_53 = arith.constant dense<0.000000e+00> : vector<8x512xf32>
    %183 = tpu.matmul %182, %0, %cst_53 {dimension_numbers = #tpu.dot_dimension_numbers<[1], [0], [0], [1], [0, 0, 1, 1], [], []>} : vector<8x128xbf16>, vector<128x512xbf16>, vector<8x512xf32> -> vector<8x512xf32>
    %184 = arith.addf %181, %183 : vector<8x512xf32>
    %185 = vector.extract_strided_slice %184 {offsets = [0, 0], sizes = [8, 128], strides = [1, 1]} : vector<8x512xf32> to vector<8x128xf32>
    %186 = arith.negf %185 : vector<8x128xf32>
    %187 = math.exp %186 : vector<8x128xf32>
    %cst_54 = arith.constant 1.000000e+00 : f32
    %188 = vector.broadcast %cst_54 : f32 to vector<8x128xf32>
    %189 = arith.addf %188, %187 : vector<8x128xf32>
    %190 = arith.divf %188, %189 : vector<8x128xf32>
    %191 = vector.extract_strided_slice %184 {offsets = [0, 128], sizes = [8, 128], strides = [1, 1]} : vector<8x512xf32> to vector<8x128xf32>
    %192 = arith.negf %191 : vector<8x128xf32>
    %193 = math.exp %192 : vector<8x128xf32>
    %cst_55 = arith.constant 1.000000e+00 : f32
    %194 = vector.broadcast %cst_55 : f32 to vector<8x128xf32>
    %195 = arith.addf %194, %193 : vector<8x128xf32>
    %196 = arith.divf %194, %195 : vector<8x128xf32>
    %197 = vector.extract_strided_slice %184 {offsets = [0, 256], sizes = [8, 128], strides = [1, 1]} : vector<8x512xf32> to vector<8x128xf32>
    %198 = math.tanh %197 : vector<8x128xf32>
    %199 = vector.extract_strided_slice %184 {offsets = [0, 384], sizes = [8, 128], strides = [1, 1]} : vector<8x512xf32> to vector<8x128xf32>
    %200 = arith.negf %199 : vector<8x128xf32>
    %201 = math.exp %200 : vector<8x128xf32>
    %cst_56 = arith.constant 1.000000e+00 : f32
    %202 = vector.broadcast %cst_56 : f32 to vector<8x128xf32>
    %203 = arith.addf %202, %201 : vector<8x128xf32>
    %204 = arith.divf %202, %203 : vector<8x128xf32>
    %205 = arith.mulf %196, %175 : vector<8x128xf32>
    %206 = arith.mulf %190, %198 : vector<8x128xf32>
    %207 = arith.addf %205, %206 : vector<8x128xf32>
    %208 = math.tanh %207 : vector<8x128xf32>
    %209 = arith.mulf %204, %208 : vector<8x128xf32>
    %c6_i32 = arith.constant 6 : i32
    %c8_i32_57 = arith.constant 8 : i32
    %210 = arith.muli %c6_i32, %c8_i32_57 : i32
    %211 = tpu.assume_multiple %210, 8 : i32
    %212 = arith.index_cast %211 : i32 to index
    %c0_58 = arith.constant 0 : index
    %213 = vector.load %arg11[%212, %c0_58] : memref<64x512xf32, #tpu.memory_space<vmem>>, vector<8x512xf32>
    %214 = arith.truncf %209 : vector<8x128xf32> to vector<8x128xbf16>
    %cst_59 = arith.constant dense<0.000000e+00> : vector<8x512xf32>
    %215 = tpu.matmul %214, %0, %cst_59 {dimension_numbers = #tpu.dot_dimension_numbers<[1], [0], [0], [1], [0, 0, 1, 1], [], []>} : vector<8x128xbf16>, vector<128x512xbf16>, vector<8x512xf32> -> vector<8x512xf32>
    %216 = arith.addf %213, %215 : vector<8x512xf32>
    %217 = vector.extract_strided_slice %216 {offsets = [0, 0], sizes = [8, 128], strides = [1, 1]} : vector<8x512xf32> to vector<8x128xf32>
    %218 = arith.negf %217 : vector<8x128xf32>
    %219 = math.exp %218 : vector<8x128xf32>
    %cst_60 = arith.constant 1.000000e+00 : f32
    %220 = vector.broadcast %cst_60 : f32 to vector<8x128xf32>
    %221 = arith.addf %220, %219 : vector<8x128xf32>
    %222 = arith.divf %220, %221 : vector<8x128xf32>
    %223 = vector.extract_strided_slice %216 {offsets = [0, 128], sizes = [8, 128], strides = [1, 1]} : vector<8x512xf32> to vector<8x128xf32>
    %224 = arith.negf %223 : vector<8x128xf32>
    %225 = math.exp %224 : vector<8x128xf32>
    %cst_61 = arith.constant 1.000000e+00 : f32
    %226 = vector.broadcast %cst_61 : f32 to vector<8x128xf32>
    %227 = arith.addf %226, %225 : vector<8x128xf32>
    %228 = arith.divf %226, %227 : vector<8x128xf32>
    %229 = vector.extract_strided_slice %216 {offsets = [0, 256], sizes = [8, 128], strides = [1, 1]} : vector<8x512xf32> to vector<8x128xf32>
    %230 = math.tanh %229 : vector<8x128xf32>
    %231 = vector.extract_strided_slice %216 {offsets = [0, 384], sizes = [8, 128], strides = [1, 1]} : vector<8x512xf32> to vector<8x128xf32>
    %232 = arith.negf %231 : vector<8x128xf32>
    %233 = math.exp %232 : vector<8x128xf32>
    %cst_62 = arith.constant 1.000000e+00 : f32
    %234 = vector.broadcast %cst_62 : f32 to vector<8x128xf32>
    %235 = arith.addf %234, %233 : vector<8x128xf32>
    %236 = arith.divf %234, %235 : vector<8x128xf32>
    %237 = arith.mulf %228, %207 : vector<8x128xf32>
    %238 = arith.mulf %222, %230 : vector<8x128xf32>
    %239 = arith.addf %237, %238 : vector<8x128xf32>
    %240 = math.tanh %239 : vector<8x128xf32>
    %241 = arith.mulf %236, %240 : vector<8x128xf32>
    %c7_i32 = arith.constant 7 : i32
    %c8_i32_63 = arith.constant 8 : i32
    %242 = arith.muli %c7_i32, %c8_i32_63 : i32
    %243 = tpu.assume_multiple %242, 8 : i32
    %244 = arith.index_cast %243 : i32 to index
    %c0_64 = arith.constant 0 : index
    %245 = vector.load %arg11[%244, %c0_64] : memref<64x512xf32, #tpu.memory_space<vmem>>, vector<8x512xf32>
    %246 = arith.truncf %241 : vector<8x128xf32> to vector<8x128xbf16>
    %cst_65 = arith.constant dense<0.000000e+00> : vector<8x512xf32>
    %247 = tpu.matmul %246, %0, %cst_65 {dimension_numbers = #tpu.dot_dimension_numbers<[1], [0], [0], [1], [0, 0, 1, 1], [], []>} : vector<8x128xbf16>, vector<128x512xbf16>, vector<8x512xf32> -> vector<8x512xf32>
    %248 = arith.addf %245, %247 : vector<8x512xf32>
    %249 = vector.extract_strided_slice %248 {offsets = [0, 0], sizes = [8, 128], strides = [1, 1]} : vector<8x512xf32> to vector<8x128xf32>
    %250 = arith.negf %249 : vector<8x128xf32>
    %251 = math.exp %250 : vector<8x128xf32>
    %cst_66 = arith.constant 1.000000e+00 : f32
    %252 = vector.broadcast %cst_66 : f32 to vector<8x128xf32>
    %253 = arith.addf %252, %251 : vector<8x128xf32>
    %254 = arith.divf %252, %253 : vector<8x128xf32>
    %255 = vector.extract_strided_slice %248 {offsets = [0, 128], sizes = [8, 128], strides = [1, 1]} : vector<8x512xf32> to vector<8x128xf32>
    %256 = arith.negf %255 : vector<8x128xf32>
    %257 = math.exp %256 : vector<8x128xf32>
    %cst_67 = arith.constant 1.000000e+00 : f32
    %258 = vector.broadcast %cst_67 : f32 to vector<8x128xf32>
    %259 = arith.addf %258, %257 : vector<8x128xf32>
    %260 = arith.divf %258, %259 : vector<8x128xf32>
    %261 = vector.extract_strided_slice %248 {offsets = [0, 256], sizes = [8, 128], strides = [1, 1]} : vector<8x512xf32> to vector<8x128xf32>
    %262 = math.tanh %261 : vector<8x128xf32>
    %263 = vector.extract_strided_slice %248 {offsets = [0, 384], sizes = [8, 128], strides = [1, 1]} : vector<8x512xf32> to vector<8x128xf32>
    %264 = arith.negf %263 : vector<8x128xf32>
    %265 = math.exp %264 : vector<8x128xf32>
    %cst_68 = arith.constant 1.000000e+00 : f32
    %266 = vector.broadcast %cst_68 : f32 to vector<8x128xf32>
    %267 = arith.addf %266, %265 : vector<8x128xf32>
    %268 = arith.divf %266, %267 : vector<8x128xf32>
    %269 = arith.mulf %260, %239 : vector<8x128xf32>
    %270 = arith.mulf %254, %262 : vector<8x128xf32>
    %271 = arith.addf %269, %270 : vector<8x128xf32>
    %272 = math.tanh %271 : vector<8x128xf32>
    %273 = arith.mulf %268, %272 : vector<8x128xf32>
    %c8_i32_69 = arith.constant 8 : i32
    %c0_i32_70 = arith.constant 0 : i32
    %c8_i32_71 = arith.constant 8 : i32
    %274 = arith.muli %c0_i32_70, %c8_i32_71 : i32
    %275 = tpu.assume_multiple %274, 8 : i32
    %276 = arith.index_cast %275 : i32 to index
    %c0_72 = arith.constant 0 : index
    %277 = vector.load %arg12[%276, %c0_72] : memref<64x512xf32, #tpu.memory_space<vmem>>, vector<8x512xf32>
    %278 = arith.truncf %273 : vector<8x128xf32> to vector<8x128xbf16>
    %cst_73 = arith.constant dense<0.000000e+00> : vector<8x512xf32>
    %279 = tpu.matmul %278, %1, %cst_73 {dimension_numbers = #tpu.dot_dimension_numbers<[1], [0], [0], [1], [0, 0, 1, 1], [], []>} : vector<8x128xbf16>, vector<128x512xbf16>, vector<8x512xf32> -> vector<8x512xf32>
    %280 = arith.addf %277, %279 : vector<8x512xf32>
    %281 = vector.extract_strided_slice %280 {offsets = [0, 0], sizes = [8, 128], strides = [1, 1]} : vector<8x512xf32> to vector<8x128xf32>
    %282 = arith.negf %281 : vector<8x128xf32>
    %283 = math.exp %282 : vector<8x128xf32>
    %cst_74 = arith.constant 1.000000e+00 : f32
    %284 = vector.broadcast %cst_74 : f32 to vector<8x128xf32>
    %285 = arith.addf %284, %283 : vector<8x128xf32>
    %286 = arith.divf %284, %285 : vector<8x128xf32>
    %287 = vector.extract_strided_slice %280 {offsets = [0, 128], sizes = [8, 128], strides = [1, 1]} : vector<8x512xf32> to vector<8x128xf32>
    %288 = arith.negf %287 : vector<8x128xf32>
    %289 = math.exp %288 : vector<8x128xf32>
    %cst_75 = arith.constant 1.000000e+00 : f32
    %290 = vector.broadcast %cst_75 : f32 to vector<8x128xf32>
    %291 = arith.addf %290, %289 : vector<8x128xf32>
    %292 = arith.divf %290, %291 : vector<8x128xf32>
    %293 = vector.extract_strided_slice %280 {offsets = [0, 256], sizes = [8, 128], strides = [1, 1]} : vector<8x512xf32> to vector<8x128xf32>
    %294 = math.tanh %293 : vector<8x128xf32>
    %295 = vector.extract_strided_slice %280 {offsets = [0, 384], sizes = [8, 128], strides = [1, 1]} : vector<8x512xf32> to vector<8x128xf32>
    %296 = arith.negf %295 : vector<8x128xf32>
    %297 = math.exp %296 : vector<8x128xf32>
    %cst_76 = arith.constant 1.000000e+00 : f32
    %298 = vector.broadcast %cst_76 : f32 to vector<8x128xf32>
    %299 = arith.addf %298, %297 : vector<8x128xf32>
    %300 = arith.divf %298, %299 : vector<8x128xf32>
    %301 = arith.mulf %292, %271 : vector<8x128xf32>
    %302 = arith.mulf %286, %294 : vector<8x128xf32>
    %303 = arith.addf %301, %302 : vector<8x128xf32>
    %304 = math.tanh %303 : vector<8x128xf32>
    %305 = arith.mulf %300, %304 : vector<8x128xf32>
    %306 = arith.index_cast %275 : i32 to index
    %c0_77 = arith.constant 0 : index
    %307 = vector.load %arg13[%306, %c0_77] : memref<64x128xf32, #tpu.memory_space<vmem>>, vector<8x128xf32>
    tpu.vector_store %arg13[%306, %c0_77], %305 {strides = array<i32>} : memref<64x128xf32, #tpu.memory_space<vmem>>, vector<8x128xf32>,
    %c1_i32_78 = arith.constant 1 : i32
    %c8_i32_79 = arith.constant 8 : i32
    %308 = arith.muli %c1_i32_78, %c8_i32_79 : i32
    %309 = tpu.assume_multiple %308, 8 : i32
    %310 = arith.index_cast %309 : i32 to index
    %c0_80 = arith.constant 0 : index
    %311 = vector.load %arg12[%310, %c0_80] : memref<64x512xf32, #tpu.memory_space<vmem>>, vector<8x512xf32>
    %312 = arith.truncf %305 : vector<8x128xf32> to vector<8x128xbf16>
    %cst_81 = arith.constant dense<0.000000e+00> : vector<8x512xf32>
    %313 = tpu.matmul %312, %1, %cst_81 {dimension_numbers = #tpu.dot_dimension_numbers<[1], [0], [0], [1], [0, 0, 1, 1], [], []>} : vector<8x128xbf16>, vector<128x512xbf16>, vector<8x512xf32> -> vector<8x512xf32>
    %314 = arith.addf %311, %313 : vector<8x512xf32>
    %315 = vector.extract_strided_slice %314 {offsets = [0, 0], sizes = [8, 128], strides = [1, 1]} : vector<8x512xf32> to vector<8x128xf32>
    %316 = arith.negf %315 : vector<8x128xf32>
    %317 = math.exp %316 : vector<8x128xf32>
    %cst_82 = arith.constant 1.000000e+00 : f32
    %318 = vector.broadcast %cst_82 : f32 to vector<8x128xf32>
    %319 = arith.addf %318, %317 : vector<8x128xf32>
    %320 = arith.divf %318, %319 : vector<8x128xf32>
    %321 = vector.extract_strided_slice %314 {offsets = [0, 128], sizes = [8, 128], strides = [1, 1]} : vector<8x512xf32> to vector<8x128xf32>
    %322 = arith.negf %321 : vector<8x128xf32>
    %323 = math.exp %322 : vector<8x128xf32>
    %cst_83 = arith.constant 1.000000e+00 : f32
    %324 = vector.broadcast %cst_83 : f32 to vector<8x128xf32>
    %325 = arith.addf %324, %323 : vector<8x128xf32>
    %326 = arith.divf %324, %325 : vector<8x128xf32>
    %327 = vector.extract_strided_slice %314 {offsets = [0, 256], sizes = [8, 128], strides = [1, 1]} : vector<8x512xf32> to vector<8x128xf32>
    %328 = math.tanh %327 : vector<8x128xf32>
    %329 = vector.extract_strided_slice %314 {offsets = [0, 384], sizes = [8, 128], strides = [1, 1]} : vector<8x512xf32> to vector<8x128xf32>
    %330 = arith.negf %329 : vector<8x128xf32>
    %331 = math.exp %330 : vector<8x128xf32>
    %cst_84 = arith.constant 1.000000e+00 : f32
    %332 = vector.broadcast %cst_84 : f32 to vector<8x128xf32>
    %333 = arith.addf %332, %331 : vector<8x128xf32>
    %334 = arith.divf %332, %333 : vector<8x128xf32>
    %335 = arith.mulf %326, %303 : vector<8x128xf32>
    %336 = arith.mulf %320, %328 : vector<8x128xf32>
    %337 = arith.addf %335, %336 : vector<8x128xf32>
    %338 = math.tanh %337 : vector<8x128xf32>
    %339 = arith.mulf %334, %338 : vector<8x128xf32>
    %340 = arith.index_cast %309 : i32 to index
    %c0_85 = arith.constant 0 : index
    %341 = vector.load %arg13[%340, %c0_85] : memref<64x128xf32, #tpu.memory_space<vmem>>, vector<8x128xf32>
    tpu.vector_store %arg13[%340, %c0_85], %339 {strides = array<i32>} : memref<64x128xf32, #tpu.memory_space<vmem>>, vector<8x128xf32>,
    %c2_i32_86 = arith.constant 2 : i32
    %c8_i32_87 = arith.constant 8 : i32
    %342 = arith.muli %c2_i32_86, %c8_i32_87 : i32
    %343 = tpu.assume_multiple %342, 8 : i32
    %344 = arith.index_cast %343 : i32 to index
    %c0_88 = arith.constant 0 : index
    %345 = vector.load %arg12[%344, %c0_88] : memref<64x512xf32, #tpu.memory_space<vmem>>, vector<8x512xf32>
    %346 = arith.truncf %339 : vector<8x128xf32> to vector<8x128xbf16>
    %cst_89 = arith.constant dense<0.000000e+00> : vector<8x512xf32>
    %347 = tpu.matmul %346, %1, %cst_89 {dimension_numbers = #tpu.dot_dimension_numbers<[1], [0], [0], [1], [0, 0, 1, 1], [], []>} : vector<8x128xbf16>, vector<128x512xbf16>, vector<8x512xf32> -> vector<8x512xf32>
    %348 = arith.addf %345, %347 : vector<8x512xf32>
    %349 = vector.extract_strided_slice %348 {offsets = [0, 0], sizes = [8, 128], strides = [1, 1]} : vector<8x512xf32> to vector<8x128xf32>
    %350 = arith.negf %349 : vector<8x128xf32>
    %351 = math.exp %350 : vector<8x128xf32>
    %cst_90 = arith.constant 1.000000e+00 : f32
    %352 = vector.broadcast %cst_90 : f32 to vector<8x128xf32>
    %353 = arith.addf %352, %351 : vector<8x128xf32>
    %354 = arith.divf %352, %353 : vector<8x128xf32>
    %355 = vector.extract_strided_slice %348 {offsets = [0, 128], sizes = [8, 128], strides = [1, 1]} : vector<8x512xf32> to vector<8x128xf32>
    %356 = arith.negf %355 : vector<8x128xf32>
    %357 = math.exp %356 : vector<8x128xf32>
    %cst_91 = arith.constant 1.000000e+00 : f32
    %358 = vector.broadcast %cst_91 : f32 to vector<8x128xf32>
    %359 = arith.addf %358, %357 : vector<8x128xf32>
    %360 = arith.divf %358, %359 : vector<8x128xf32>
    %361 = vector.extract_strided_slice %348 {offsets = [0, 256], sizes = [8, 128], strides = [1, 1]} : vector<8x512xf32> to vector<8x128xf32>
    %362 = math.tanh %361 : vector<8x128xf32>
    %363 = vector.extract_strided_slice %348 {offsets = [0, 384], sizes = [8, 128], strides = [1, 1]} : vector<8x512xf32> to vector<8x128xf32>
    %364 = arith.negf %363 : vector<8x128xf32>
    %365 = math.exp %364 : vector<8x128xf32>
    %cst_92 = arith.constant 1.000000e+00 : f32
    %366 = vector.broadcast %cst_92 : f32 to vector<8x128xf32>
    %367 = arith.addf %366, %365 : vector<8x128xf32>
    %368 = arith.divf %366, %367 : vector<8x128xf32>
    %369 = arith.mulf %360, %337 : vector<8x128xf32>
    %370 = arith.mulf %354, %362 : vector<8x128xf32>
    %371 = arith.addf %369, %370 : vector<8x128xf32>
    %372 = math.tanh %371 : vector<8x128xf32>
    %373 = arith.mulf %368, %372 : vector<8x128xf32>
    %374 = arith.index_cast %343 : i32 to index
    %c0_93 = arith.constant 0 : index
    %375 = vector.load %arg13[%374, %c0_93] : memref<64x128xf32, #tpu.memory_space<vmem>>, vector<8x128xf32>
    tpu.vector_store %arg13[%374, %c0_93], %373 {strides = array<i32>} : memref<64x128xf32, #tpu.memory_space<vmem>>, vector<8x128xf32>,
    %c3_i32_94 = arith.constant 3 : i32
    %c8_i32_95 = arith.constant 8 : i32
    %376 = arith.muli %c3_i32_94, %c8_i32_95 : i32
    %377 = tpu.assume_multiple %376, 8 : i32
    %378 = arith.index_cast %377 : i32 to index
    %c0_96 = arith.constant 0 : index
    %379 = vector.load %arg12[%378, %c0_96] : memref<64x512xf32, #tpu.memory_space<vmem>>, vector<8x512xf32>
    %380 = arith.truncf %373 : vector<8x128xf32> to vector<8x128xbf16>
    %cst_97 = arith.constant dense<0.000000e+00> : vector<8x512xf32>
    %381 = tpu.matmul %380, %1, %cst_97 {dimension_numbers = #tpu.dot_dimension_numbers<[1], [0], [0], [1], [0, 0, 1, 1], [], []>} : vector<8x128xbf16>, vector<128x512xbf16>, vector<8x512xf32> -> vector<8x512xf32>
    %382 = arith.addf %379, %381 : vector<8x512xf32>
    %383 = vector.extract_strided_slice %382 {offsets = [0, 0], sizes = [8, 128], strides = [1, 1]} : vector<8x512xf32> to vector<8x128xf32>
    %384 = arith.negf %383 : vector<8x128xf32>
    %385 = math.exp %384 : vector<8x128xf32>
    %cst_98 = arith.constant 1.000000e+00 : f32
    %386 = vector.broadcast %cst_98 : f32 to vector<8x128xf32>
    %387 = arith.addf %386, %385 : vector<8x128xf32>
    %388 = arith.divf %386, %387 : vector<8x128xf32>
    %389 = vector.extract_strided_slice %382 {offsets = [0, 128], sizes = [8, 128], strides = [1, 1]} : vector<8x512xf32> to vector<8x128xf32>
    %390 = arith.negf %389 : vector<8x128xf32>
    %391 = math.exp %390 : vector<8x128xf32>
    %cst_99 = arith.constant 1.000000e+00 : f32
    %392 = vector.broadcast %cst_99 : f32 to vector<8x128xf32>
    %393 = arith.addf %392, %391 : vector<8x128xf32>
    %394 = arith.divf %392, %393 : vector<8x128xf32>
    %395 = vector.extract_strided_slice %382 {offsets = [0, 256], sizes = [8, 128], strides = [1, 1]} : vector<8x512xf32> to vector<8x128xf32>
    %396 = math.tanh %395 : vector<8x128xf32>
    %397 = vector.extract_strided_slice %382 {offsets = [0, 384], sizes = [8, 128], strides = [1, 1]} : vector<8x512xf32> to vector<8x128xf32>
    %398 = arith.negf %397 : vector<8x128xf32>
    %399 = math.exp %398 : vector<8x128xf32>
    %cst_100 = arith.constant 1.000000e+00 : f32
    %400 = vector.broadcast %cst_100 : f32 to vector<8x128xf32>
    %401 = arith.addf %400, %399 : vector<8x128xf32>
    %402 = arith.divf %400, %401 : vector<8x128xf32>
    %403 = arith.mulf %394, %371 : vector<8x128xf32>
    %404 = arith.mulf %388, %396 : vector<8x128xf32>
    %405 = arith.addf %403, %404 : vector<8x128xf32>
    %406 = math.tanh %405 : vector<8x128xf32>
    %407 = arith.mulf %402, %406 : vector<8x128xf32>
    %408 = arith.index_cast %377 : i32 to index
    %c0_101 = arith.constant 0 : index
    %409 = vector.load %arg13[%408, %c0_101] : memref<64x128xf32, #tpu.memory_space<vmem>>, vector<8x128xf32>
    tpu.vector_store %arg13[%408, %c0_101], %407 {strides = array<i32>} : memref<64x128xf32, #tpu.memory_space<vmem>>, vector<8x128xf32>,
    %c4_i32_102 = arith.constant 4 : i32
    %c8_i32_103 = arith.constant 8 : i32
    %410 = arith.muli %c4_i32_102, %c8_i32_103 : i32
    %411 = tpu.assume_multiple %410, 8 : i32
    %412 = arith.index_cast %411 : i32 to index
    %c0_104 = arith.constant 0 : index
    %413 = vector.load %arg12[%412, %c0_104] : memref<64x512xf32, #tpu.memory_space<vmem>>, vector<8x512xf32>
    %414 = arith.truncf %407 : vector<8x128xf32> to vector<8x128xbf16>
    %cst_105 = arith.constant dense<0.000000e+00> : vector<8x512xf32>
    %415 = tpu.matmul %414, %1, %cst_105 {dimension_numbers = #tpu.dot_dimension_numbers<[1], [0], [0], [1], [0, 0, 1, 1], [], []>} : vector<8x128xbf16>, vector<128x512xbf16>, vector<8x512xf32> -> vector<8x512xf32>
    %416 = arith.addf %413, %415 : vector<8x512xf32>
    %417 = vector.extract_strided_slice %416 {offsets = [0, 0], sizes = [8, 128], strides = [1, 1]} : vector<8x512xf32> to vector<8x128xf32>
    %418 = arith.negf %417 : vector<8x128xf32>
    %419 = math.exp %418 : vector<8x128xf32>
    %cst_106 = arith.constant 1.000000e+00 : f32
    %420 = vector.broadcast %cst_106 : f32 to vector<8x128xf32>
    %421 = arith.addf %420, %419 : vector<8x128xf32>
    %422 = arith.divf %420, %421 : vector<8x128xf32>
    %423 = vector.extract_strided_slice %416 {offsets = [0, 128], sizes = [8, 128], strides = [1, 1]} : vector<8x512xf32> to vector<8x128xf32>
    %424 = arith.negf %423 : vector<8x128xf32>
    %425 = math.exp %424 : vector<8x128xf32>
    %cst_107 = arith.constant 1.000000e+00 : f32
    %426 = vector.broadcast %cst_107 : f32 to vector<8x128xf32>
    %427 = arith.addf %426, %425 : vector<8x128xf32>
    %428 = arith.divf %426, %427 : vector<8x128xf32>
    %429 = vector.extract_strided_slice %416 {offsets = [0, 256], sizes = [8, 128], strides = [1, 1]} : vector<8x512xf32> to vector<8x128xf32>
    %430 = math.tanh %429 : vector<8x128xf32>
    %431 = vector.extract_strided_slice %416 {offsets = [0, 384], sizes = [8, 128], strides = [1, 1]} : vector<8x512xf32> to vector<8x128xf32>
    %432 = arith.negf %431 : vector<8x128xf32>
    %433 = math.exp %432 : vector<8x128xf32>
    %cst_108 = arith.constant 1.000000e+00 : f32
    %434 = vector.broadcast %cst_108 : f32 to vector<8x128xf32>
    %435 = arith.addf %434, %433 : vector<8x128xf32>
    %436 = arith.divf %434, %435 : vector<8x128xf32>
    %437 = arith.mulf %428, %405 : vector<8x128xf32>
    %438 = arith.mulf %422, %430 : vector<8x128xf32>
    %439 = arith.addf %437, %438 : vector<8x128xf32>
    %440 = math.tanh %439 : vector<8x128xf32>
    %441 = arith.mulf %436, %440 : vector<8x128xf32>
    %442 = arith.index_cast %411 : i32 to index
    %c0_109 = arith.constant 0 : index
    %443 = vector.load %arg13[%442, %c0_109] : memref<64x128xf32, #tpu.memory_space<vmem>>, vector<8x128xf32>
    tpu.vector_store %arg13[%442, %c0_109], %441 {strides = array<i32>} : memref<64x128xf32, #tpu.memory_space<vmem>>, vector<8x128xf32>,
    %c5_i32_110 = arith.constant 5 : i32
    %c8_i32_111 = arith.constant 8 : i32
    %444 = arith.muli %c5_i32_110, %c8_i32_111 : i32
    %445 = tpu.assume_multiple %444, 8 : i32
    %446 = arith.index_cast %445 : i32 to index
    %c0_112 = arith.constant 0 : index
    %447 = vector.load %arg12[%446, %c0_112] : memref<64x512xf32, #tpu.memory_space<vmem>>, vector<8x512xf32>
    %448 = arith.truncf %441 : vector<8x128xf32> to vector<8x128xbf16>
    %cst_113 = arith.constant dense<0.000000e+00> : vector<8x512xf32>
    %449 = tpu.matmul %448, %1, %cst_113 {dimension_numbers = #tpu.dot_dimension_numbers<[1], [0], [0], [1], [0, 0, 1, 1], [], []>} : vector<8x128xbf16>, vector<128x512xbf16>, vector<8x512xf32> -> vector<8x512xf32>
    %450 = arith.addf %447, %449 : vector<8x512xf32>
    %451 = vector.extract_strided_slice %450 {offsets = [0, 0], sizes = [8, 128], strides = [1, 1]} : vector<8x512xf32> to vector<8x128xf32>
    %452 = arith.negf %451 : vector<8x128xf32>
    %453 = math.exp %452 : vector<8x128xf32>
    %cst_114 = arith.constant 1.000000e+00 : f32
    %454 = vector.broadcast %cst_114 : f32 to vector<8x128xf32>
    %455 = arith.addf %454, %453 : vector<8x128xf32>
    %456 = arith.divf %454, %455 : vector<8x128xf32>
    %457 = vector.extract_strided_slice %450 {offsets = [0, 128], sizes = [8, 128], strides = [1, 1]} : vector<8x512xf32> to vector<8x128xf32>
    %458 = arith.negf %457 : vector<8x128xf32>
    %459 = math.exp %458 : vector<8x128xf32>
    %cst_115 = arith.constant 1.000000e+00 : f32
    %460 = vector.broadcast %cst_115 : f32 to vector<8x128xf32>
    %461 = arith.addf %460, %459 : vector<8x128xf32>
    %462 = arith.divf %460, %461 : vector<8x128xf32>
    %463 = vector.extract_strided_slice %450 {offsets = [0, 256], sizes = [8, 128], strides = [1, 1]} : vector<8x512xf32> to vector<8x128xf32>
    %464 = math.tanh %463 : vector<8x128xf32>
    %465 = vector.extract_strided_slice %450 {offsets = [0, 384], sizes = [8, 128], strides = [1, 1]} : vector<8x512xf32> to vector<8x128xf32>
    %466 = arith.negf %465 : vector<8x128xf32>
    %467 = math.exp %466 : vector<8x128xf32>
    %cst_116 = arith.constant 1.000000e+00 : f32
    %468 = vector.broadcast %cst_116 : f32 to vector<8x128xf32>
    %469 = arith.addf %468, %467 : vector<8x128xf32>
    %470 = arith.divf %468, %469 : vector<8x128xf32>
    %471 = arith.mulf %462, %439 : vector<8x128xf32>
    %472 = arith.mulf %456, %464 : vector<8x128xf32>
    %473 = arith.addf %471, %472 : vector<8x128xf32>
    %474 = math.tanh %473 : vector<8x128xf32>
    %475 = arith.mulf %470, %474 : vector<8x128xf32>
    %476 = arith.index_cast %445 : i32 to index
    %c0_117 = arith.constant 0 : index
    %477 = vector.load %arg13[%476, %c0_117] : memref<64x128xf32, #tpu.memory_space<vmem>>, vector<8x128xf32>
    tpu.vector_store %arg13[%476, %c0_117], %475 {strides = array<i32>} : memref<64x128xf32, #tpu.memory_space<vmem>>, vector<8x128xf32>,
    %c6_i32_118 = arith.constant 6 : i32
    %c8_i32_119 = arith.constant 8 : i32
    %478 = arith.muli %c6_i32_118, %c8_i32_119 : i32
    %479 = tpu.assume_multiple %478, 8 : i32
    %480 = arith.index_cast %479 : i32 to index
    %c0_120 = arith.constant 0 : index
    %481 = vector.load %arg12[%480, %c0_120] : memref<64x512xf32, #tpu.memory_space<vmem>>, vector<8x512xf32>
    %482 = arith.truncf %475 : vector<8x128xf32> to vector<8x128xbf16>
    %cst_121 = arith.constant dense<0.000000e+00> : vector<8x512xf32>
    %483 = tpu.matmul %482, %1, %cst_121 {dimension_numbers = #tpu.dot_dimension_numbers<[1], [0], [0], [1], [0, 0, 1, 1], [], []>} : vector<8x128xbf16>, vector<128x512xbf16>, vector<8x512xf32> -> vector<8x512xf32>
    %484 = arith.addf %481, %483 : vector<8x512xf32>
    %485 = vector.extract_strided_slice %484 {offsets = [0, 0], sizes = [8, 128], strides = [1, 1]} : vector<8x512xf32> to vector<8x128xf32>
    %486 = arith.negf %485 : vector<8x128xf32>
    %487 = math.exp %486 : vector<8x128xf32>
    %cst_122 = arith.constant 1.000000e+00 : f32
    %488 = vector.broadcast %cst_122 : f32 to vector<8x128xf32>
    %489 = arith.addf %488, %487 : vector<8x128xf32>
    %490 = arith.divf %488, %489 : vector<8x128xf32>
    %491 = vector.extract_strided_slice %484 {offsets = [0, 128], sizes = [8, 128], strides = [1, 1]} : vector<8x512xf32> to vector<8x128xf32>
    %492 = arith.negf %491 : vector<8x128xf32>
    %493 = math.exp %492 : vector<8x128xf32>
    %cst_123 = arith.constant 1.000000e+00 : f32
    %494 = vector.broadcast %cst_123 : f32 to vector<8x128xf32>
    %495 = arith.addf %494, %493 : vector<8x128xf32>
    %496 = arith.divf %494, %495 : vector<8x128xf32>
    %497 = vector.extract_strided_slice %484 {offsets = [0, 256], sizes = [8, 128], strides = [1, 1]} : vector<8x512xf32> to vector<8x128xf32>
    %498 = math.tanh %497 : vector<8x128xf32>
    %499 = vector.extract_strided_slice %484 {offsets = [0, 384], sizes = [8, 128], strides = [1, 1]} : vector<8x512xf32> to vector<8x128xf32>
    %500 = arith.negf %499 : vector<8x128xf32>
    %501 = math.exp %500 : vector<8x128xf32>
    %cst_124 = arith.constant 1.000000e+00 : f32
    %502 = vector.broadcast %cst_124 : f32 to vector<8x128xf32>
    %503 = arith.addf %502, %501 : vector<8x128xf32>
    %504 = arith.divf %502, %503 : vector<8x128xf32>
    %505 = arith.mulf %496, %473 : vector<8x128xf32>
    %506 = arith.mulf %490, %498 : vector<8x128xf32>
    %507 = arith.addf %505, %506 : vector<8x128xf32>
    %508 = math.tanh %507 : vector<8x128xf32>
    %509 = arith.mulf %504, %508 : vector<8x128xf32>
    %510 = arith.index_cast %479 : i32 to index
    %c0_125 = arith.constant 0 : index
    %511 = vector.load %arg13[%510, %c0_125] : memref<64x128xf32, #tpu.memory_space<vmem>>, vector<8x128xf32>
    tpu.vector_store %arg13[%510, %c0_125], %509 {strides = array<i32>} : memref<64x128xf32, #tpu.memory_space<vmem>>, vector<8x128xf32>,
    %c7_i32_126 = arith.constant 7 : i32
    %c8_i32_127 = arith.constant 8 : i32
    %512 = arith.muli %c7_i32_126, %c8_i32_127 : i32
    %513 = tpu.assume_multiple %512, 8 : i32
    %514 = arith.index_cast %513 : i32 to index
    %c0_128 = arith.constant 0 : index
    %515 = vector.load %arg12[%514, %c0_128] : memref<64x512xf32, #tpu.memory_space<vmem>>, vector<8x512xf32>
    %516 = arith.truncf %509 : vector<8x128xf32> to vector<8x128xbf16>
    %cst_129 = arith.constant dense<0.000000e+00> : vector<8x512xf32>
    %517 = tpu.matmul %516, %1, %cst_129 {dimension_numbers = #tpu.dot_dimension_numbers<[1], [0], [0], [1], [0, 0, 1, 1], [], []>} : vector<8x128xbf16>, vector<128x512xbf16>, vector<8x512xf32> -> vector<8x512xf32>
    %518 = arith.addf %515, %517 : vector<8x512xf32>
    %519 = vector.extract_strided_slice %518 {offsets = [0, 0], sizes = [8, 128], strides = [1, 1]} : vector<8x512xf32> to vector<8x128xf32>
    %520 = arith.negf %519 : vector<8x128xf32>
    %521 = math.exp %520 : vector<8x128xf32>
    %cst_130 = arith.constant 1.000000e+00 : f32
    %522 = vector.broadcast %cst_130 : f32 to vector<8x128xf32>
    %523 = arith.addf %522, %521 : vector<8x128xf32>
    %524 = arith.divf %522, %523 : vector<8x128xf32>
    %525 = vector.extract_strided_slice %518 {offsets = [0, 128], sizes = [8, 128], strides = [1, 1]} : vector<8x512xf32> to vector<8x128xf32>
    %526 = arith.negf %525 : vector<8x128xf32>
    %527 = math.exp %526 : vector<8x128xf32>
    %cst_131 = arith.constant 1.000000e+00 : f32
    %528 = vector.broadcast %cst_131 : f32 to vector<8x128xf32>
    %529 = arith.addf %528, %527 : vector<8x128xf32>
    %530 = arith.divf %528, %529 : vector<8x128xf32>
    %531 = vector.extract_strided_slice %518 {offsets = [0, 256], sizes = [8, 128], strides = [1, 1]} : vector<8x512xf32> to vector<8x128xf32>
    %532 = math.tanh %531 : vector<8x128xf32>
    %533 = vector.extract_strided_slice %518 {offsets = [0, 384], sizes = [8, 128], strides = [1, 1]} : vector<8x512xf32> to vector<8x128xf32>
    %534 = arith.negf %533 : vector<8x128xf32>
    %535 = math.exp %534 : vector<8x128xf32>
    %cst_132 = arith.constant 1.000000e+00 : f32
    %536 = vector.broadcast %cst_132 : f32 to vector<8x128xf32>
    %537 = arith.addf %536, %535 : vector<8x128xf32>
    %538 = arith.divf %536, %537 : vector<8x128xf32>
    %539 = arith.mulf %530, %507 : vector<8x128xf32>
    %540 = arith.mulf %524, %532 : vector<8x128xf32>
    %541 = arith.addf %539, %540 : vector<8x128xf32>
    %542 = math.tanh %541 : vector<8x128xf32>
    %543 = arith.mulf %538, %542 : vector<8x128xf32>
    %544 = arith.index_cast %513 : i32 to index
    %c0_133 = arith.constant 0 : index
    %545 = vector.load %arg13[%544, %c0_133] : memref<64x128xf32, #tpu.memory_space<vmem>>, vector<8x128xf32>
    tpu.vector_store %arg13[%544, %c0_133], %543 {strides = array<i32>} : memref<64x128xf32, #tpu.memory_space<vmem>>, vector<8x128xf32>,
    %c8_i32_134 = arith.constant 8 : i32
    %c0_135 = arith.constant 0 : index
    %c0_136 = arith.constant 0 : index
    %546 = vector.load %arg13[%c0_135, %c0_136] : memref<64x128xf32, #tpu.memory_space<vmem>>, vector<64x128xf32>
    %c0_137 = arith.constant 0 : index
    %c0_138 = arith.constant 0 : index
    %547 = vector.load %arg8[%c0_137, %c0_138] : memref<128x1xf32, #tpu.memory_space<vmem>>, vector<128x1xf32>
    %cst_139 = arith.constant dense<0.000000e+00> : vector<64x1xf32>
    %548 = tpu.matmul %546, %547, %cst_139 {dimension_numbers = #tpu.dot_dimension_numbers<[1], [0], [0], [1], [0, 0, 1, 1], [], []>} : vector<64x128xf32>, vector<128x1xf32>, vector<64x1xf32> -> vector<64x1xf32>
    %c0_140 = arith.constant 0 : index
    %c0_141 = arith.constant 0 : index
    %549 = vector.load %arg9[%c0_140, %c0_141] : memref<1x1xf32, #tpu.memory_space<vmem>>, vector<1x1xf32>
    %550 = vector.broadcast %549 : vector<1x1xf32> to vector<64x1xf32>
    %551 = arith.addf %548, %550 : vector<64x1xf32>
    %c0_142 = arith.constant 0 : index
    %c0_143 = arith.constant 0 : index
    %552 = vector.load %arg10[%c0_142, %c0_143] : memref<64x1xf32, #tpu.memory_space<vmem>>, vector<64x1xf32>
    tpu.vector_store %arg10[%c0_142, %c0_143], %551 {strides = array<i32>} : memref<64x1xf32, #tpu.memory_space<vmem>>, vector<64x1xf32>,
    return
  }
}

</mosaic_0001>

<llo_original>
// kernel: seq2seq_forward.1
$region0: #{seq2seq_forward.1}
  #allocation0 [shape = 'u32[]', space=smem, size = 0x4, offset = 0x4, fixed_abs, tag = 'smem constant byte address 0x4 - core index']
  #allocation1 [shape = 'u32[72,128]{1,0:T(1,128)}', space=vmem, size = 0x9000, scoped, tag = 'internal scratch']
  #allocation2 [shape = 'f32[64,512]{1,0:T(8,128)}', space=vmem, size = 0x20000, scoped, tag = 'scratch operand']
  #allocation3 [shape = 'f32[64,512]{1,0:T(8,128)}', space=vmem, size = 0x20000, scoped, tag = 'scratch operand']
  #allocation4 [shape = 'f32[64,128]{1,0:T(8,128)}', space=vmem, size = 0x8000, scoped, tag = 'scratch operand']
  #allocation5 [shape = 'f32[1,1]{1,0:T(1,128)S(1)}', space=vmem, size = 0x200, scoped, tag = 'scoped memory for seq2seq_forward.1']
  %s0 = inlined_call_operand.vmem [shape: f32[64,1], index: 0, kind: input, shape index: {}]
  %s1 = inlined_call_operand.vmem [shape: f32[64,1], index: 1, kind: input, shape index: {}]
  %s2 = inlined_call_operand.vmem [shape: f32[1,512], index: 2, kind: input, shape index: {}]
  %s3 = inlined_call_operand.hbm [shape: bf16[128,512], index: 3, kind: input, shape index: {}]
  %s4 = inlined_call_operand.vmem [shape: f32[1,512], index: 4, kind: input, shape index: {}]
  %s5 = inlined_call_operand.vmem [shape: f32[1,512], index: 5, kind: input, shape index: {}]
  %s6 = inlined_call_operand.hbm [shape: bf16[128,512], index: 6, kind: input, shape index: {}]
  %s7 = inlined_call_operand.vmem [shape: f32[1,512], index: 7, kind: input, shape index: {}]
  %s8 = inlined_call_operand.vmem [shape: f32[128,1], index: 8, kind: input, shape index: {}]
  %s9 = inlined_call_operand.<no memory space> [shape: f32[1,1], index: 9, kind: input, shape index: {}]
  %s10 = inlined_call_operand.vmem [shape: f32[64,1], index: 10, kind: output, shape index: {}]
  %s11 = sld [smem:[#allocation0]]
  $region58: #{seq2seq_forward.1} parent=0
    _
  %s13 = ssub.s32 1, %s11
  %s14 = scalar_select 0, %s13, %s11
  %v15 = vstv %s9
  %16 = vst [vmem:[#allocation5] sm:$0x1] %v15
  $region1: #{seq2seq_forward.1} parent=0
    #allocation6 [shape = 'u8[131072]{0}', space=vmem, size = 0x20000, scoped, tag = 'input window, operand 3, single buffered']
    #allocation7 [shape = 's32[1]{0}', space=sflag, size = 0x4, scoped, tag = 'scoped memory for seq2seq_forward.1']
    #allocation8 [shape = 'u8[131072]{0}', space=vmem, size = 0x20000, scoped, tag = 'input window, operand 6, single buffered']
    #allocation9 [shape = 's32[1]{0}', space=sflag, size = 0x4, scoped, tag = 'scoped memory for seq2seq_forward.1']
    %17 = vsyncpa [#allocation7], 0
    %18 = vsyncpa [#allocation9], 0
    // Predicated region
    $region2: #{seq2seq_forward.1} parent=1 // pred_check
      _
    $region3: #{seq2seq_forward.1} parent=1 // pred_check_branch
      %20 = sbr.rel (0) target = $region5
    $region4: #{seq2seq_forward.1} parent=1 // pred_region
      _
    $region5: #{seq2seq_forward.1} parent=1 // pred_fallthru
      _
    // Predicated region
    $region6: #{seq2seq_forward.1} parent=1 // pred_check
      _
    $region7: #{seq2seq_forward.1} parent=1 // pred_check_branch
      %22 = sbr.rel (0) target = $region9
    $region8: #{seq2seq_forward.1} parent=1 // pred_region
      _
    $region9: #{seq2seq_forward.1} parent=1 // pred_fallthru
      _
    // Predicated region
    $region10: #{seq2seq_forward.1} parent=1 // pred_check
      _
    $region11: #{seq2seq_forward.1} parent=1 // pred_check_branch
      %24 = sbr.rel (0) target = $region13
    $region12: #{seq2seq_forward.1} parent=1 // pred_region
      _
    $region13: #{seq2seq_forward.1} parent=1 // pred_fallthru
      _
    // Predicated region
    $region14: #{seq2seq_forward.1} parent=1 // pred_check
      _
    $region15: #{seq2seq_forward.1} parent=1 // pred_check_branch
      %26 = sbr.rel (0) target = $region17
    $region16: #{seq2seq_forward.1} parent=1 // pred_region
      %28 = vsyncadd [#allocation7], 0
      %s29 = sshll.u32 %s3, 4
      %s30 = int_to_ptr.hbm [resolvable:$true] %s29
      %s31 = sshll.u32 [#allocation6], 4
      %s32 = int_to_ptr.vmem [resolvable:$true] %s31
      %37 = dma.hbm_to_vmem [thread:$0]  %s30, 4096, %s32, [#allocation7], 256, 256, 16
    $region17: #{seq2seq_forward.1} parent=1 // pred_fallthru
      _
    // Predicated region
    $region18: #{seq2seq_forward.1} parent=1 // pred_check
      _
    $region19: #{seq2seq_forward.1} parent=1 // pred_check_branch
      %39 = sbr.rel (0) target = $region21
    $region20: #{seq2seq_forward.1} parent=1 // pred_region
      _
    $region21: #{seq2seq_forward.1} parent=1 // pred_fallthru
      _
    // Predicated region
    $region22: #{seq2seq_forward.1} parent=1 // pred_check
      _
    $region23: #{seq2seq_forward.1} parent=1 // pred_check_branch
      %41 = sbr.rel (0) target = $region25
    $region24: #{seq2seq_forward.1} parent=1 // pred_region
      _
    $region25: #{seq2seq_forward.1} parent=1 // pred_fallthru
      _
    // Predicated region
    $region26: #{seq2seq_forward.1} parent=1 // pred_check
      _
    $region27: #{seq2seq_forward.1} parent=1 // pred_check_branch
      %43 = sbr.rel (0) target = $region29
    $region28: #{seq2seq_forward.1} parent=1 // pred_region
      %45 = vsyncadd [#allocation9], 0
      %s46 = sshll.u32 %s6, 4
      %s47 = int_to_ptr.hbm [resolvable:$true] %s46
      %s48 = sshll.u32 [#allocation8], 4
      %s49 = int_to_ptr.vmem [resolvable:$true] %s48
      %54 = dma.hbm_to_vmem [thread:$0]  %s47, 4096, %s49, [#allocation9], 256, 256, 16
    $region29: #{seq2seq_forward.1} parent=1 // pred_fallthru
      _
    // Predicated region
    $region30: #{seq2seq_forward.1} parent=1 // pred_check
      _
    $region31: #{seq2seq_forward.1} parent=1 // pred_check_branch
      %56 = sbr.rel (0) target = $region33
    $region32: #{seq2seq_forward.1} parent=1 // pred_region
      _
    $region33: #{seq2seq_forward.1} parent=1 // pred_fallthru
      _
    // Predicated region
    $region34: #{seq2seq_forward.1} parent=1 // pred_check
      _
    $region35: #{seq2seq_forward.1} parent=1 // pred_check_branch
      %58 = sbr.rel (0) target = $region37
    $region36: #{seq2seq_forward.1} parent=1 // pred_region
      _
    $region37: #{seq2seq_forward.1} parent=1 // pred_fallthru
      _
    // Predicated region
    $region38: #{seq2seq_forward.1} parent=1 // pred_check
      _
    $region39: #{seq2seq_forward.1} parent=1 // pred_check_branch
      %60 = sbr.rel (0) target = $region41
    $region40: #{seq2seq_forward.1} parent=1 // pred_region
      _
    $region41: #{seq2seq_forward.1} parent=1 // pred_fallthru
      _
    // Predicated region
    $region42: #{seq2seq_forward.1} parent=1 // pred_check
      _
    $region43: #{seq2seq_forward.1} parent=1 // pred_check_branch
      %62 = sbr.rel (0) target = $region45
    $region44: #{seq2seq_forward.1} parent=1 // pred_region
      %64 = dma.done [#allocation7], 4096
    $region45: #{seq2seq_forward.1} parent=1 // pred_fallthru
      _
    // Predicated region
    $region46: #{seq2seq_forward.1} parent=1 // pred_check
      _
    $region47: #{seq2seq_forward.1} parent=1 // pred_check_branch
      %66 = sbr.rel (0) target = $region49
    $region48: #{seq2seq_forward.1} parent=1 // pred_region
      %68 = dma.done [#allocation9], 4096
    $region49: #{seq2seq_forward.1} parent=1 // pred_fallthru
      _
    %v70 = vld [vmem:[#allocation6] sm:$0xff]
    %v71 = vld [vmem:[#allocation6 + $0x8] sm:$0xff]
    %v72 = vld [vmem:[#allocation6 + $0x10] sm:$0xff]
    %v73 = vld [vmem:[#allocation6 + $0x18] sm:$0xff]
    %v74 = vld [vmem:[#allocation6 + $0x20] sm:$0xff]
    %v75 = vld [vmem:[#allocation6 + $0x28] sm:$0xff]
    %v76 = vld [vmem:[#allocation6 + $0x30] sm:$0xff]
    %v77 = vld [vmem:[#allocation6 + $0x38] sm:$0xff]
    %v78 = vld [vmem:[#allocation6 + $0x40] sm:$0xff]
    %v79 = vld [vmem:[#allocation6 + $0x48] sm:$0xff]
    %v80 = vld [vmem:[#allocation6 + $0x50] sm:$0xff]
    %v81 = vld [vmem:[#allocation6 + $0x58] sm:$0xff]
    %v82 = vld [vmem:[#allocation6 + $0x60] sm:$0xff]
    %v83 = vld [vmem:[#allocation6 + $0x68] sm:$0xff]
    %v84 = vld [vmem:[#allocation6 + $0x70] sm:$0xff]
    %v85 = vld [vmem:[#allocation6 + $0x78] sm:$0xff]
    %v86 = vld [vmem:[#allocation6 + $0x80] sm:$0xff]
    %v87 = vld [vmem:[#allocation6 + $0x88] sm:$0xff]
    %v88 = vld [vmem:[#allocation6 + $0x90] sm:$0xff]
    %v89 = vld [vmem:[#allocation6 + $0x98] sm:$0xff]
    %v90 = vld [vmem:[#allocation6 + $0xa0] sm:$0xff]
    %v91 = vld [vmem:[#allocation6 + $0xa8] sm:$0xff]
    %v92 = vld [vmem:[#allocation6 + $0xb0] sm:$0xff]
    %v93 = vld [vmem:[#allocation6 + $0xb8] sm:$0xff]
    %v94 = vld [vmem:[#allocation6 + $0xc0] sm:$0xff]
    %v95 = vld [vmem:[#allocation6 + $0xc8] sm:$0xff]
    %v96 = vld [vmem:[#allocation6 + $0xd0] sm:$0xff]
    %v97 = vld [vmem:[#allocation6 + $0xd8] sm:$0xff]
    %v98 = vld [vmem:[#allocation6 + $0xe0] sm:$0xff]
    %v99 = vld [vmem:[#allocation6 + $0xe8] sm:$0xff]
    %v100 = vld [vmem:[#allocation6 + $0xf0] sm:$0xff]
    %v101 = vld [vmem:[#allocation6 + $0xf8] sm:$0xff]
    %v102 = vld [vmem:[#allocation8] sm:$0xff]
    %v103 = vld [vmem:[#allocation8 + $0x8] sm:$0xff]
    %v104 = vld [vmem:[#allocation8 + $0x10] sm:$0xff]
    %v105 = vld [vmem:[#allocation8 + $0x18] sm:$0xff]
    %v106 = vld [vmem:[#allocation8 + $0x20] sm:$0xff]
    %v107 = vld [vmem:[#allocation8 + $0x28] sm:$0xff]
    %v108 = vld [vmem:[#allocation8 + $0x30] sm:$0xff]
    %v109 = vld [vmem:[#allocation8 + $0x38] sm:$0xff]
    %v110 = vld [vmem:[#allocation8 + $0x40] sm:$0xff]
    %v111 = vld [vmem:[#allocation8 + $0x48] sm:$0xff]
    %v112 = vld [vmem:[#allocation8 + $0x50] sm:$0xff]
    %v113 = vld [vmem:[#allocation8 + $0x58] sm:$0xff]
    %v114 = vld [vmem:[#allocation8 + $0x60] sm:$0xff]
    %v115 = vld [vmem:[#allocation8 + $0x68] sm:$0xff]
    %v116 = vld [vmem:[#allocation8 + $0x70] sm:$0xff]
    %v117 = vld [vmem:[#allocation8 + $0x78] sm:$0xff]
    %v118 = vld [vmem:[#allocation8 + $0x80] sm:$0xff]
    %v119 = vld [vmem:[#allocation8 + $0x88] sm:$0xff]
    %v120 = vld [vmem:[#allocation8 + $0x90] sm:$0xff]
    %v121 = vld [vmem:[#allocation8 + $0x98] sm:$0xff]
    %v122 = vld [vmem:[#allocation8 + $0xa0] sm:$0xff]
    %v123 = vld [vmem:[#allocation8 + $0xa8] sm:$0xff]
    %v124 = vld [vmem:[#allocation8 + $0xb0] sm:$0xff]
    %v125 = vld [vmem:[#allocation8 + $0xb8] sm:$0xff]
    %v126 = vld [vmem:[#allocation8 + $0xc0] sm:$0xff]
    %v127 = vld [vmem:[#allocation8 + $0xc8] sm:$0xff]
    %v128 = vld [vmem:[#allocation8 + $0xd0] sm:$0xff]
    %v129 = vld [vmem:[#allocation8 + $0xd8] sm:$0xff]
    %v130 = vld [vmem:[#allocation8 + $0xe0] sm:$0xff]
    %v131 = vld [vmem:[#allocation8 + $0xe8] sm:$0xff]
    %v132 = vld [vmem:[#allocation8 + $0xf0] sm:$0xff]
    %v133 = vld [vmem:[#allocation8 + $0xf8] sm:$0xff]
    %v134 = vld [vmem:[%s0] sm:$0xff]
    %v135 = vld [vmem:[%s0 + $0x8] sm:$0xff]
    %v136 = vld [vmem:[%s0 + $0x10] sm:$0xff]
    %v137 = vld [vmem:[%s0 + $0x18] sm:$0xff]
    %v138 = vld [vmem:[%s0 + $0x20] sm:$0xff]
    %v139 = vld [vmem:[%s0 + $0x28] sm:$0xff]
    %v140 = vld [vmem:[%s0 + $0x30] sm:$0xff]
    %v141 = vld [vmem:[%s0 + $0x38] sm:$0xff]
    %v142 = vld [vmem:[%s2] sm:$0xf]
    %v143 = vld [vmem:[%s4] sm:$0xf]
    %v145 = vperm.slane %v143, 0
    %v146 = vperm.slane %v143, 1
    %v147 = vperm.slane %v143, 2
    %v148 = vperm.slane %v143, 3
    %v154 = vperm.slane %v142, 0
    %v155 = vperm.slane %v142, 1
    %v156 = vperm.slane %v142, 2
    %v157 = vperm.slane %v142, 3
    %vm158 = vcmask 7168
    %v160 = vsel %vm158, %v134, 0
    %v163 = vsel %vm158, %v135, 0
    %v166 = vsel %vm158, %v136, 0
    %v169 = vsel %vm158, %v137, 0
    %v172 = vsel %vm158, %v138, 0
    %v175 = vsel %vm158, %v139, 0
    %v178 = vsel %vm158, %v140, 0
    %v181 = vsel %vm158, %v141, 0
    %vm183 = vcmask 1040384
    %v184 = vsel %vm183, %v154, 0
    %v186 = vsel %vm183, %v155, 0
    %v188 = vsel %vm183, %v156, 0
    %v190 = vsel %vm183, %v157, 0
    %192 = vmatpush.msra.mxu0 0.0
    %193 = vmatpush.msra.mxu0 0.0
    %194 = vmatpush.msra.mxu0 0.0
    %195 = vmatpush.msra.mxu0 0.0
    %196 = vmatpush.msra.mxu0 0.0
    %197 = vmatpush.msra.mxu0 0.0
    %198 = vmatpush.msra.mxu0 0.0
    %199 = vmatpush.msra.mxu0 0.0
    %200 = vmatpush.msra.mxu0 0.0
    %201 = vmatpush.msra.mxu0 0.0
    %202 = vmatpush.msra.mxu0 0.0
    %203 = vmatpush.msra.mxu0 0.0
    %204 = vmatpush.msra.mxu0 0.0
    %205 = vmatpush.msra.mxu0 0.0
    %206 = vmatpush.msra.mxu0 0.0
    %207 = vmatpush.msra.mxu0 %v184
    %208 = vmatmul.f32.gmra.mxu0 %v160
    %v209 = vpop.f32.mrf.mxu0
    %v210 = vadd.f32 %v145, %v209
    %211 = vmatmul.f32.gmra.mxu0 %v163
    %v212 = vpop.f32.mrf.mxu0
    %v213 = vadd.f32 %v145, %v212
    %214 = vmatmul.f32.gmra.mxu0 %v166
    %v215 = vpop.f32.mrf.mxu0
    %v216 = vadd.f32 %v145, %v215
    %217 = vmatmul.f32.gmra.mxu0 %v169
    %v218 = vpop.f32.mrf.mxu0
    %v219 = vadd.f32 %v145, %v218
    %220 = vmatmul.f32.gmra.mxu0 %v172
    %v221 = vpop.f32.mrf.mxu0
    %v222 = vadd.f32 %v145, %v221
    %223 = vmatmul.f32.gmra.mxu0 %v175
    %v224 = vpop.f32.mrf.mxu0
    %v225 = vadd.f32 %v145, %v224
    %226 = vmatmul.f32.gmra.mxu0 %v178
    %v227 = vpop.f32.mrf.mxu0
    %v228 = vadd.f32 %v145, %v227
    %229 = vmatmul.f32.gmra.mxu0 %v181
    %v230 = vpop.f32.mrf.mxu0
    %v231 = vadd.f32 %v145, %v230
    %232 = vdwg.mxu0
    %233 = vmatpush.msra.mxu0 0.0
    %234 = vmatpush.msra.mxu0 0.0
    %235 = vmatpush.msra.mxu0 0.0
    %236 = vmatpush.msra.mxu0 0.0
    %237 = vmatpush.msra.mxu0 0.0
    %238 = vmatpush.msra.mxu0 0.0
    %239 = vmatpush.msra.mxu0 0.0
    %240 = vmatpush.msra.mxu0 0.0
    %241 = vmatpush.msra.mxu0 0.0
    %242 = vmatpush.msra.mxu0 0.0
    %243 = vmatpush.msra.mxu0 0.0
    %244 = vmatpush.msra.mxu0 0.0
    %245 = vmatpush.msra.mxu0 0.0
    %246 = vmatpush.msra.mxu0 0.0
    %247 = vmatpush.msra.mxu0 0.0
    %248 = vmatpush.msra.mxu0 %v186
    %249 = vmatmul.f32.gmra.mxu0 %v160
    %v250 = vpop.f32.mrf.mxu0
    %v251 = vadd.f32 %v146, %v250
    %252 = vmatmul.f32.gmra.mxu0 %v163
    %v253 = vpop.f32.mrf.mxu0
    %v254 = vadd.f32 %v146, %v253
    %255 = vmatmul.f32.gmra.mxu0 %v166
    %v256 = vpop.f32.mrf.mxu0
    %v257 = vadd.f32 %v146, %v256
    %258 = vmatmul.f32.gmra.mxu0 %v169
    %v259 = vpop.f32.mrf.mxu0
    %v260 = vadd.f32 %v146, %v259
    %261 = vmatmul.f32.gmra.mxu0 %v172
    %v262 = vpop.f32.mrf.mxu0
    %v263 = vadd.f32 %v146, %v262
    %264 = vmatmul.f32.gmra.mxu0 %v175
    %v265 = vpop.f32.mrf.mxu0
    %v266 = vadd.f32 %v146, %v265
    %267 = vmatmul.f32.gmra.mxu0 %v178
    %v268 = vpop.f32.mrf.mxu0
    %v269 = vadd.f32 %v146, %v268
    %270 = vmatmul.f32.gmra.mxu0 %v181
    %v271 = vpop.f32.mrf.mxu0
    %v272 = vadd.f32 %v146, %v271
    %273 = vdwg.mxu0
    %274 = vmatpush.msra.mxu0 0.0
    %275 = vmatpush.msra.mxu0 0.0
    %276 = vmatpush.msra.mxu0 0.0
    %277 = vmatpush.msra.mxu0 0.0
    %278 = vmatpush.msra.mxu0 0.0
    %279 = vmatpush.msra.mxu0 0.0
    %280 = vmatpush.msra.mxu0 0.0
    %281 = vmatpush.msra.mxu0 0.0
    %282 = vmatpush.msra.mxu0 0.0
    %283 = vmatpush.msra.mxu0 0.0
    %284 = vmatpush.msra.mxu0 0.0
    %285 = vmatpush.msra.mxu0 0.0
    %286 = vmatpush.msra.mxu0 0.0
    %287 = vmatpush.msra.mxu0 0.0
    %288 = vmatpush.msra.mxu0 0.0
    %289 = vmatpush.msra.mxu0 %v188
    %290 = vmatmul.f32.gmra.mxu0 %v160
    %v291 = vpop.f32.mrf.mxu0
    %v292 = vadd.f32 %v147, %v291
    %293 = vmatmul.f32.gmra.mxu0 %v163
    %v294 = vpop.f32.mrf.mxu0
    %v295 = vadd.f32 %v147, %v294
    %296 = vmatmul.f32.gmra.mxu0 %v166
    %v297 = vpop.f32.mrf.mxu0
    %v298 = vadd.f32 %v147, %v297
    %299 = vmatmul.f32.gmra.mxu0 %v169
    %v300 = vpop.f32.mrf.mxu0
    %v301 = vadd.f32 %v147, %v300
    %302 = vmatmul.f32.gmra.mxu0 %v172
    %v303 = vpop.f32.mrf.mxu0
    %v304 = vadd.f32 %v147, %v303
    %305 = vmatmul.f32.gmra.mxu0 %v175
    %v306 = vpop.f32.mrf.mxu0
    %v307 = vadd.f32 %v147, %v306
    %308 = vmatmul.f32.gmra.mxu0 %v178
    %v309 = vpop.f32.mrf.mxu0
    %v310 = vadd.f32 %v147, %v309
    %311 = vmatmul.f32.gmra.mxu0 %v181
    %v312 = vpop.f32.mrf.mxu0
    %v313 = vadd.f32 %v147, %v312
    %314 = vdwg.mxu0
    %315 = vmatpush.msra.mxu0 0.0
    %316 = vmatpush.msra.mxu0 0.0
    %317 = vmatpush.msra.mxu0 0.0
    %318 = vmatpush.msra.mxu0 0.0
    %319 = vmatpush.msra.mxu0 0.0
    %320 = vmatpush.msra.mxu0 0.0
    %321 = vmatpush.msra.mxu0 0.0
    %322 = vmatpush.msra.mxu0 0.0
    %323 = vmatpush.msra.mxu0 0.0
    %324 = vmatpush.msra.mxu0 0.0
    %325 = vmatpush.msra.mxu0 0.0
    %326 = vmatpush.msra.mxu0 0.0
    %327 = vmatpush.msra.mxu0 0.0
    %328 = vmatpush.msra.mxu0 0.0
    %329 = vmatpush.msra.mxu0 0.0
    %330 = vmatpush.msra.mxu0 %v190
    %331 = vmatmul.f32.gmra.mxu0 %v160
    %v332 = vpop.f32.mrf.mxu0
    %v333 = vadd.f32 %v148, %v332
    %334 = vmatmul.f32.gmra.mxu0 %v163
    %v335 = vpop.f32.mrf.mxu0
    %v336 = vadd.f32 %v148, %v335
    %337 = vmatmul.f32.gmra.mxu0 %v166
    %v338 = vpop.f32.mrf.mxu0
    %v339 = vadd.f32 %v148, %v338
    %340 = vmatmul.f32.gmra.mxu0 %v169
    %v341 = vpop.f32.mrf.mxu0
    %v342 = vadd.f32 %v148, %v341
    %343 = vmatmul.f32.gmra.mxu0 %v172
    %v344 = vpop.f32.mrf.mxu0
    %v345 = vadd.f32 %v148, %v344
    %346 = vmatmul.f32.gmra.mxu0 %v175
    %v347 = vpop.f32.mrf.mxu0
    %v348 = vadd.f32 %v148, %v347
    %349 = vmatmul.f32.gmra.mxu0 %v178
    %v350 = vpop.f32.mrf.mxu0
    %v351 = vadd.f32 %v148, %v350
    %352 = vmatmul.f32.gmra.mxu0 %v181
    %v353 = vpop.f32.mrf.mxu0
    %v354 = vadd.f32 %v148, %v353
    %355 = vdwg.mxu0
    %356 = vst [vmem:[#allocation2] sm:$0xff] %v210
    %357 = vst [vmem:[#allocation2 + $0x8] sm:$0xff] %v251
    %358 = vst [vmem:[#allocation2 + $0x10] sm:$0xff] %v292
    %359 = vst [vmem:[#allocation2 + $0x18] sm:$0xff] %v333
    %360 = vst [vmem:[#allocation2 + $0x20] sm:$0xff] %v213
    %361 = vst [vmem:[#allocation2 + $0x28] sm:$0xff] %v254
    %362 = vst [vmem:[#allocation2 + $0x30] sm:$0xff] %v295
    %363 = vst [vmem:[#allocation2 + $0x38] sm:$0xff] %v336
    %364 = vst [vmem:[#allocation2 + $0x40] sm:$0xff] %v216
    %365 = vst [vmem:[#allocation2 + $0x48] sm:$0xff] %v257
    %366 = vst [vmem:[#allocation2 + $0x50] sm:$0xff] %v298
    %367 = vst [vmem:[#allocation2 + $0x58] sm:$0xff] %v339
    %368 = vst [vmem:[#allocation2 + $0x60] sm:$0xff] %v219
    %369 = vst [vmem:[#allocation2 + $0x68] sm:$0xff] %v260
    %370 = vst [vmem:[#allocation2 + $0x70] sm:$0xff] %v301
    %371 = vst [vmem:[#allocation2 + $0x78] sm:$0xff] %v342
    %372 = vst [vmem:[#allocation2 + $0x80] sm:$0xff] %v222
    %373 = vst [vmem:[#allocation2 + $0x88] sm:$0xff] %v263
    %374 = vst [vmem:[#allocation2 + $0x90] sm:$0xff] %v304
    %375 = vst [vmem:[#allocation2 + $0x98] sm:$0xff] %v345
    %376 = vst [vmem:[#allocation2 + $0xa0] sm:$0xff] %v225
    %377 = vst [vmem:[#allocation2 + $0xa8] sm:$0xff] %v266
    %378 = vst [vmem:[#allocation2 + $0xb0] sm:$0xff] %v307
    %379 = vst [vmem:[#allocation2 + $0xb8] sm:$0xff] %v348
    %380 = vst [vmem:[#allocation2 + $0xc0] sm:$0xff] %v228
    %381 = vst [vmem:[#allocation2 + $0xc8] sm:$0xff] %v269
    %382 = vst [vmem:[#allocation2 + $0xd0] sm:$0xff] %v310
    %383 = vst [vmem:[#allocation2 + $0xd8] sm:$0xff] %v351
    %384 = vst [vmem:[#allocation2 + $0xe0] sm:$0xff] %v231
    %385 = vst [vmem:[#allocation2 + $0xe8] sm:$0xff] %v272
    %386 = vst [vmem:[#allocation2 + $0xf0] sm:$0xff] %v313
    %387 = vst [vmem:[#allocation2 + $0xf8] sm:$0xff] %v354
    %v388 = vld [vmem:[%s1] sm:$0xff]
    %v389 = vld [vmem:[%s1 + $0x8] sm:$0xff]
    %v390 = vld [vmem:[%s1 + $0x10] sm:$0xff]
    %v391 = vld [vmem:[%s1 + $0x18] sm:$0xff]
    %v392 = vld [vmem:[%s1 + $0x20] sm:$0xff]
    %v393 = vld [vmem:[%s1 + $0x28] sm:$0xff]
    %v394 = vld [vmem:[%s1 + $0x30] sm:$0xff]
    %v395 = vld [vmem:[%s1 + $0x38] sm:$0xff]
    %v396 = vld [vmem:[%s5] sm:$0xf]
    %v397 = vld [vmem:[%s7] sm:$0xf]
    %v399 = vperm.slane %v397, 0
    %v400 = vperm.slane %v397, 1
    %v401 = vperm.slane %v397, 2
    %v402 = vperm.slane %v397, 3
    %v408 = vperm.slane %v396, 0
    %v409 = vperm.slane %v396, 1
    %v410 = vperm.slane %v396, 2
    %v411 = vperm.slane %v396, 3
    %v413 = vsel %vm158, %v388, 0
    %v416 = vsel %vm158, %v389, 0
    %v419 = vsel %vm158, %v390, 0
    %v422 = vsel %vm158, %v391, 0
    %v425 = vsel %vm158, %v392, 0
    %v428 = vsel %vm158, %v393, 0
    %v431 = vsel %vm158, %v394, 0
    %v434 = vsel %vm158, %v395, 0
    %v436 = vsel %vm183, %v408, 0
    %v438 = vsel %vm183, %v409, 0
    %v440 = vsel %vm183, %v410, 0
    %v442 = vsel %vm183, %v411, 0
    %444 = vmatpush.msra.mxu0 0.0
    %445 = vmatpush.msra.mxu0 0.0
    %446 = vmatpush.msra.mxu0 0.0
    %447 = vmatpush.msra.mxu0 0.0
    %448 = vmatpush.msra.mxu0 0.0
    %449 = vmatpush.msra.mxu0 0.0
    %450 = vmatpush.msra.mxu0 0.0
    %451 = vmatpush.msra.mxu0 0.0
    %452 = vmatpush.msra.mxu0 0.0
    %453 = vmatpush.msra.mxu0 0.0
    %454 = vmatpush.msra.mxu0 0.0
    %455 = vmatpush.msra.mxu0 0.0
    %456 = vmatpush.msra.mxu0 0.0
    %457 = vmatpush.msra.mxu0 0.0
    %458 = vmatpush.msra.mxu0 0.0
    %459 = vmatpush.msra.mxu0 %v436
    %460 = vmatmul.f32.gmra.mxu0 %v413
    %v461 = vpop.f32.mrf.mxu0
    %v462 = vadd.f32 %v399, %v461
    %463 = vmatmul.f32.gmra.mxu0 %v416
    %v464 = vpop.f32.mrf.mxu0
    %v465 = vadd.f32 %v399, %v464
    %466 = vmatmul.f32.gmra.mxu0 %v419
    %v467 = vpop.f32.mrf.mxu0
    %v468 = vadd.f32 %v399, %v467
    %469 = vmatmul.f32.gmra.mxu0 %v422
    %v470 = vpop.f32.mrf.mxu0
    %v471 = vadd.f32 %v399, %v470
    %472 = vmatmul.f32.gmra.mxu0 %v425
    %v473 = vpop.f32.mrf.mxu0
    %v474 = vadd.f32 %v399, %v473
    %475 = vmatmul.f32.gmra.mxu0 %v428
    %v476 = vpop.f32.mrf.mxu0
    %v477 = vadd.f32 %v399, %v476
    %478 = vmatmul.f32.gmra.mxu0 %v431
    %v479 = vpop.f32.mrf.mxu0
    %v480 = vadd.f32 %v399, %v479
    %481 = vmatmul.f32.gmra.mxu0 %v434
    %v482 = vpop.f32.mrf.mxu0
    %v483 = vadd.f32 %v399, %v482
    %484 = vdwg.mxu0
    %485 = vmatpush.msra.mxu0 0.0
    %486 = vmatpush.msra.mxu0 0.0
    %487 = vmatpush.msra.mxu0 0.0
    %488 = vmatpush.msra.mxu0 0.0
    %489 = vmatpush.msra.mxu0 0.0
    %490 = vmatpush.msra.mxu0 0.0
    %491 = vmatpush.msra.mxu0 0.0
    %492 = vmatpush.msra.mxu0 0.0
    %493 = vmatpush.msra.mxu0 0.0
    %494 = vmatpush.msra.mxu0 0.0
    %495 = vmatpush.msra.mxu0 0.0
    %496 = vmatpush.msra.mxu0 0.0
    %497 = vmatpush.msra.mxu0 0.0
    %498 = vmatpush.msra.mxu0 0.0
    %499 = vmatpush.msra.mxu0 0.0
    %500 = vmatpush.msra.mxu0 %v438
    %501 = vmatmul.f32.gmra.mxu0 %v413
    %v502 = vpop.f32.mrf.mxu0
    %v503 = vadd.f32 %v400, %v502
    %504 = vmatmul.f32.gmra.mxu0 %v416
    %v505 = vpop.f32.mrf.mxu0
    %v506 = vadd.f32 %v400, %v505
    %507 = vmatmul.f32.gmra.mxu0 %v419
    %v508 = vpop.f32.mrf.mxu0
    %v509 = vadd.f32 %v400, %v508
    %510 = vmatmul.f32.gmra.mxu0 %v422
    %v511 = vpop.f32.mrf.mxu0
    %v512 = vadd.f32 %v400, %v511
    %513 = vmatmul.f32.gmra.mxu0 %v425
    %v514 = vpop.f32.mrf.mxu0
    %v515 = vadd.f32 %v400, %v514
    %516 = vmatmul.f32.gmra.mxu0 %v428
    %v517 = vpop.f32.mrf.mxu0
    %v518 = vadd.f32 %v400, %v517
    %519 = vmatmul.f32.gmra.mxu0 %v431
    %v520 = vpop.f32.mrf.mxu0
    %v521 = vadd.f32 %v400, %v520
    %522 = vmatmul.f32.gmra.mxu0 %v434
    %v523 = vpop.f32.mrf.mxu0
    %v524 = vadd.f32 %v400, %v523
    %525 = vdwg.mxu0
    %526 = vmatpush.msra.mxu0 0.0
    %527 = vmatpush.msra.mxu0 0.0
    %528 = vmatpush.msra.mxu0 0.0
    %529 = vmatpush.msra.mxu0 0.0
    %530 = vmatpush.msra.mxu0 0.0
    %531 = vmatpush.msra.mxu0 0.0
    %532 = vmatpush.msra.mxu0 0.0
    %533 = vmatpush.msra.mxu0 0.0
    %534 = vmatpush.msra.mxu0 0.0
    %535 = vmatpush.msra.mxu0 0.0
    %536 = vmatpush.msra.mxu0 0.0
    %537 = vmatpush.msra.mxu0 0.0
    %538 = vmatpush.msra.mxu0 0.0
    %539 = vmatpush.msra.mxu0 0.0
    %540 = vmatpush.msra.mxu0 0.0
    %541 = vmatpush.msra.mxu0 %v440
    %542 = vmatmul.f32.gmra.mxu0 %v413
    %v543 = vpop.f32.mrf.mxu0
    %v544 = vadd.f32 %v401, %v543
    %545 = vmatmul.f32.gmra.mxu0 %v416
    %v546 = vpop.f32.mrf.mxu0
    %v547 = vadd.f32 %v401, %v546
    %548 = vmatmul.f32.gmra.mxu0 %v419
    %v549 = vpop.f32.mrf.mxu0
    %v550 = vadd.f32 %v401, %v549
    %551 = vmatmul.f32.gmra.mxu0 %v422
    %v552 = vpop.f32.mrf.mxu0
    %v553 = vadd.f32 %v401, %v552
    %554 = vmatmul.f32.gmra.mxu0 %v425
    %v555 = vpop.f32.mrf.mxu0
    %v556 = vadd.f32 %v401, %v555
    %557 = vmatmul.f32.gmra.mxu0 %v428
    %v558 = vpop.f32.mrf.mxu0
    %v559 = vadd.f32 %v401, %v558
    %560 = vmatmul.f32.gmra.mxu0 %v431
    %v561 = vpop.f32.mrf.mxu0
    %v562 = vadd.f32 %v401, %v561
    %563 = vmatmul.f32.gmra.mxu0 %v434
    %v564 = vpop.f32.mrf.mxu0
    %v565 = vadd.f32 %v401, %v564
    %566 = vdwg.mxu0
    %567 = vmatpush.msra.mxu0 0.0
    %568 = vmatpush.msra.mxu0 0.0
    %569 = vmatpush.msra.mxu0 0.0
    %570 = vmatpush.msra.mxu0 0.0
    %571 = vmatpush.msra.mxu0 0.0
    %572 = vmatpush.msra.mxu0 0.0
    %573 = vmatpush.msra.mxu0 0.0
    %574 = vmatpush.msra.mxu0 0.0
    %575 = vmatpush.msra.mxu0 0.0
    %576 = vmatpush.msra.mxu0 0.0
    %577 = vmatpush.msra.mxu0 0.0
    %578 = vmatpush.msra.mxu0 0.0
    %579 = vmatpush.msra.mxu0 0.0
    %580 = vmatpush.msra.mxu0 0.0
    %581 = vmatpush.msra.mxu0 0.0
    %582 = vmatpush.msra.mxu0 %v442
    %583 = vmatmul.f32.gmra.mxu0 %v413
    %v584 = vpop.f32.mrf.mxu0
    %v585 = vadd.f32 %v402, %v584
    %586 = vmatmul.f32.gmra.mxu0 %v416
    %v587 = vpop.f32.mrf.mxu0
    %v588 = vadd.f32 %v402, %v587
    %589 = vmatmul.f32.gmra.mxu0 %v419
    %v590 = vpop.f32.mrf.mxu0
    %v591 = vadd.f32 %v402, %v590
    %592 = vmatmul.f32.gmra.mxu0 %v422
    %v593 = vpop.f32.mrf.mxu0
    %v594 = vadd.f32 %v402, %v593
    %595 = vmatmul.f32.gmra.mxu0 %v425
    %v596 = vpop.f32.mrf.mxu0
    %v597 = vadd.f32 %v402, %v596
    %598 = vmatmul.f32.gmra.mxu0 %v428
    %v599 = vpop.f32.mrf.mxu0
    %v600 = vadd.f32 %v402, %v599
    %601 = vmatmul.f32.gmra.mxu0 %v431
    %v602 = vpop.f32.mrf.mxu0
    %v603 = vadd.f32 %v402, %v602
    %604 = vmatmul.f32.gmra.mxu0 %v434
    %v605 = vpop.f32.mrf.mxu0
    %v606 = vadd.f32 %v402, %v605
    %607 = vdwg.mxu0
    %608 = vst [vmem:[#allocation3] sm:$0xff] %v462
    %609 = vst [vmem:[#allocation3 + $0x8] sm:$0xff] %v503
    %610 = vst [vmem:[#allocation3 + $0x10] sm:$0xff] %v544
    %611 = vst [vmem:[#allocation3 + $0x18] sm:$0xff] %v585
    %612 = vst [vmem:[#allocation3 + $0x20] sm:$0xff] %v465
    %613 = vst [vmem:[#allocation3 + $0x28] sm:$0xff] %v506
    %614 = vst [vmem:[#allocation3 + $0x30] sm:$0xff] %v547
    %615 = vst [vmem:[#allocation3 + $0x38] sm:$0xff] %v588
    %616 = vst [vmem:[#allocation3 + $0x40] sm:$0xff] %v468
    %617 = vst [vmem:[#allocation3 + $0x48] sm:$0xff] %v509
    %618 = vst [vmem:[#allocation3 + $0x50] sm:$0xff] %v550
    %619 = vst [vmem:[#allocation3 + $0x58] sm:$0xff] %v591
    %620 = vst [vmem:[#allocation3 + $0x60] sm:$0xff] %v471
    %621 = vst [vmem:[#allocation3 + $0x68] sm:$0xff] %v512
    %622 = vst [vmem:[#allocation3 + $0x70] sm:$0xff] %v553
    %623 = vst [vmem:[#allocation3 + $0x78] sm:$0xff] %v594
    %624 = vst [vmem:[#allocation3 + $0x80] sm:$0xff] %v474
    %625 = vst [vmem:[#allocation3 + $0x88] sm:$0xff] %v515
    %626 = vst [vmem:[#allocation3 + $0x90] sm:$0xff] %v556
    %627 = vst [vmem:[#allocation3 + $0x98] sm:$0xff] %v597
    %628 = vst [vmem:[#allocation3 + $0xa0] sm:$0xff] %v477
    %629 = vst [vmem:[#allocation3 + $0xa8] sm:$0xff] %v518
    %630 = vst [vmem:[#allocation3 + $0xb0] sm:$0xff] %v559
    %631 = vst [vmem:[#allocation3 + $0xb8] sm:$0xff] %v600
    %632 = vst [vmem:[#allocation3 + $0xc0] sm:$0xff] %v480
    %633 = vst [vmem:[#allocation3 + $0xc8] sm:$0xff] %v521
    %634 = vst [vmem:[#allocation3 + $0xd0] sm:$0xff] %v562
    %635 = vst [vmem:[#allocation3 + $0xd8] sm:$0xff] %v603
    %636 = vst [vmem:[#allocation3 + $0xe0] sm:$0xff] %v483
    %637 = vst [vmem:[#allocation3 + $0xe8] sm:$0xff] %v524
    %638 = vst [vmem:[#allocation3 + $0xf0] sm:$0xff] %v565
    %639 = vst [vmem:[#allocation3 + $0xf8] sm:$0xff] %v606
    %s640 = smul.u32 0, 4
    %s641 = smul.addr %s640, 8
    %s642 = scalar_lea.vmem [#allocation2], %s641
    %v643 = vld [vmem:[%s642] sm:$0xff]
    %v644 = vld [vmem:[%s642 + $0x8] sm:$0xff]
    %v645 = vld [vmem:[%s642 + $0x10] sm:$0xff]
    %v646 = vld [vmem:[%s642 + $0x18] sm:$0xff]
    %v679 = vunpack.c.l.b16 %v70
    %v680 = vunpack.c.h.b16 %v70
    %v681 = vunpack.c.l.b16 %v71
    %v682 = vunpack.c.h.b16 %v71
    %v683 = vunpack.c.l.b16 %v72
    %v684 = vunpack.c.h.b16 %v72
    %v685 = vunpack.c.l.b16 %v73
    %v686 = vunpack.c.h.b16 %v73
    %v687 = vunpack.c.l.b16 %v74
    %v688 = vunpack.c.h.b16 %v74
    %v689 = vunpack.c.l.b16 %v75
    %v690 = vunpack.c.h.b16 %v75
    %v691 = vunpack.c.l.b16 %v76
    %v692 = vunpack.c.h.b16 %v76
    %v693 = vunpack.c.l.b16 %v77
    %v694 = vunpack.c.h.b16 %v77
    %v695 = vunpack.c.l.b16 %v78
    %v696 = vunpack.c.h.b16 %v78
    %v697 = vunpack.c.l.b16 %v79
    %v698 = vunpack.c.h.b16 %v79
    %v699 = vunpack.c.l.b16 %v80
    %v700 = vunpack.c.h.b16 %v80
    %v701 = vunpack.c.l.b16 %v81
    %v702 = vunpack.c.h.b16 %v81
    %v703 = vunpack.c.l.b16 %v82
    %v704 = vunpack.c.h.b16 %v82
    %v705 = vunpack.c.l.b16 %v83
    %v706 = vunpack.c.h.b16 %v83
    %v707 = vunpack.c.l.b16 %v84
    %v708 = vunpack.c.h.b16 %v84
    %v709 = vunpack.c.l.b16 %v85
    %v710 = vunpack.c.h.b16 %v85
    %v711 = vunpack.c.l.b16 %v86
    %v712 = vunpack.c.h.b16 %v86
    %v713 = vunpack.c.l.b16 %v87
    %v714 = vunpack.c.h.b16 %v87
    %v715 = vunpack.c.l.b16 %v88
    %v716 = vunpack.c.h.b16 %v88
    %v717 = vunpack.c.l.b16 %v89
    %v718 = vunpack.c.h.b16 %v89
    %v719 = vunpack.c.l.b16 %v90
    %v720 = vunpack.c.h.b16 %v90
    %v721 = vunpack.c.l.b16 %v91
    %v722 = vunpack.c.h.b16 %v91
    %v723 = vunpack.c.l.b16 %v92
    %v724 = vunpack.c.h.b16 %v92
    %v725 = vunpack.c.l.b16 %v93
    %v726 = vunpack.c.h.b16 %v93
    %v727 = vunpack.c.l.b16 %v94
    %v728 = vunpack.c.h.b16 %v94
    %v729 = vunpack.c.l.b16 %v95
    %v730 = vunpack.c.h.b16 %v95
    %v731 = vunpack.c.l.b16 %v96
    %v732 = vunpack.c.h.b16 %v96
    %v733 = vunpack.c.l.b16 %v97
    %v734 = vunpack.c.h.b16 %v97
    %v735 = vunpack.c.l.b16 %v98
    %v736 = vunpack.c.h.b16 %v98
    %v737 = vunpack.c.l.b16 %v99
    %v738 = vunpack.c.h.b16 %v99
    %v739 = vunpack.c.l.b16 %v100
    %v740 = vunpack.c.h.b16 %v100
    %v741 = vunpack.c.l.b16 %v101
    %v742 = vunpack.c.h.b16 %v101
    %v743 = vpack.c.b16 %v683, %v679
    %v744 = vpack.c.b16 %v684, %v680
    %v745 = vpack.c.b16 %v685, %v681
    %v746 = vpack.c.b16 %v686, %v682
    %v747 = vpack.c.b16 %v691, %v687
    %v748 = vpack.c.b16 %v692, %v688
    %v749 = vpack.c.b16 %v693, %v689
    %v750 = vpack.c.b16 %v694, %v690
    %v751 = vpack.c.b16 %v699, %v695
    %v752 = vpack.c.b16 %v700, %v696
    %v753 = vpack.c.b16 %v701, %v697
    %v754 = vpack.c.b16 %v702, %v698
    %v755 = vpack.c.b16 %v707, %v703
    %v756 = vpack.c.b16 %v708, %v704
    %v757 = vpack.c.b16 %v709, %v705
    %v758 = vpack.c.b16 %v710, %v706
    %v759 = vpack.c.b16 %v715, %v711
    %v760 = vpack.c.b16 %v716, %v712
    %v761 = vpack.c.b16 %v717, %v713
    %v762 = vpack.c.b16 %v718, %v714
    %v763 = vpack.c.b16 %v723, %v719
    %v764 = vpack.c.b16 %v724, %v720
    %v765 = vpack.c.b16 %v725, %v721
    %v766 = vpack.c.b16 %v726, %v722
    %v767 = vpack.c.b16 %v731, %v727
    %v768 = vpack.c.b16 %v732, %v728
    %v769 = vpack.c.b16 %v733, %v729
    %v770 = vpack.c.b16 %v734, %v730
    %v771 = vpack.c.b16 %v739, %v735
    %v772 = vpack.c.b16 %v740, %v736
    %v773 = vpack.c.b16 %v741, %v737
    %v774 = vpack.c.b16 %v742, %v738
    %807 = vmatpush.bf16.msra.mxu0 %v771
    %808 = vmatpush.bf16.msra.mxu0 %v767
    %809 = vmatpush.bf16.msra.mxu0 %v763
    %810 = vmatpush.bf16.msra.mxu0 %v759
    %811 = vmatpush.bf16.msra.mxu0 %v755
    %812 = vmatpush.bf16.msra.mxu0 %v751
    %813 = vmatpush.bf16.msra.mxu0 %v747
    %814 = vmatpush.bf16.msra.mxu0 %v743
    %815 = vmatmul.bf16.gmra.mxu0 0
    %v816 = vpop.f32.mrf.mxu0
    %v817 = vadd.f32 0.0, %v816
    %v818 = vpop.f32.mrf.mxu0
    %819 = vdwg.mxu0
    %820 = vmatpush.bf16.msra.mxu0 %v772
    %821 = vmatpush.bf16.msra.mxu0 %v768
    %822 = vmatpush.bf16.msra.mxu0 %v764
    %823 = vmatpush.bf16.msra.mxu0 %v760
    %824 = vmatpush.bf16.msra.mxu0 %v756
    %825 = vmatpush.bf16.msra.mxu0 %v752
    %826 = vmatpush.bf16.msra.mxu0 %v748
    %827 = vmatpush.bf16.msra.mxu0 %v744
    %828 = vmatmul.bf16.gmra.mxu0 0
    %v829 = vpop.f32.mrf.mxu0
    %v830 = vadd.f32 0.0, %v829
    %v831 = vpop.f32.mrf.mxu0
    %832 = vdwg.mxu0
    %833 = vmatpush.bf16.msra.mxu0 %v773
    %834 = vmatpush.bf16.msra.mxu0 %v769
    %835 = vmatpush.bf16.msra.mxu0 %v765
    %836 = vmatpush.bf16.msra.mxu0 %v761
    %837 = vmatpush.bf16.msra.mxu0 %v757
    %838 = vmatpush.bf16.msra.mxu0 %v753
    %839 = vmatpush.bf16.msra.mxu0 %v749
    %840 = vmatpush.bf16.msra.mxu0 %v745
    %841 = vmatmul.bf16.gmra.mxu0 0
    %v842 = vpop.f32.mrf.mxu0
    %v843 = vadd.f32 0.0, %v842
    %v844 = vpop.f32.mrf.mxu0
    %845 = vdwg.mxu0
    %846 = vmatpush.bf16.msra.mxu0 %v774
    %847 = vmatpush.bf16.msra.mxu0 %v770
    %848 = vmatpush.bf16.msra.mxu0 %v766
    %849 = vmatpush.bf16.msra.mxu0 %v762
    %850 = vmatpush.bf16.msra.mxu0 %v758
    %851 = vmatpush.bf16.msra.mxu0 %v754
    %852 = vmatpush.bf16.msra.mxu0 %v750
    %853 = vmatpush.bf16.msra.mxu0 %v746
    %854 = vmatmul.bf16.gmra.mxu0 0
    %v855 = vpop.f32.mrf.mxu0
    %v856 = vadd.f32 0.0, %v855
    %v857 = vpop.f32.mrf.mxu0
    %858 = vdwg.mxu0
    %v859 = vadd.f32 %v643, %v817
    %v860 = vadd.f32 %v644, %v830
    %v861 = vadd.f32 %v645, %v843
    %v862 = vadd.f32 %v646, %v856
    %v863 = vxor.u32 %v859, 2147483648
    %v864 = vmul.f32 %v863, 1.442695
    %v865 = vpow.pop %v864
    %v866 = vadd.f32 %v865, 1.0
    %v867 = vrcp.pop %v866
    %v868 = vmul.f32 %v866, %v867
    %v869 = vsub.f32 1.0, %v868
    %v870 = vmul.f32 %v867, %v869
    %v871 = vadd.f32 %v867, %v870
    %vm872 = vweird.f32 %v866
    %vm873 = vweird.f32 %v867
    %vm874 = vmor %vm872, %vm873
    %v875 = vsel %vm874, %v867, %v871
    %v876 = vand.u32 2147483647, %v866
    %vm877 = vcmp.eq.f32.partialorder %v876, 8.507059e+37
    %v878 = vand.u32 %v866, 2147483648
    %v879 = vor.u32 1.1754944e-38, %v878
    %v880 = vsel %vm877, %v879, %v875
    %v881 = vmul.f32 1.0, %v880
    %v882 = vxor.u32 %v860, 2147483648
    %v883 = vmul.f32 %v882, 1.442695
    %v884 = vpow.pop %v883
    %v885 = vadd.f32 %v884, 1.0
    %v886 = vrcp.pop %v885
    %v887 = vmul.f32 %v885, %v886
    %v888 = vsub.f32 1.0, %v887
    %v889 = vmul.f32 %v886, %v888
    %v890 = vadd.f32 %v886, %v889
    %vm891 = vweird.f32 %v885
    %vm892 = vweird.f32 %v886
    %vm893 = vmor %vm891, %vm892
    %v894 = vsel %vm893, %v886, %v890
    %v895 = vand.u32 2147483647, %v885
    %vm896 = vcmp.eq.f32.partialorder %v895, 8.507059e+37
    %v897 = vand.u32 %v885, 2147483648
    %v898 = vor.u32 1.1754944e-38, %v897
    %v899 = vsel %vm896, %v898, %v894
    %v900 = vmul.f32 1.0, %v899
    %v901 = vtanh.pop %v861
    %v902 = vxor.u32 %v862, 2147483648
    %v903 = vmul.f32 %v902, 1.442695
    %v904 = vpow.pop %v903
    %v905 = vadd.f32 %v904, 1.0
    %v906 = vrcp.pop %v905
    %v907 = vmul.f32 %v905, %v906
    %v908 = vsub.f32 1.0, %v907
    %v909 = vmul.f32 %v906, %v908
    %v910 = vadd.f32 %v906, %v909
    %vm911 = vweird.f32 %v905
    %vm912 = vweird.f32 %v906
    %vm913 = vmor %vm911, %vm912
    %v914 = vsel %vm913, %v906, %v910
    %v915 = vand.u32 2147483647, %v905
    %vm916 = vcmp.eq.f32.partialorder %v915, 8.507059e+37
    %v917 = vand.u32 %v905, 2147483648
    %v918 = vor.u32 1.1754944e-38, %v917
    %v919 = vsel %vm916, %v918, %v914
    %v920 = vmul.f32 1.0, %v919
    %v921 = vmul.f32 %v900, 0.0
    %v922 = vmul.f32 %v881, %v901
    %v923 = vadd.f32 %v921, %v922
    %v924 = vtanh.pop %v923
    %v925 = vmul.f32 %v920, %v924
    %s926 = smul.u32 1, 4
    %s927 = smul.addr %s926, 8
    %s928 = scalar_lea.vmem [#allocation2], %s927
    %v929 = vld [vmem:[%s928] sm:$0xff]
    %v930 = vld [vmem:[%s928 + $0x8] sm:$0xff]
    %v931 = vld [vmem:[%s928 + $0x10] sm:$0xff]
    %v932 = vld [vmem:[%s928 + $0x18] sm:$0xff]
    %v933 = vpack.c.bf16 %v925, %v925
    %934 = vmatpush.bf16.msra.mxu0 %v771
    %935 = vmatpush.bf16.msra.mxu0 %v767
    %936 = vmatpush.bf16.msra.mxu0 %v763
    %937 = vmatpush.bf16.msra.mxu0 %v759
    %938 = vmatpush.bf16.msra.mxu0 %v755
    %939 = vmatpush.bf16.msra.mxu0 %v751
    %940 = vmatpush.bf16.msra.mxu0 %v747
    %941 = vmatpush.bf16.msra.mxu0 %v743
    %942 = vmatmul.bf16.gmra.mxu0 %v933
    %v943 = vpop.f32.mrf.mxu0
    %v944 = vadd.f32 0.0, %v943
    %v945 = vpop.f32.mrf.mxu0
    %946 = vdwg.mxu0
    %947 = vmatpush.bf16.msra.mxu0 %v772
    %948 = vmatpush.bf16.msra.mxu0 %v768
    %949 = vmatpush.bf16.msra.mxu0 %v764
    %950 = vmatpush.bf16.msra.mxu0 %v760
    %951 = vmatpush.bf16.msra.mxu0 %v756
    %952 = vmatpush.bf16.msra.mxu0 %v752
    %953 = vmatpush.bf16.msra.mxu0 %v748
    %954 = vmatpush.bf16.msra.mxu0 %v744
    %955 = vmatmul.bf16.gmra.mxu0 %v933
    %v956 = vpop.f32.mrf.mxu0
    %v957 = vadd.f32 0.0, %v956
    %v958 = vpop.f32.mrf.mxu0
    %959 = vdwg.mxu0
    %960 = vmatpush.bf16.msra.mxu0 %v773
    %961 = vmatpush.bf16.msra.mxu0 %v769
    %962 = vmatpush.bf16.msra.mxu0 %v765
    %963 = vmatpush.bf16.msra.mxu0 %v761
    %964 = vmatpush.bf16.msra.mxu0 %v757
    %965 = vmatpush.bf16.msra.mxu0 %v753
    %966 = vmatpush.bf16.msra.mxu0 %v749
    %967 = vmatpush.bf16.msra.mxu0 %v745
    %968 = vmatmul.bf16.gmra.mxu0 %v933
    %v969 = vpop.f32.mrf.mxu0
    %v970 = vadd.f32 0.0, %v969
    %v971 = vpop.f32.mrf.mxu0
    %972 = vdwg.mxu0
    %973 = vmatpush.bf16.msra.mxu0 %v774
    %974 = vmatpush.bf16.msra.mxu0 %v770
    %975 = vmatpush.bf16.msra.mxu0 %v766
    %976 = vmatpush.bf16.msra.mxu0 %v762
    %977 = vmatpush.bf16.msra.mxu0 %v758
    %978 = vmatpush.bf16.msra.mxu0 %v754
    %979 = vmatpush.bf16.msra.mxu0 %v750
    %980 = vmatpush.bf16.msra.mxu0 %v746
    %981 = vmatmul.bf16.gmra.mxu0 %v933
    %v982 = vpop.f32.mrf.mxu0
    %v983 = vadd.f32 0.0, %v982
    %v984 = vpop.f32.mrf.mxu0
    %985 = vdwg.mxu0
    %v986 = vadd.f32 %v929, %v944
    %v987 = vadd.f32 %v930, %v957
    %v988 = vadd.f32 %v931, %v970
    %v989 = vadd.f32 %v932, %v983
    %v990 = vxor.u32 %v986, 2147483648
    %v991 = vmul.f32 %v990, 1.442695
    %v992 = vpow.pop %v991
    %v993 = vadd.f32 %v992, 1.0
    %v994 = vrcp.pop %v993
    %v995 = vmul.f32 %v993, %v994
    %v996 = vsub.f32 1.0, %v995
    %v997 = vmul.f32 %v994, %v996
    %v998 = vadd.f32 %v994, %v997
    %vm999 = vweird.f32 %v993
    %vm1000 = vweird.f32 %v994
    %vm1001 = vmor %vm999, %vm1000
    %v1002 = vsel %vm1001, %v994, %v998
    %v1003 = vand.u32 2147483647, %v993
    %vm1004 = vcmp.eq.f32.partialorder %v1003, 8.507059e+37
    %v1005 = vand.u32 %v993, 2147483648
    %v1006 = vor.u32 1.1754944e-38, %v1005
    %v1007 = vsel %vm1004, %v1006, %v1002
    %v1008 = vmul.f32 1.0, %v1007
    %v1009 = vxor.u32 %v987, 2147483648
    %v1010 = vmul.f32 %v1009, 1.442695
    %v1011 = vpow.pop %v1010
    %v1012 = vadd.f32 %v1011, 1.0
    %v1013 = vrcp.pop %v1012
    %v1014 = vmul.f32 %v1012, %v1013
    %v1015 = vsub.f32 1.0, %v1014
    %v1016 = vmul.f32 %v1013, %v1015
    %v1017 = vadd.f32 %v1013, %v1016
    %vm1018 = vweird.f32 %v1012
    %vm1019 = vweird.f32 %v1013
    %vm1020 = vmor %vm1018, %vm1019
    %v1021 = vsel %vm1020, %v1013, %v1017
    %v1022 = vand.u32 2147483647, %v1012
    %vm1023 = vcmp.eq.f32.partialorder %v1022, 8.507059e+37
    %v1024 = vand.u32 %v1012, 2147483648
    %v1025 = vor.u32 1.1754944e-38, %v1024
    %v1026 = vsel %vm1023, %v1025, %v1021
    %v1027 = vmul.f32 1.0, %v1026
    %v1028 = vtanh.pop %v988
    %v1029 = vxor.u32 %v989, 2147483648
    %v1030 = vmul.f32 %v1029, 1.442695
    %v1031 = vpow.pop %v1030
    %v1032 = vadd.f32 %v1031, 1.0
    %v1033 = vrcp.pop %v1032
    %v1034 = vmul.f32 %v1032, %v1033
    %v1035 = vsub.f32 1.0, %v1034
    %v1036 = vmul.f32 %v1033, %v1035
    %v1037 = vadd.f32 %v1033, %v1036
    %vm1038 = vweird.f32 %v1032
    %vm1039 = vweird.f32 %v1033
    %vm1040 = vmor %vm1038, %vm1039
    %v1041 = vsel %vm1040, %v1033, %v1037
    %v1042 = vand.u32 2147483647, %v1032
    %vm1043 = vcmp.eq.f32.partialorder %v1042, 8.507059e+37
    %v1044 = vand.u32 %v1032, 2147483648
    %v1045 = vor.u32 1.1754944e-38, %v1044
    %v1046 = vsel %vm1043, %v1045, %v1041
    %v1047 = vmul.f32 1.0, %v1046
    %v1048 = vmul.f32 %v1027, %v923
    %v1049 = vmul.f32 %v1008, %v1028
    %v1050 = vadd.f32 %v1048, %v1049
    %v1051 = vtanh.pop %v1050
    %v1052 = vmul.f32 %v1047, %v1051
    %s1053 = smul.u32 2, 4
    %s1054 = smul.addr %s1053, 8
    %s1055 = scalar_lea.vmem [#allocation2], %s1054
    %v1056 = vld [vmem:[%s1055] sm:$0xff]
    %v1057 = vld [vmem:[%s1055 + $0x8] sm:$0xff]
    %v1058 = vld [vmem:[%s1055 + $0x10] sm:$0xff]
    %v1059 = vld [vmem:[%s1055 + $0x18] sm:$0xff]
    %v1060 = vpack.c.bf16 %v1052, %v1052
    %1061 = vmatpush.bf16.msra.mxu0 %v771
    %1062 = vmatpush.bf16.msra.mxu0 %v767
    %1063 = vmatpush.bf16.msra.mxu0 %v763
    %1064 = vmatpush.bf16.msra.mxu0 %v759
    %1065 = vmatpush.bf16.msra.mxu0 %v755
    %1066 = vmatpush.bf16.msra.mxu0 %v751
    %1067 = vmatpush.bf16.msra.mxu0 %v747
    %1068 = vmatpush.bf16.msra.mxu0 %v743
    %1069 = vmatmul.bf16.gmra.mxu0 %v1060
    %v1070 = vpop.f32.mrf.mxu0
    %v1071 = vadd.f32 0.0, %v1070
    %v1072 = vpop.f32.mrf.mxu0
    %1073 = vdwg.mxu0
    %1074 = vmatpush.bf16.msra.mxu0 %v772
    %1075 = vmatpush.bf16.msra.mxu0 %v768
    %1076 = vmatpush.bf16.msra.mxu0 %v764
    %1077 = vmatpush.bf16.msra.mxu0 %v760
    %1078 = vmatpush.bf16.msra.mxu0 %v756
    %1079 = vmatpush.bf16.msra.mxu0 %v752
    %1080 = vmatpush.bf16.msra.mxu0 %v748
    %1081 = vmatpush.bf16.msra.mxu0 %v744
    %1082 = vmatmul.bf16.gmra.mxu0 %v1060
    %v1083 = vpop.f32.mrf.mxu0
    %v1084 = vadd.f32 0.0, %v1083
    %v1085 = vpop.f32.mrf.mxu0
    %1086 = vdwg.mxu0
    %1087 = vmatpush.bf16.msra.mxu0 %v773
    %1088 = vmatpush.bf16.msra.mxu0 %v769
    %1089 = vmatpush.bf16.msra.mxu0 %v765
    %1090 = vmatpush.bf16.msra.mxu0 %v761
    %1091 = vmatpush.bf16.msra.mxu0 %v757
    %1092 = vmatpush.bf16.msra.mxu0 %v753
    %1093 = vmatpush.bf16.msra.mxu0 %v749
    %1094 = vmatpush.bf16.msra.mxu0 %v745
    %1095 = vmatmul.bf16.gmra.mxu0 %v1060
    %v1096 = vpop.f32.mrf.mxu0
    %v1097 = vadd.f32 0.0, %v1096
    %v1098 = vpop.f32.mrf.mxu0
    %1099 = vdwg.mxu0
    %1100 = vmatpush.bf16.msra.mxu0 %v774
    %1101 = vmatpush.bf16.msra.mxu0 %v770
    %1102 = vmatpush.bf16.msra.mxu0 %v766
    %1103 = vmatpush.bf16.msra.mxu0 %v762
    %1104 = vmatpush.bf16.msra.mxu0 %v758
    %1105 = vmatpush.bf16.msra.mxu0 %v754
    %1106 = vmatpush.bf16.msra.mxu0 %v750
    %1107 = vmatpush.bf16.msra.mxu0 %v746
    %1108 = vmatmul.bf16.gmra.mxu0 %v1060
    %v1109 = vpop.f32.mrf.mxu0
    %v1110 = vadd.f32 0.0, %v1109
    %v1111 = vpop.f32.mrf.mxu0
    %1112 = vdwg.mxu0
    %v1113 = vadd.f32 %v1056, %v1071
    %v1114 = vadd.f32 %v1057, %v1084
    %v1115 = vadd.f32 %v1058, %v1097
    %v1116 = vadd.f32 %v1059, %v1110
    %v1117 = vxor.u32 %v1113, 2147483648
    %v1118 = vmul.f32 %v1117, 1.442695
    %v1119 = vpow.pop %v1118
    %v1120 = vadd.f32 %v1119, 1.0
    %v1121 = vrcp.pop %v1120
    %v1122 = vmul.f32 %v1120, %v1121
    %v1123 = vsub.f32 1.0, %v1122
    %v1124 = vmul.f32 %v1121, %v1123
    %v1125 = vadd.f32 %v1121, %v1124
    %vm1126 = vweird.f32 %v1120
    %vm1127 = vweird.f32 %v1121
    %vm1128 = vmor %vm1126, %vm1127
    %v1129 = vsel %vm1128, %v1121, %v1125
    %v1130 = vand.u32 2147483647, %v1120
    %vm1131 = vcmp.eq.f32.partialorder %v1130, 8.507059e+37
    %v1132 = vand.u32 %v1120, 2147483648
    %v1133 = vor.u32 1.1754944e-38, %v1132
    %v1134 = vsel %vm1131, %v1133, %v1129
    %v1135 = vmul.f32 1.0, %v1134
    %v1136 = vxor.u32 %v1114, 2147483648
    %v1137 = vmul.f32 %v1136, 1.442695
    %v1138 = vpow.pop %v1137
    %v1139 = vadd.f32 %v1138, 1.0
    %v1140 = vrcp.pop %v1139
    %v1141 = vmul.f32 %v1139, %v1140
    %v1142 = vsub.f32 1.0, %v1141
    %v1143 = vmul.f32 %v1140, %v1142
    %v1144 = vadd.f32 %v1140, %v1143
    %vm1145 = vweird.f32 %v1139
    %vm1146 = vweird.f32 %v1140
    %vm1147 = vmor %vm1145, %vm1146
    %v1148 = vsel %vm1147, %v1140, %v1144
    %v1149 = vand.u32 2147483647, %v1139
    %vm1150 = vcmp.eq.f32.partialorder %v1149, 8.507059e+37
    %v1151 = vand.u32 %v1139, 2147483648
    %v1152 = vor.u32 1.1754944e-38, %v1151
    %v1153 = vsel %vm1150, %v1152, %v1148
    %v1154 = vmul.f32 1.0, %v1153
    %v1155 = vtanh.pop %v1115
    %v1156 = vxor.u32 %v1116, 2147483648
    %v1157 = vmul.f32 %v1156, 1.442695
    %v1158 = vpow.pop %v1157
    %v1159 = vadd.f32 %v1158, 1.0
    %v1160 = vrcp.pop %v1159
    %v1161 = vmul.f32 %v1159, %v1160
    %v1162 = vsub.f32 1.0, %v1161
    %v1163 = vmul.f32 %v1160, %v1162
    %v1164 = vadd.f32 %v1160, %v1163
    %vm1165 = vweird.f32 %v1159
    %vm1166 = vweird.f32 %v1160
    %vm1167 = vmor %vm1165, %vm1166
    %v1168 = vsel %vm1167, %v1160, %v1164
    %v1169 = vand.u32 2147483647, %v1159
    %vm1170 = vcmp.eq.f32.partialorder %v1169, 8.507059e+37
    %v1171 = vand.u32 %v1159, 2147483648
    %v1172 = vor.u32 1.1754944e-38, %v1171
    %v1173 = vsel %vm1170, %v1172, %v1168
    %v1174 = vmul.f32 1.0, %v1173
    %v1175 = vmul.f32 %v1154, %v1050
    %v1176 = vmul.f32 %v1135, %v1155
    %v1177 = vadd.f32 %v1175, %v1176
    %v1178 = vtanh.pop %v1177
    %v1179 = vmul.f32 %v1174, %v1178
    %s1180 = smul.u32 3, 4
    %s1181 = smul.addr %s1180, 8
    %s1182 = scalar_lea.vmem [#allocation2], %s1181
    %v1183 = vld [vmem:[%s1182] sm:$0xff]
    %v1184 = vld [vmem:[%s1182 + $0x8] sm:$0xff]
    %v1185 = vld [vmem:[%s1182 + $0x10] sm:$0xff]
    %v1186 = vld [vmem:[%s1182 + $0x18] sm:$0xff]
    %v1187 = vpack.c.bf16 %v1179, %v1179
    %1188 = vmatpush.bf16.msra.mxu0 %v771
    %1189 = vmatpush.bf16.msra.mxu0 %v767
    %1190 = vmatpush.bf16.msra.mxu0 %v763
    %1191 = vmatpush.bf16.msra.mxu0 %v759
    %1192 = vmatpush.bf16.msra.mxu0 %v755
    %1193 = vmatpush.bf16.msra.mxu0 %v751
    %1194 = vmatpush.bf16.msra.mxu0 %v747
    %1195 = vmatpush.bf16.msra.mxu0 %v743
    %1196 = vmatmul.bf16.gmra.mxu0 %v1187
    %v1197 = vpop.f32.mrf.mxu0
    %v1198 = vadd.f32 0.0, %v1197
    %v1199 = vpop.f32.mrf.mxu0
    %1200 = vdwg.mxu0
    %1201 = vmatpush.bf16.msra.mxu0 %v772
    %1202 = vmatpush.bf16.msra.mxu0 %v768
    %1203 = vmatpush.bf16.msra.mxu0 %v764
    %1204 = vmatpush.bf16.msra.mxu0 %v760
    %1205 = vmatpush.bf16.msra.mxu0 %v756
    %1206 = vmatpush.bf16.msra.mxu0 %v752
    %1207 = vmatpush.bf16.msra.mxu0 %v748
    %1208 = vmatpush.bf16.msra.mxu0 %v744
    %1209 = vmatmul.bf16.gmra.mxu0 %v1187
    %v1210 = vpop.f32.mrf.mxu0
    %v1211 = vadd.f32 0.0, %v1210
    %v1212 = vpop.f32.mrf.mxu0
    %1213 = vdwg.mxu0
    %1214 = vmatpush.bf16.msra.mxu0 %v773
    %1215 = vmatpush.bf16.msra.mxu0 %v769
    %1216 = vmatpush.bf16.msra.mxu0 %v765
    %1217 = vmatpush.bf16.msra.mxu0 %v761
    %1218 = vmatpush.bf16.msra.mxu0 %v757
    %1219 = vmatpush.bf16.msra.mxu0 %v753
    %1220 = vmatpush.bf16.msra.mxu0 %v749
    %1221 = vmatpush.bf16.msra.mxu0 %v745
    %1222 = vmatmul.bf16.gmra.mxu0 %v1187
    %v1223 = vpop.f32.mrf.mxu0
    %v1224 = vadd.f32 0.0, %v1223
    %v1225 = vpop.f32.mrf.mxu0
    %1226 = vdwg.mxu0
    %1227 = vmatpush.bf16.msra.mxu0 %v774
    %1228 = vmatpush.bf16.msra.mxu0 %v770
    %1229 = vmatpush.bf16.msra.mxu0 %v766
    %1230 = vmatpush.bf16.msra.mxu0 %v762
    %1231 = vmatpush.bf16.msra.mxu0 %v758
    %1232 = vmatpush.bf16.msra.mxu0 %v754
    %1233 = vmatpush.bf16.msra.mxu0 %v750
    %1234 = vmatpush.bf16.msra.mxu0 %v746
    %1235 = vmatmul.bf16.gmra.mxu0 %v1187
    %v1236 = vpop.f32.mrf.mxu0
    %v1237 = vadd.f32 0.0, %v1236
    %v1238 = vpop.f32.mrf.mxu0
    %1239 = vdwg.mxu0
    %v1240 = vadd.f32 %v1183, %v1198
    %v1241 = vadd.f32 %v1184, %v1211
    %v1242 = vadd.f32 %v1185, %v1224
    %v1243 = vadd.f32 %v1186, %v1237
    %v1244 = vxor.u32 %v1240, 2147483648
    %v1245 = vmul.f32 %v1244, 1.442695
    %v1246 = vpow.pop %v1245
    %v1247 = vadd.f32 %v1246, 1.0
    %v1248 = vrcp.pop %v1247
    %v1249 = vmul.f32 %v1247, %v1248
    %v1250 = vsub.f32 1.0, %v1249
    %v1251 = vmul.f32 %v1248, %v1250
    %v1252 = vadd.f32 %v1248, %v1251
    %vm1253 = vweird.f32 %v1247
    %vm1254 = vweird.f32 %v1248
    %vm1255 = vmor %vm1253, %vm1254
    %v1256 = vsel %vm1255, %v1248, %v1252
    %v1257 = vand.u32 2147483647, %v1247
    %vm1258 = vcmp.eq.f32.partialorder %v1257, 8.507059e+37
    %v1259 = vand.u32 %v1247, 2147483648
    %v1260 = vor.u32 1.1754944e-38, %v1259
    %v1261 = vsel %vm1258, %v1260, %v1256
    %v1262 = vmul.f32 1.0, %v1261
    %v1263 = vxor.u32 %v1241, 2147483648
    %v1264 = vmul.f32 %v1263, 1.442695
    %v1265 = vpow.pop %v1264
    %v1266 = vadd.f32 %v1265, 1.0
    %v1267 = vrcp.pop %v1266
    %v1268 = vmul.f32 %v1266, %v1267
    %v1269 = vsub.f32 1.0, %v1268
    %v1270 = vmul.f32 %v1267, %v1269
    %v1271 = vadd.f32 %v1267, %v1270
    %vm1272 = vweird.f32 %v1266
    %vm1273 = vweird.f32 %v1267
    %vm1274 = vmor %vm1272, %vm1273
    %v1275 = vsel %vm1274, %v1267, %v1271
    %v1276 = vand.u32 2147483647, %v1266
    %vm1277 = vcmp.eq.f32.partialorder %v1276, 8.507059e+37
    %v1278 = vand.u32 %v1266, 2147483648
    %v1279 = vor.u32 1.1754944e-38, %v1278
    %v1280 = vsel %vm1277, %v1279, %v1275
    %v1281 = vmul.f32 1.0, %v1280
    %v1282 = vtanh.pop %v1242
    %v1283 = vxor.u32 %v1243, 2147483648
    %v1284 = vmul.f32 %v1283, 1.442695
    %v1285 = vpow.pop %v1284
    %v1286 = vadd.f32 %v1285, 1.0
    %v1287 = vrcp.pop %v1286
    %v1288 = vmul.f32 %v1286, %v1287
    %v1289 = vsub.f32 1.0, %v1288
    %v1290 = vmul.f32 %v1287, %v1289
    %v1291 = vadd.f32 %v1287, %v1290
    %vm1292 = vweird.f32 %v1286
    %vm1293 = vweird.f32 %v1287
    %vm1294 = vmor %vm1292, %vm1293
    %v1295 = vsel %vm1294, %v1287, %v1291
    %v1296 = vand.u32 2147483647, %v1286
    %vm1297 = vcmp.eq.f32.partialorder %v1296, 8.507059e+37
    %v1298 = vand.u32 %v1286, 2147483648
    %v1299 = vor.u32 1.1754944e-38, %v1298
    %v1300 = vsel %vm1297, %v1299, %v1295
    %v1301 = vmul.f32 1.0, %v1300
    %v1302 = vmul.f32 %v1281, %v1177
    %v1303 = vmul.f32 %v1262, %v1282
    %v1304 = vadd.f32 %v1302, %v1303
    %v1305 = vtanh.pop %v1304
    %v1306 = vmul.f32 %v1301, %v1305
    %s1307 = smul.u32 4, 4
    %s1308 = smul.addr %s1307, 8
    %s1309 = scalar_lea.vmem [#allocation2], %s1308
    %v1310 = vld [vmem:[%s1309] sm:$0xff]
    %v1311 = vld [vmem:[%s1309 + $0x8] sm:$0xff]
    %v1312 = vld [vmem:[%s1309 + $0x10] sm:$0xff]
    %v1313 = vld [vmem:[%s1309 + $0x18] sm:$0xff]
    %v1314 = vpack.c.bf16 %v1306, %v1306
    %1315 = vmatpush.bf16.msra.mxu0 %v771
    %1316 = vmatpush.bf16.msra.mxu0 %v767
    %1317 = vmatpush.bf16.msra.mxu0 %v763
    %1318 = vmatpush.bf16.msra.mxu0 %v759
    %1319 = vmatpush.bf16.msra.mxu0 %v755
    %1320 = vmatpush.bf16.msra.mxu0 %v751
    %1321 = vmatpush.bf16.msra.mxu0 %v747
    %1322 = vmatpush.bf16.msra.mxu0 %v743
    %1323 = vmatmul.bf16.gmra.mxu0 %v1314
    %v1324 = vpop.f32.mrf.mxu0
    %v1325 = vadd.f32 0.0, %v1324
    %v1326 = vpop.f32.mrf.mxu0
    %1327 = vdwg.mxu0
    %1328 = vmatpush.bf16.msra.mxu0 %v772
    %1329 = vmatpush.bf16.msra.mxu0 %v768
    %1330 = vmatpush.bf16.msra.mxu0 %v764
    %1331 = vmatpush.bf16.msra.mxu0 %v760
    %1332 = vmatpush.bf16.msra.mxu0 %v756
    %1333 = vmatpush.bf16.msra.mxu0 %v752
    %1334 = vmatpush.bf16.msra.mxu0 %v748
    %1335 = vmatpush.bf16.msra.mxu0 %v744
    %1336 = vmatmul.bf16.gmra.mxu0 %v1314
    %v1337 = vpop.f32.mrf.mxu0
    %v1338 = vadd.f32 0.0, %v1337
    %v1339 = vpop.f32.mrf.mxu0
    %1340 = vdwg.mxu0
    %1341 = vmatpush.bf16.msra.mxu0 %v773
    %1342 = vmatpush.bf16.msra.mxu0 %v769
    %1343 = vmatpush.bf16.msra.mxu0 %v765
    %1344 = vmatpush.bf16.msra.mxu0 %v761
    %1345 = vmatpush.bf16.msra.mxu0 %v757
    %1346 = vmatpush.bf16.msra.mxu0 %v753
    %1347 = vmatpush.bf16.msra.mxu0 %v749
    %1348 = vmatpush.bf16.msra.mxu0 %v745
    %1349 = vmatmul.bf16.gmra.mxu0 %v1314
    %v1350 = vpop.f32.mrf.mxu0
    %v1351 = vadd.f32 0.0, %v1350
    %v1352 = vpop.f32.mrf.mxu0
    %1353 = vdwg.mxu0
    %1354 = vmatpush.bf16.msra.mxu0 %v774
    %1355 = vmatpush.bf16.msra.mxu0 %v770
    %1356 = vmatpush.bf16.msra.mxu0 %v766
    %1357 = vmatpush.bf16.msra.mxu0 %v762
    %1358 = vmatpush.bf16.msra.mxu0 %v758
    %1359 = vmatpush.bf16.msra.mxu0 %v754
    %1360 = vmatpush.bf16.msra.mxu0 %v750
    %1361 = vmatpush.bf16.msra.mxu0 %v746
    %1362 = vmatmul.bf16.gmra.mxu0 %v1314
    %v1363 = vpop.f32.mrf.mxu0
    %v1364 = vadd.f32 0.0, %v1363
    %v1365 = vpop.f32.mrf.mxu0
    %1366 = vdwg.mxu0
    %v1367 = vadd.f32 %v1310, %v1325
    %v1368 = vadd.f32 %v1311, %v1338
    %v1369 = vadd.f32 %v1312, %v1351
    %v1370 = vadd.f32 %v1313, %v1364
    %v1371 = vxor.u32 %v1367, 2147483648
    %v1372 = vmul.f32 %v1371, 1.442695
    %v1373 = vpow.pop %v1372
    %v1374 = vadd.f32 %v1373, 1.0
    %v1375 = vrcp.pop %v1374
    %v1376 = vmul.f32 %v1374, %v1375
    %v1377 = vsub.f32 1.0, %v1376
    %v1378 = vmul.f32 %v1375, %v1377
    %v1379 = vadd.f32 %v1375, %v1378
    %vm1380 = vweird.f32 %v1374
    %vm1381 = vweird.f32 %v1375
    %vm1382 = vmor %vm1380, %vm1381
    %v1383 = vsel %vm1382, %v1375, %v1379
    %v1384 = vand.u32 2147483647, %v1374
    %vm1385 = vcmp.eq.f32.partialorder %v1384, 8.507059e+37
    %v1386 = vand.u32 %v1374, 2147483648
    %v1387 = vor.u32 1.1754944e-38, %v1386
    %v1388 = vsel %vm1385, %v1387, %v1383
    %v1389 = vmul.f32 1.0, %v1388
    %v1390 = vxor.u32 %v1368, 2147483648
    %v1391 = vmul.f32 %v1390, 1.442695
    %v1392 = vpow.pop %v1391
    %v1393 = vadd.f32 %v1392, 1.0
    %v1394 = vrcp.pop %v1393
    %v1395 = vmul.f32 %v1393, %v1394
    %v1396 = vsub.f32 1.0, %v1395
    %v1397 = vmul.f32 %v1394, %v1396
    %v1398 = vadd.f32 %v1394, %v1397
    %vm1399 = vweird.f32 %v1393
    %vm1400 = vweird.f32 %v1394
    %vm1401 = vmor %vm1399, %vm1400
    %v1402 = vsel %vm1401, %v1394, %v1398
    %v1403 = vand.u32 2147483647, %v1393
    %vm1404 = vcmp.eq.f32.partialorder %v1403, 8.507059e+37
    %v1405 = vand.u32 %v1393, 2147483648
    %v1406 = vor.u32 1.1754944e-38, %v1405
    %v1407 = vsel %vm1404, %v1406, %v1402
    %v1408 = vmul.f32 1.0, %v1407
    %v1409 = vtanh.pop %v1369
    %v1410 = vxor.u32 %v1370, 2147483648
    %v1411 = vmul.f32 %v1410, 1.442695
    %v1412 = vpow.pop %v1411
    %v1413 = vadd.f32 %v1412, 1.0
    %v1414 = vrcp.pop %v1413
    %v1415 = vmul.f32 %v1413, %v1414
    %v1416 = vsub.f32 1.0, %v1415
    %v1417 = vmul.f32 %v1414, %v1416
    %v1418 = vadd.f32 %v1414, %v1417
    %vm1419 = vweird.f32 %v1413
    %vm1420 = vweird.f32 %v1414
    %vm1421 = vmor %vm1419, %vm1420
    %v1422 = vsel %vm1421, %v1414, %v1418
    %v1423 = vand.u32 2147483647, %v1413
    %vm1424 = vcmp.eq.f32.partialorder %v1423, 8.507059e+37
    %v1425 = vand.u32 %v1413, 2147483648
    %v1426 = vor.u32 1.1754944e-38, %v1425
    %v1427 = vsel %vm1424, %v1426, %v1422
    %v1428 = vmul.f32 1.0, %v1427
    %v1429 = vmul.f32 %v1408, %v1304
    %v1430 = vmul.f32 %v1389, %v1409
    %v1431 = vadd.f32 %v1429, %v1430
    %v1432 = vtanh.pop %v1431
    %v1433 = vmul.f32 %v1428, %v1432
    %s1434 = smul.u32 5, 4
    %s1435 = smul.addr %s1434, 8
    %s1436 = scalar_lea.vmem [#allocation2], %s1435
    %v1437 = vld [vmem:[%s1436] sm:$0xff]
    %v1438 = vld [vmem:[%s1436 + $0x8] sm:$0xff]
    %v1439 = vld [vmem:[%s1436 + $0x10] sm:$0xff]
    %v1440 = vld [vmem:[%s1436 + $0x18] sm:$0xff]
    %v1441 = vpack.c.bf16 %v1433, %v1433
    %1442 = vmatpush.bf16.msra.mxu0 %v771
    %1443 = vmatpush.bf16.msra.mxu0 %v767
    %1444 = vmatpush.bf16.msra.mxu0 %v763
    %1445 = vmatpush.bf16.msra.mxu0 %v759
    %1446 = vmatpush.bf16.msra.mxu0 %v755
    %1447 = vmatpush.bf16.msra.mxu0 %v751
    %1448 = vmatpush.bf16.msra.mxu0 %v747
    %1449 = vmatpush.bf16.msra.mxu0 %v743
    %1450 = vmatmul.bf16.gmra.mxu0 %v1441
    %v1451 = vpop.f32.mrf.mxu0
    %v1452 = vadd.f32 0.0, %v1451
    %v1453 = vpop.f32.mrf.mxu0
    %1454 = vdwg.mxu0
    %1455 = vmatpush.bf16.msra.mxu0 %v772
    %1456 = vmatpush.bf16.msra.mxu0 %v768
    %1457 = vmatpush.bf16.msra.mxu0 %v764
    %1458 = vmatpush.bf16.msra.mxu0 %v760
    %1459 = vmatpush.bf16.msra.mxu0 %v756
    %1460 = vmatpush.bf16.msra.mxu0 %v752
    %1461 = vmatpush.bf16.msra.mxu0 %v748
    %1462 = vmatpush.bf16.msra.mxu0 %v744
    %1463 = vmatmul.bf16.gmra.mxu0 %v1441
    %v1464 = vpop.f32.mrf.mxu0
    %v1465 = vadd.f32 0.0, %v1464
    %v1466 = vpop.f32.mrf.mxu0
    %1467 = vdwg.mxu0
    %1468 = vmatpush.bf16.msra.mxu0 %v773
    %1469 = vmatpush.bf16.msra.mxu0 %v769
    %1470 = vmatpush.bf16.msra.mxu0 %v765
    %1471 = vmatpush.bf16.msra.mxu0 %v761
    %1472 = vmatpush.bf16.msra.mxu0 %v757
    %1473 = vmatpush.bf16.msra.mxu0 %v753
    %1474 = vmatpush.bf16.msra.mxu0 %v749
    %1475 = vmatpush.bf16.msra.mxu0 %v745
    %1476 = vmatmul.bf16.gmra.mxu0 %v1441
    %v1477 = vpop.f32.mrf.mxu0
    %v1478 = vadd.f32 0.0, %v1477
    %v1479 = vpop.f32.mrf.mxu0
    %1480 = vdwg.mxu0
    %1481 = vmatpush.bf16.msra.mxu0 %v774
    %1482 = vmatpush.bf16.msra.mxu0 %v770
    %1483 = vmatpush.bf16.msra.mxu0 %v766
    %1484 = vmatpush.bf16.msra.mxu0 %v762
    %1485 = vmatpush.bf16.msra.mxu0 %v758
    %1486 = vmatpush.bf16.msra.mxu0 %v754
    %1487 = vmatpush.bf16.msra.mxu0 %v750
    %1488 = vmatpush.bf16.msra.mxu0 %v746
    %1489 = vmatmul.bf16.gmra.mxu0 %v1441
    %v1490 = vpop.f32.mrf.mxu0
    %v1491 = vadd.f32 0.0, %v1490
    %v1492 = vpop.f32.mrf.mxu0
    %1493 = vdwg.mxu0
    %v1494 = vadd.f32 %v1437, %v1452
    %v1495 = vadd.f32 %v1438, %v1465
    %v1496 = vadd.f32 %v1439, %v1478
    %v1497 = vadd.f32 %v1440, %v1491
    %v1498 = vxor.u32 %v1494, 2147483648
    %v1499 = vmul.f32 %v1498, 1.442695
    %v1500 = vpow.pop %v1499
    %v1501 = vadd.f32 %v1500, 1.0
    %v1502 = vrcp.pop %v1501
    %v1503 = vmul.f32 %v1501, %v1502
    %v1504 = vsub.f32 1.0, %v1503
    %v1505 = vmul.f32 %v1502, %v1504
    %v1506 = vadd.f32 %v1502, %v1505
    %vm1507 = vweird.f32 %v1501
    %vm1508 = vweird.f32 %v1502
    %vm1509 = vmor %vm1507, %vm1508
    %v1510 = vsel %vm1509, %v1502, %v1506
    %v1511 = vand.u32 2147483647, %v1501
    %vm1512 = vcmp.eq.f32.partialorder %v1511, 8.507059e+37
    %v1513 = vand.u32 %v1501, 2147483648
    %v1514 = vor.u32 1.1754944e-38, %v1513
    %v1515 = vsel %vm1512, %v1514, %v1510
    %v1516 = vmul.f32 1.0, %v1515
    %v1517 = vxor.u32 %v1495, 2147483648
    %v1518 = vmul.f32 %v1517, 1.442695
    %v1519 = vpow.pop %v1518
    %v1520 = vadd.f32 %v1519, 1.0
    %v1521 = vrcp.pop %v1520
    %v1522 = vmul.f32 %v1520, %v1521
    %v1523 = vsub.f32 1.0, %v1522
    %v1524 = vmul.f32 %v1521, %v1523
    %v1525 = vadd.f32 %v1521, %v1524
    %vm1526 = vweird.f32 %v1520
    %vm1527 = vweird.f32 %v1521
    %vm1528 = vmor %vm1526, %vm1527
    %v1529 = vsel %vm1528, %v1521, %v1525
    %v1530 = vand.u32 2147483647, %v1520
    %vm1531 = vcmp.eq.f32.partialorder %v1530, 8.507059e+37
    %v1532 = vand.u32 %v1520, 2147483648
    %v1533 = vor.u32 1.1754944e-38, %v1532
    %v1534 = vsel %vm1531, %v1533, %v1529
    %v1535 = vmul.f32 1.0, %v1534
    %v1536 = vtanh.pop %v1496
    %v1537 = vxor.u32 %v1497, 2147483648
    %v1538 = vmul.f32 %v1537, 1.442695
    %v1539 = vpow.pop %v1538
    %v1540 = vadd.f32 %v1539, 1.0
    %v1541 = vrcp.pop %v1540
    %v1542 = vmul.f32 %v1540, %v1541
    %v1543 = vsub.f32 1.0, %v1542
    %v1544 = vmul.f32 %v1541, %v1543
    %v1545 = vadd.f32 %v1541, %v1544
    %vm1546 = vweird.f32 %v1540
    %vm1547 = vweird.f32 %v1541
    %vm1548 = vmor %vm1546, %vm1547
    %v1549 = vsel %vm1548, %v1541, %v1545
    %v1550 = vand.u32 2147483647, %v1540
    %vm1551 = vcmp.eq.f32.partialorder %v1550, 8.507059e+37
    %v1552 = vand.u32 %v1540, 2147483648
    %v1553 = vor.u32 1.1754944e-38, %v1552
    %v1554 = vsel %vm1551, %v1553, %v1549
    %v1555 = vmul.f32 1.0, %v1554
    %v1556 = vmul.f32 %v1535, %v1431
    %v1557 = vmul.f32 %v1516, %v1536
    %v1558 = vadd.f32 %v1556, %v1557
    %v1559 = vtanh.pop %v1558
    %v1560 = vmul.f32 %v1555, %v1559
    %s1561 = smul.u32 6, 4
    %s1562 = smul.addr %s1561, 8
    %s1563 = scalar_lea.vmem [#allocation2], %s1562
    %v1564 = vld [vmem:[%s1563] sm:$0xff]
    %v1565 = vld [vmem:[%s1563 + $0x8] sm:$0xff]
    %v1566 = vld [vmem:[%s1563 + $0x10] sm:$0xff]
    %v1567 = vld [vmem:[%s1563 + $0x18] sm:$0xff]
    %v1568 = vpack.c.bf16 %v1560, %v1560
    %1569 = vmatpush.bf16.msra.mxu0 %v771
    %1570 = vmatpush.bf16.msra.mxu0 %v767
    %1571 = vmatpush.bf16.msra.mxu0 %v763
    %1572 = vmatpush.bf16.msra.mxu0 %v759
    %1573 = vmatpush.bf16.msra.mxu0 %v755
    %1574 = vmatpush.bf16.msra.mxu0 %v751
    %1575 = vmatpush.bf16.msra.mxu0 %v747
    %1576 = vmatpush.bf16.msra.mxu0 %v743
    %1577 = vmatmul.bf16.gmra.mxu0 %v1568
    %v1578 = vpop.f32.mrf.mxu0
    %v1579 = vadd.f32 0.0, %v1578
    %v1580 = vpop.f32.mrf.mxu0
    %1581 = vdwg.mxu0
    %1582 = vmatpush.bf16.msra.mxu0 %v772
    %1583 = vmatpush.bf16.msra.mxu0 %v768
    %1584 = vmatpush.bf16.msra.mxu0 %v764
    %1585 = vmatpush.bf16.msra.mxu0 %v760
    %1586 = vmatpush.bf16.msra.mxu0 %v756
    %1587 = vmatpush.bf16.msra.mxu0 %v752
    %1588 = vmatpush.bf16.msra.mxu0 %v748
    %1589 = vmatpush.bf16.msra.mxu0 %v744
    %1590 = vmatmul.bf16.gmra.mxu0 %v1568
    %v1591 = vpop.f32.mrf.mxu0
    %v1592 = vadd.f32 0.0, %v1591
    %v1593 = vpop.f32.mrf.mxu0
    %1594 = vdwg.mxu0
    %1595 = vmatpush.bf16.msra.mxu0 %v773
    %1596 = vmatpush.bf16.msra.mxu0 %v769
    %1597 = vmatpush.bf16.msra.mxu0 %v765
    %1598 = vmatpush.bf16.msra.mxu0 %v761
    %1599 = vmatpush.bf16.msra.mxu0 %v757
    %1600 = vmatpush.bf16.msra.mxu0 %v753
    %1601 = vmatpush.bf16.msra.mxu0 %v749
    %1602 = vmatpush.bf16.msra.mxu0 %v745
    %1603 = vmatmul.bf16.gmra.mxu0 %v1568
    %v1604 = vpop.f32.mrf.mxu0
    %v1605 = vadd.f32 0.0, %v1604
    %v1606 = vpop.f32.mrf.mxu0
    %1607 = vdwg.mxu0
    %1608 = vmatpush.bf16.msra.mxu0 %v774
    %1609 = vmatpush.bf16.msra.mxu0 %v770
    %1610 = vmatpush.bf16.msra.mxu0 %v766
    %1611 = vmatpush.bf16.msra.mxu0 %v762
    %1612 = vmatpush.bf16.msra.mxu0 %v758
    %1613 = vmatpush.bf16.msra.mxu0 %v754
    %1614 = vmatpush.bf16.msra.mxu0 %v750
    %1615 = vmatpush.bf16.msra.mxu0 %v746
    %1616 = vmatmul.bf16.gmra.mxu0 %v1568
    %v1617 = vpop.f32.mrf.mxu0
    %v1618 = vadd.f32 0.0, %v1617
    %v1619 = vpop.f32.mrf.mxu0
    %1620 = vdwg.mxu0
    %v1621 = vadd.f32 %v1564, %v1579
    %v1622 = vadd.f32 %v1565, %v1592
    %v1623 = vadd.f32 %v1566, %v1605
    %v1624 = vadd.f32 %v1567, %v1618
    %v1625 = vxor.u32 %v1621, 2147483648
    %v1626 = vmul.f32 %v1625, 1.442695
    %v1627 = vpow.pop %v1626
    %v1628 = vadd.f32 %v1627, 1.0
    %v1629 = vrcp.pop %v1628
    %v1630 = vmul.f32 %v1628, %v1629
    %v1631 = vsub.f32 1.0, %v1630
    %v1632 = vmul.f32 %v1629, %v1631
    %v1633 = vadd.f32 %v1629, %v1632
    %vm1634 = vweird.f32 %v1628
    %vm1635 = vweird.f32 %v1629
    %vm1636 = vmor %vm1634, %vm1635
    %v1637 = vsel %vm1636, %v1629, %v1633
    %v1638 = vand.u32 2147483647, %v1628
    %vm1639 = vcmp.eq.f32.partialorder %v1638, 8.507059e+37
    %v1640 = vand.u32 %v1628, 2147483648
    %v1641 = vor.u32 1.1754944e-38, %v1640
    %v1642 = vsel %vm1639, %v1641, %v1637
    %v1643 = vmul.f32 1.0, %v1642
    %v1644 = vxor.u32 %v1622, 2147483648
    %v1645 = vmul.f32 %v1644, 1.442695
    %v1646 = vpow.pop %v1645
    %v1647 = vadd.f32 %v1646, 1.0
    %v1648 = vrcp.pop %v1647
    %v1649 = vmul.f32 %v1647, %v1648
    %v1650 = vsub.f32 1.0, %v1649
    %v1651 = vmul.f32 %v1648, %v1650
    %v1652 = vadd.f32 %v1648, %v1651
    %vm1653 = vweird.f32 %v1647
    %vm1654 = vweird.f32 %v1648
    %vm1655 = vmor %vm1653, %vm1654
    %v1656 = vsel %vm1655, %v1648, %v1652
    %v1657 = vand.u32 2147483647, %v1647
    %vm1658 = vcmp.eq.f32.partialorder %v1657, 8.507059e+37
    %v1659 = vand.u32 %v1647, 2147483648
    %v1660 = vor.u32 1.1754944e-38, %v1659
    %v1661 = vsel %vm1658, %v1660, %v1656
    %v1662 = vmul.f32 1.0, %v1661
    %v1663 = vtanh.pop %v1623
    %v1664 = vxor.u32 %v1624, 2147483648
    %v1665 = vmul.f32 %v1664, 1.442695
    %v1666 = vpow.pop %v1665
    %v1667 = vadd.f32 %v1666, 1.0
    %v1668 = vrcp.pop %v1667
    %v1669 = vmul.f32 %v1667, %v1668
    %v1670 = vsub.f32 1.0, %v1669
    %v1671 = vmul.f32 %v1668, %v1670
    %v1672 = vadd.f32 %v1668, %v1671
    %vm1673 = vweird.f32 %v1667
    %vm1674 = vweird.f32 %v1668
    %vm1675 = vmor %vm1673, %vm1674
    %v1676 = vsel %vm1675, %v1668, %v1672
    %v1677 = vand.u32 2147483647, %v1667
    %vm1678 = vcmp.eq.f32.partialorder %v1677, 8.507059e+37
    %v1679 = vand.u32 %v1667, 2147483648
    %v1680 = vor.u32 1.1754944e-38, %v1679
    %v1681 = vsel %vm1678, %v1680, %v1676
    %v1682 = vmul.f32 1.0, %v1681
    %v1683 = vmul.f32 %v1662, %v1558
    %v1684 = vmul.f32 %v1643, %v1663
    %v1685 = vadd.f32 %v1683, %v1684
    %v1686 = vtanh.pop %v1685
    %v1687 = vmul.f32 %v1682, %v1686
    %s1688 = smul.u32 7, 4
    %s1689 = smul.addr %s1688, 8
    %s1690 = scalar_lea.vmem [#allocation2], %s1689
    %v1691 = vld [vmem:[%s1690] sm:$0xff]
    %v1692 = vld [vmem:[%s1690 + $0x8] sm:$0xff]
    %v1693 = vld [vmem:[%s1690 + $0x10] sm:$0xff]
    %v1694 = vld [vmem:[%s1690 + $0x18] sm:$0xff]
    %v1695 = vpack.c.bf16 %v1687, %v1687
    %1696 = vmatpush.bf16.msra.mxu0 %v771
    %1697 = vmatpush.bf16.msra.mxu0 %v767
    %1698 = vmatpush.bf16.msra.mxu0 %v763
    %1699 = vmatpush.bf16.msra.mxu0 %v759
    %1700 = vmatpush.bf16.msra.mxu0 %v755
    %1701 = vmatpush.bf16.msra.mxu0 %v751
    %1702 = vmatpush.bf16.msra.mxu0 %v747
    %1703 = vmatpush.bf16.msra.mxu0 %v743
    %1704 = vmatmul.bf16.gmra.mxu0 %v1695
    %v1705 = vpop.f32.mrf.mxu0
    %v1706 = vadd.f32 0.0, %v1705
    %v1707 = vpop.f32.mrf.mxu0
    %1708 = vdwg.mxu0
    %1709 = vmatpush.bf16.msra.mxu0 %v772
    %1710 = vmatpush.bf16.msra.mxu0 %v768
    %1711 = vmatpush.bf16.msra.mxu0 %v764
    %1712 = vmatpush.bf16.msra.mxu0 %v760
    %1713 = vmatpush.bf16.msra.mxu0 %v756
    %1714 = vmatpush.bf16.msra.mxu0 %v752
    %1715 = vmatpush.bf16.msra.mxu0 %v748
    %1716 = vmatpush.bf16.msra.mxu0 %v744
    %1717 = vmatmul.bf16.gmra.mxu0 %v1695
    %v1718 = vpop.f32.mrf.mxu0
    %v1719 = vadd.f32 0.0, %v1718
    %v1720 = vpop.f32.mrf.mxu0
    %1721 = vdwg.mxu0
    %1722 = vmatpush.bf16.msra.mxu0 %v773
    %1723 = vmatpush.bf16.msra.mxu0 %v769
    %1724 = vmatpush.bf16.msra.mxu0 %v765
    %1725 = vmatpush.bf16.msra.mxu0 %v761
    %1726 = vmatpush.bf16.msra.mxu0 %v757
    %1727 = vmatpush.bf16.msra.mxu0 %v753
    %1728 = vmatpush.bf16.msra.mxu0 %v749
    %1729 = vmatpush.bf16.msra.mxu0 %v745
    %1730 = vmatmul.bf16.gmra.mxu0 %v1695
    %v1731 = vpop.f32.mrf.mxu0
    %v1732 = vadd.f32 0.0, %v1731
    %v1733 = vpop.f32.mrf.mxu0
    %1734 = vdwg.mxu0
    %1735 = vmatpush.bf16.msra.mxu0 %v774
    %1736 = vmatpush.bf16.msra.mxu0 %v770
    %1737 = vmatpush.bf16.msra.mxu0 %v766
    %1738 = vmatpush.bf16.msra.mxu0 %v762
    %1739 = vmatpush.bf16.msra.mxu0 %v758
    %1740 = vmatpush.bf16.msra.mxu0 %v754
    %1741 = vmatpush.bf16.msra.mxu0 %v750
    %1742 = vmatpush.bf16.msra.mxu0 %v746
    %1743 = vmatmul.bf16.gmra.mxu0 %v1695
    %v1744 = vpop.f32.mrf.mxu0
    %v1745 = vadd.f32 0.0, %v1744
    %v1746 = vpop.f32.mrf.mxu0
    %1747 = vdwg.mxu0
    %v1748 = vadd.f32 %v1691, %v1706
    %v1749 = vadd.f32 %v1692, %v1719
    %v1750 = vadd.f32 %v1693, %v1732
    %v1751 = vadd.f32 %v1694, %v1745
    %v1752 = vxor.u32 %v1748, 2147483648
    %v1753 = vmul.f32 %v1752, 1.442695
    %v1754 = vpow.pop %v1753
    %v1755 = vadd.f32 %v1754, 1.0
    %v1756 = vrcp.pop %v1755
    %v1757 = vmul.f32 %v1755, %v1756
    %v1758 = vsub.f32 1.0, %v1757
    %v1759 = vmul.f32 %v1756, %v1758
    %v1760 = vadd.f32 %v1756, %v1759
    %vm1761 = vweird.f32 %v1755
    %vm1762 = vweird.f32 %v1756
    %vm1763 = vmor %vm1761, %vm1762
    %v1764 = vsel %vm1763, %v1756, %v1760
    %v1765 = vand.u32 2147483647, %v1755
    %vm1766 = vcmp.eq.f32.partialorder %v1765, 8.507059e+37
    %v1767 = vand.u32 %v1755, 2147483648
    %v1768 = vor.u32 1.1754944e-38, %v1767
    %v1769 = vsel %vm1766, %v1768, %v1764
    %v1770 = vmul.f32 1.0, %v1769
    %v1771 = vxor.u32 %v1749, 2147483648
    %v1772 = vmul.f32 %v1771, 1.442695
    %v1773 = vpow.pop %v1772
    %v1774 = vadd.f32 %v1773, 1.0
    %v1775 = vrcp.pop %v1774
    %v1776 = vmul.f32 %v1774, %v1775
    %v1777 = vsub.f32 1.0, %v1776
    %v1778 = vmul.f32 %v1775, %v1777
    %v1779 = vadd.f32 %v1775, %v1778
    %vm1780 = vweird.f32 %v1774
    %vm1781 = vweird.f32 %v1775
    %vm1782 = vmor %vm1780, %vm1781
    %v1783 = vsel %vm1782, %v1775, %v1779
    %v1784 = vand.u32 2147483647, %v1774
    %vm1785 = vcmp.eq.f32.partialorder %v1784, 8.507059e+37
    %v1786 = vand.u32 %v1774, 2147483648
    %v1787 = vor.u32 1.1754944e-38, %v1786
    %v1788 = vsel %vm1785, %v1787, %v1783
    %v1789 = vmul.f32 1.0, %v1788
    %v1790 = vtanh.pop %v1750
    %v1791 = vxor.u32 %v1751, 2147483648
    %v1792 = vmul.f32 %v1791, 1.442695
    %v1793 = vpow.pop %v1792
    %v1794 = vadd.f32 %v1793, 1.0
    %v1795 = vrcp.pop %v1794
    %v1796 = vmul.f32 %v1794, %v1795
    %v1797 = vsub.f32 1.0, %v1796
    %v1798 = vmul.f32 %v1795, %v1797
    %v1799 = vadd.f32 %v1795, %v1798
    %vm1800 = vweird.f32 %v1794
    %vm1801 = vweird.f32 %v1795
    %vm1802 = vmor %vm1800, %vm1801
    %v1803 = vsel %vm1802, %v1795, %v1799
    %v1804 = vand.u32 2147483647, %v1794
    %vm1805 = vcmp.eq.f32.partialorder %v1804, 8.507059e+37
    %v1806 = vand.u32 %v1794, 2147483648
    %v1807 = vor.u32 1.1754944e-38, %v1806
    %v1808 = vsel %vm1805, %v1807, %v1803
    %v1809 = vmul.f32 1.0, %v1808
    %v1810 = vmul.f32 %v1789, %v1685
    %v1811 = vmul.f32 %v1770, %v1790
    %v1812 = vadd.f32 %v1810, %v1811
    %v1813 = vtanh.pop %v1812
    %v1814 = vmul.f32 %v1809, %v1813
    %s1815 = smul.addr %s640, 8
    %s1816 = scalar_lea.vmem [#allocation3], %s1815
    %v1817 = vld [vmem:[%s1816] sm:$0xff]
    %v1818 = vld [vmem:[%s1816 + $0x8] sm:$0xff]
    %v1819 = vld [vmem:[%s1816 + $0x10] sm:$0xff]
    %v1820 = vld [vmem:[%s1816 + $0x18] sm:$0xff]
    %v1821 = vpack.c.bf16 %v1814, %v1814
    %v1854 = vunpack.c.l.b16 %v102
    %v1855 = vunpack.c.h.b16 %v102
    %v1856 = vunpack.c.l.b16 %v103
    %v1857 = vunpack.c.h.b16 %v103
    %v1858 = vunpack.c.l.b16 %v104
    %v1859 = vunpack.c.h.b16 %v104
    %v1860 = vunpack.c.l.b16 %v105
    %v1861 = vunpack.c.h.b16 %v105
    %v1862 = vunpack.c.l.b16 %v106
    %v1863 = vunpack.c.h.b16 %v106
    %v1864 = vunpack.c.l.b16 %v107
    %v1865 = vunpack.c.h.b16 %v107
    %v1866 = vunpack.c.l.b16 %v108
    %v1867 = vunpack.c.h.b16 %v108
    %v1868 = vunpack.c.l.b16 %v109
    %v1869 = vunpack.c.h.b16 %v109
    %v1870 = vunpack.c.l.b16 %v110
    %v1871 = vunpack.c.h.b16 %v110
    %v1872 = vunpack.c.l.b16 %v111
    %v1873 = vunpack.c.h.b16 %v111
    %v1874 = vunpack.c.l.b16 %v112
    %v1875 = vunpack.c.h.b16 %v112
    %v1876 = vunpack.c.l.b16 %v113
    %v1877 = vunpack.c.h.b16 %v113
    %v1878 = vunpack.c.l.b16 %v114
    %v1879 = vunpack.c.h.b16 %v114
    %v1880 = vunpack.c.l.b16 %v115
    %v1881 = vunpack.c.h.b16 %v115
    %v1882 = vunpack.c.l.b16 %v116
    %v1883 = vunpack.c.h.b16 %v116
    %v1884 = vunpack.c.l.b16 %v117
    %v1885 = vunpack.c.h.b16 %v117
    %v1886 = vunpack.c.l.b16 %v118
    %v1887 = vunpack.c.h.b16 %v118
    %v1888 = vunpack.c.l.b16 %v119
    %v1889 = vunpack.c.h.b16 %v119
    %v1890 = vunpack.c.l.b16 %v120
    %v1891 = vunpack.c.h.b16 %v120
    %v1892 = vunpack.c.l.b16 %v121
    %v1893 = vunpack.c.h.b16 %v121
    %v1894 = vunpack.c.l.b16 %v122
    %v1895 = vunpack.c.h.b16 %v122
    %v1896 = vunpack.c.l.b16 %v123
    %v1897 = vunpack.c.h.b16 %v123
    %v1898 = vunpack.c.l.b16 %v124
    %v1899 = vunpack.c.h.b16 %v124
    %v1900 = vunpack.c.l.b16 %v125
    %v1901 = vunpack.c.h.b16 %v125
    %v1902 = vunpack.c.l.b16 %v126
    %v1903 = vunpack.c.h.b16 %v126
    %v1904 = vunpack.c.l.b16 %v127
    %v1905 = vunpack.c.h.b16 %v127
    %v1906 = vunpack.c.l.b16 %v128
    %v1907 = vunpack.c.h.b16 %v128
    %v1908 = vunpack.c.l.b16 %v129
    %v1909 = vunpack.c.h.b16 %v129
    %v1910 = vunpack.c.l.b16 %v130
    %v1911 = vunpack.c.h.b16 %v130
    %v1912 = vunpack.c.l.b16 %v131
    %v1913 = vunpack.c.h.b16 %v131
    %v1914 = vunpack.c.l.b16 %v132
    %v1915 = vunpack.c.h.b16 %v132
    %v1916 = vunpack.c.l.b16 %v133
    %v1917 = vunpack.c.h.b16 %v133
    %v1918 = vpack.c.b16 %v1858, %v1854
    %v1919 = vpack.c.b16 %v1859, %v1855
    %v1920 = vpack.c.b16 %v1860, %v1856
    %v1921 = vpack.c.b16 %v1861, %v1857
    %v1922 = vpack.c.b16 %v1866, %v1862
    %v1923 = vpack.c.b16 %v1867, %v1863
    %v1924 = vpack.c.b16 %v1868, %v1864
    %v1925 = vpack.c.b16 %v1869, %v1865
    %v1926 = vpack.c.b16 %v1874, %v1870
    %v1927 = vpack.c.b16 %v1875, %v1871
    %v1928 = vpack.c.b16 %v1876, %v1872
    %v1929 = vpack.c.b16 %v1877, %v1873
    %v1930 = vpack.c.b16 %v1882, %v1878
    %v1931 = vpack.c.b16 %v1883, %v1879
    %v1932 = vpack.c.b16 %v1884, %v1880
    %v1933 = vpack.c.b16 %v1885, %v1881
    %v1934 = vpack.c.b16 %v1890, %v1886
    %v1935 = vpack.c.b16 %v1891, %v1887
    %v1936 = vpack.c.b16 %v1892, %v1888
    %v1937 = vpack.c.b16 %v1893, %v1889
    %v1938 = vpack.c.b16 %v1898, %v1894
    %v1939 = vpack.c.b16 %v1899, %v1895
    %v1940 = vpack.c.b16 %v1900, %v1896
    %v1941 = vpack.c.b16 %v1901, %v1897
    %v1942 = vpack.c.b16 %v1906, %v1902
    %v1943 = vpack.c.b16 %v1907, %v1903
    %v1944 = vpack.c.b16 %v1908, %v1904
    %v1945 = vpack.c.b16 %v1909, %v1905
    %v1946 = vpack.c.b16 %v1914, %v1910
    %v1947 = vpack.c.b16 %v1915, %v1911
    %v1948 = vpack.c.b16 %v1916, %v1912
    %v1949 = vpack.c.b16 %v1917, %v1913
    %1982 = vmatpush.bf16.msra.mxu0 %v1946
    %1983 = vmatpush.bf16.msra.mxu0 %v1942
    %1984 = vmatpush.bf16.msra.mxu0 %v1938
    %1985 = vmatpush.bf16.msra.mxu0 %v1934
    %1986 = vmatpush.bf16.msra.mxu0 %v1930
    %1987 = vmatpush.bf16.msra.mxu0 %v1926
    %1988 = vmatpush.bf16.msra.mxu0 %v1922
    %1989 = vmatpush.bf16.msra.mxu0 %v1918
    %1990 = vmatmul.bf16.gmra.mxu0 %v1821
    %v1991 = vpop.f32.mrf.mxu0
    %v1992 = vadd.f32 0.0, %v1991
    %v1993 = vpop.f32.mrf.mxu0
    %1994 = vdwg.mxu0
    %1995 = vmatpush.bf16.msra.mxu0 %v1947
    %1996 = vmatpush.bf16.msra.mxu0 %v1943
    %1997 = vmatpush.bf16.msra.mxu0 %v1939
    %1998 = vmatpush.bf16.msra.mxu0 %v1935
    %1999 = vmatpush.bf16.msra.mxu0 %v1931
    %2000 = vmatpush.bf16.msra.mxu0 %v1927
    %2001 = vmatpush.bf16.msra.mxu0 %v1923
    %2002 = vmatpush.bf16.msra.mxu0 %v1919
    %2003 = vmatmul.bf16.gmra.mxu0 %v1821
    %v2004 = vpop.f32.mrf.mxu0
    %v2005 = vadd.f32 0.0, %v2004
    %v2006 = vpop.f32.mrf.mxu0
    %2007 = vdwg.mxu0
    %2008 = vmatpush.bf16.msra.mxu0 %v1948
    %2009 = vmatpush.bf16.msra.mxu0 %v1944
    %2010 = vmatpush.bf16.msra.mxu0 %v1940
    %2011 = vmatpush.bf16.msra.mxu0 %v1936
    %2012 = vmatpush.bf16.msra.mxu0 %v1932
    %2013 = vmatpush.bf16.msra.mxu0 %v1928
    %2014 = vmatpush.bf16.msra.mxu0 %v1924
    %2015 = vmatpush.bf16.msra.mxu0 %v1920
    %2016 = vmatmul.bf16.gmra.mxu0 %v1821
    %v2017 = vpop.f32.mrf.mxu0
    %v2018 = vadd.f32 0.0, %v2017
    %v2019 = vpop.f32.mrf.mxu0
    %2020 = vdwg.mxu0
    %2021 = vmatpush.bf16.msra.mxu0 %v1949
    %2022 = vmatpush.bf16.msra.mxu0 %v1945
    %2023 = vmatpush.bf16.msra.mxu0 %v1941
    %2024 = vmatpush.bf16.msra.mxu0 %v1937
    %2025 = vmatpush.bf16.msra.mxu0 %v1933
    %2026 = vmatpush.bf16.msra.mxu0 %v1929
    %2027 = vmatpush.bf16.msra.mxu0 %v1925
    %2028 = vmatpush.bf16.msra.mxu0 %v1921
    %2029 = vmatmul.bf16.gmra.mxu0 %v1821
    %v2030 = vpop.f32.mrf.mxu0
    %v2031 = vadd.f32 0.0, %v2030
    %v2032 = vpop.f32.mrf.mxu0
    %2033 = vdwg.mxu0
    %v2034 = vadd.f32 %v1817, %v1992
    %v2035 = vadd.f32 %v1818, %v2005
    %v2036 = vadd.f32 %v1819, %v2018
    %v2037 = vadd.f32 %v1820, %v2031
    %v2038 = vxor.u32 %v2034, 2147483648
    %v2039 = vmul.f32 %v2038, 1.442695
    %v2040 = vpow.pop %v2039
    %v2041 = vadd.f32 %v2040, 1.0
    %v2042 = vrcp.pop %v2041
    %v2043 = vmul.f32 %v2041, %v2042
    %v2044 = vsub.f32 1.0, %v2043
    %v2045 = vmul.f32 %v2042, %v2044
    %v2046 = vadd.f32 %v2042, %v2045
    %vm2047 = vweird.f32 %v2041
    %vm2048 = vweird.f32 %v2042
    %vm2049 = vmor %vm2047, %vm2048
    %v2050 = vsel %vm2049, %v2042, %v2046
    %v2051 = vand.u32 2147483647, %v2041
    %vm2052 = vcmp.eq.f32.partialorder %v2051, 8.507059e+37
    %v2053 = vand.u32 %v2041, 2147483648
    %v2054 = vor.u32 1.1754944e-38, %v2053
    %v2055 = vsel %vm2052, %v2054, %v2050
    %v2056 = vmul.f32 1.0, %v2055
    %v2057 = vxor.u32 %v2035, 2147483648
    %v2058 = vmul.f32 %v2057, 1.442695
    %v2059 = vpow.pop %v2058
    %v2060 = vadd.f32 %v2059, 1.0
    %v2061 = vrcp.pop %v2060
    %v2062 = vmul.f32 %v2060, %v2061
    %v2063 = vsub.f32 1.0, %v2062
    %v2064 = vmul.f32 %v2061, %v2063
    %v2065 = vadd.f32 %v2061, %v2064
    %vm2066 = vweird.f32 %v2060
    %vm2067 = vweird.f32 %v2061
    %vm2068 = vmor %vm2066, %vm2067
    %v2069 = vsel %vm2068, %v2061, %v2065
    %v2070 = vand.u32 2147483647, %v2060
    %vm2071 = vcmp.eq.f32.partialorder %v2070, 8.507059e+37
    %v2072 = vand.u32 %v2060, 2147483648
    %v2073 = vor.u32 1.1754944e-38, %v2072
    %v2074 = vsel %vm2071, %v2073, %v2069
    %v2075 = vmul.f32 1.0, %v2074
    %v2076 = vtanh.pop %v2036
    %v2077 = vxor.u32 %v2037, 2147483648
    %v2078 = vmul.f32 %v2077, 1.442695
    %v2079 = vpow.pop %v2078
    %v2080 = vadd.f32 %v2079, 1.0
    %v2081 = vrcp.pop %v2080
    %v2082 = vmul.f32 %v2080, %v2081
    %v2083 = vsub.f32 1.0, %v2082
    %v2084 = vmul.f32 %v2081, %v2083
    %v2085 = vadd.f32 %v2081, %v2084
    %vm2086 = vweird.f32 %v2080
    %vm2087 = vweird.f32 %v2081
    %vm2088 = vmor %vm2086, %vm2087
    %v2089 = vsel %vm2088, %v2081, %v2085
    %v2090 = vand.u32 2147483647, %v2080
    %vm2091 = vcmp.eq.f32.partialorder %v2090, 8.507059e+37
    %v2092 = vand.u32 %v2080, 2147483648
    %v2093 = vor.u32 1.1754944e-38, %v2092
    %v2094 = vsel %vm2091, %v2093, %v2089
    %v2095 = vmul.f32 1.0, %v2094
    %v2096 = vmul.f32 %v2075, %v1812
    %v2097 = vmul.f32 %v2056, %v2076
    %v2098 = vadd.f32 %v2096, %v2097
    %v2099 = vtanh.pop %v2098
    %v2100 = vmul.f32 %v2095, %v2099
    %2101 = vst [vmem:[#allocation4] sm:$0xff] %v2100
    %s2102 = smul.addr %s926, 8
    %s2103 = scalar_lea.vmem [#allocation3], %s2102
    %v2104 = vld [vmem:[%s2103] sm:$0xff]
    %v2105 = vld [vmem:[%s2103 + $0x8] sm:$0xff]
    %v2106 = vld [vmem:[%s2103 + $0x10] sm:$0xff]
    %v2107 = vld [vmem:[%s2103 + $0x18] sm:$0xff]
    %v2108 = vpack.c.bf16 %v2100, %v2100
    %2109 = vmatpush.bf16.msra.mxu0 %v1946
    %2110 = vmatpush.bf16.msra.mxu0 %v1942
    %2111 = vmatpush.bf16.msra.mxu0 %v1938
    %2112 = vmatpush.bf16.msra.mxu0 %v1934
    %2113 = vmatpush.bf16.msra.mxu0 %v1930
    %2114 = vmatpush.bf16.msra.mxu0 %v1926
    %2115 = vmatpush.bf16.msra.mxu0 %v1922
    %2116 = vmatpush.bf16.msra.mxu0 %v1918
    %2117 = vmatmul.bf16.gmra.mxu0 %v2108
    %v2118 = vpop.f32.mrf.mxu0
    %v2119 = vadd.f32 0.0, %v2118
    %v2120 = vpop.f32.mrf.mxu0
    %2121 = vdwg.mxu0
    %2122 = vmatpush.bf16.msra.mxu0 %v1947
    %2123 = vmatpush.bf16.msra.mxu0 %v1943
    %2124 = vmatpush.bf16.msra.mxu0 %v1939
    %2125 = vmatpush.bf16.msra.mxu0 %v1935
    %2126 = vmatpush.bf16.msra.mxu0 %v1931
    %2127 = vmatpush.bf16.msra.mxu0 %v1927
    %2128 = vmatpush.bf16.msra.mxu0 %v1923
    %2129 = vmatpush.bf16.msra.mxu0 %v1919
    %2130 = vmatmul.bf16.gmra.mxu0 %v2108
    %v2131 = vpop.f32.mrf.mxu0
    %v2132 = vadd.f32 0.0, %v2131
    %v2133 = vpop.f32.mrf.mxu0
    %2134 = vdwg.mxu0
    %2135 = vmatpush.bf16.msra.mxu0 %v1948
    %2136 = vmatpush.bf16.msra.mxu0 %v1944
    %2137 = vmatpush.bf16.msra.mxu0 %v1940
    %2138 = vmatpush.bf16.msra.mxu0 %v1936
    %2139 = vmatpush.bf16.msra.mxu0 %v1932
    %2140 = vmatpush.bf16.msra.mxu0 %v1928
    %2141 = vmatpush.bf16.msra.mxu0 %v1924
    %2142 = vmatpush.bf16.msra.mxu0 %v1920
    %2143 = vmatmul.bf16.gmra.mxu0 %v2108
    %v2144 = vpop.f32.mrf.mxu0
    %v2145 = vadd.f32 0.0, %v2144
    %v2146 = vpop.f32.mrf.mxu0
    %2147 = vdwg.mxu0
    %2148 = vmatpush.bf16.msra.mxu0 %v1949
    %2149 = vmatpush.bf16.msra.mxu0 %v1945
    %2150 = vmatpush.bf16.msra.mxu0 %v1941
    %2151 = vmatpush.bf16.msra.mxu0 %v1937
    %2152 = vmatpush.bf16.msra.mxu0 %v1933
    %2153 = vmatpush.bf16.msra.mxu0 %v1929
    %2154 = vmatpush.bf16.msra.mxu0 %v1925
    %2155 = vmatpush.bf16.msra.mxu0 %v1921
    %2156 = vmatmul.bf16.gmra.mxu0 %v2108
    %v2157 = vpop.f32.mrf.mxu0
    %v2158 = vadd.f32 0.0, %v2157
    %v2159 = vpop.f32.mrf.mxu0
    %2160 = vdwg.mxu0
    %v2161 = vadd.f32 %v2104, %v2119
    %v2162 = vadd.f32 %v2105, %v2132
    %v2163 = vadd.f32 %v2106, %v2145
    %v2164 = vadd.f32 %v2107, %v2158
    %v2165 = vxor.u32 %v2161, 2147483648
    %v2166 = vmul.f32 %v2165, 1.442695
    %v2167 = vpow.pop %v2166
    %v2168 = vadd.f32 %v2167, 1.0
    %v2169 = vrcp.pop %v2168
    %v2170 = vmul.f32 %v2168, %v2169
    %v2171 = vsub.f32 1.0, %v2170
    %v2172 = vmul.f32 %v2169, %v2171
    %v2173 = vadd.f32 %v2169, %v2172
    %vm2174 = vweird.f32 %v2168
    %vm2175 = vweird.f32 %v2169
    %vm2176 = vmor %vm2174, %vm2175
    %v2177 = vsel %vm2176, %v2169, %v2173
    %v2178 = vand.u32 2147483647, %v2168
    %vm2179 = vcmp.eq.f32.partialorder %v2178, 8.507059e+37
    %v2180 = vand.u32 %v2168, 2147483648
    %v2181 = vor.u32 1.1754944e-38, %v2180
    %v2182 = vsel %vm2179, %v2181, %v2177
    %v2183 = vmul.f32 1.0, %v2182
    %v2184 = vxor.u32 %v2162, 2147483648
    %v2185 = vmul.f32 %v2184, 1.442695
    %v2186 = vpow.pop %v2185
    %v2187 = vadd.f32 %v2186, 1.0
    %v2188 = vrcp.pop %v2187
    %v2189 = vmul.f32 %v2187, %v2188
    %v2190 = vsub.f32 1.0, %v2189
    %v2191 = vmul.f32 %v2188, %v2190
    %v2192 = vadd.f32 %v2188, %v2191
    %vm2193 = vweird.f32 %v2187
    %vm2194 = vweird.f32 %v2188
    %vm2195 = vmor %vm2193, %vm2194
    %v2196 = vsel %vm2195, %v2188, %v2192
    %v2197 = vand.u32 2147483647, %v2187
    %vm2198 = vcmp.eq.f32.partialorder %v2197, 8.507059e+37
    %v2199 = vand.u32 %v2187, 2147483648
    %v2200 = vor.u32 1.1754944e-38, %v2199
    %v2201 = vsel %vm2198, %v2200, %v2196
    %v2202 = vmul.f32 1.0, %v2201
    %v2203 = vtanh.pop %v2163
    %v2204 = vxor.u32 %v2164, 2147483648
    %v2205 = vmul.f32 %v2204, 1.442695
    %v2206 = vpow.pop %v2205
    %v2207 = vadd.f32 %v2206, 1.0
    %v2208 = vrcp.pop %v2207
    %v2209 = vmul.f32 %v2207, %v2208
    %v2210 = vsub.f32 1.0, %v2209
    %v2211 = vmul.f32 %v2208, %v2210
    %v2212 = vadd.f32 %v2208, %v2211
    %vm2213 = vweird.f32 %v2207
    %vm2214 = vweird.f32 %v2208
    %vm2215 = vmor %vm2213, %vm2214
    %v2216 = vsel %vm2215, %v2208, %v2212
    %v2217 = vand.u32 2147483647, %v2207
    %vm2218 = vcmp.eq.f32.partialorder %v2217, 8.507059e+37
    %v2219 = vand.u32 %v2207, 2147483648
    %v2220 = vor.u32 1.1754944e-38, %v2219
    %v2221 = vsel %vm2218, %v2220, %v2216
    %v2222 = vmul.f32 1.0, %v2221
    %v2223 = vmul.f32 %v2202, %v2098
    %v2224 = vmul.f32 %v2183, %v2203
    %v2225 = vadd.f32 %v2223, %v2224
    %v2226 = vtanh.pop %v2225
    %v2227 = vmul.f32 %v2222, %v2226
    %s2228 = scalar_lea.vmem [#allocation4], 8
    %2229 = vst [vmem:[%s2228] sm:$0xff] %v2227
    %s2230 = smul.addr %s1053, 8
    %s2231 = scalar_lea.vmem [#allocation3], %s2230
    %v2232 = vld [vmem:[%s2231] sm:$0xff]
    %v2233 = vld [vmem:[%s2231 + $0x8] sm:$0xff]
    %v2234 = vld [vmem:[%s2231 + $0x10] sm:$0xff]
    %v2235 = vld [vmem:[%s2231 + $0x18] sm:$0xff]
    %v2236 = vpack.c.bf16 %v2227, %v2227
    %2237 = vmatpush.bf16.msra.mxu0 %v1946
    %2238 = vmatpush.bf16.msra.mxu0 %v1942
    %2239 = vmatpush.bf16.msra.mxu0 %v1938
    %2240 = vmatpush.bf16.msra.mxu0 %v1934
    %2241 = vmatpush.bf16.msra.mxu0 %v1930
    %2242 = vmatpush.bf16.msra.mxu0 %v1926
    %2243 = vmatpush.bf16.msra.mxu0 %v1922
    %2244 = vmatpush.bf16.msra.mxu0 %v1918
    %2245 = vmatmul.bf16.gmra.mxu0 %v2236
    %v2246 = vpop.f32.mrf.mxu0
    %v2247 = vadd.f32 0.0, %v2246
    %v2248 = vpop.f32.mrf.mxu0
    %2249 = vdwg.mxu0
    %2250 = vmatpush.bf16.msra.mxu0 %v1947
    %2251 = vmatpush.bf16.msra.mxu0 %v1943
    %2252 = vmatpush.bf16.msra.mxu0 %v1939
    %2253 = vmatpush.bf16.msra.mxu0 %v1935
    %2254 = vmatpush.bf16.msra.mxu0 %v1931
    %2255 = vmatpush.bf16.msra.mxu0 %v1927
    %2256 = vmatpush.bf16.msra.mxu0 %v1923
    %2257 = vmatpush.bf16.msra.mxu0 %v1919
    %2258 = vmatmul.bf16.gmra.mxu0 %v2236
    %v2259 = vpop.f32.mrf.mxu0
    %v2260 = vadd.f32 0.0, %v2259
    %v2261 = vpop.f32.mrf.mxu0
    %2262 = vdwg.mxu0
    %2263 = vmatpush.bf16.msra.mxu0 %v1948
    %2264 = vmatpush.bf16.msra.mxu0 %v1944
    %2265 = vmatpush.bf16.msra.mxu0 %v1940
    %2266 = vmatpush.bf16.msra.mxu0 %v1936
    %2267 = vmatpush.bf16.msra.mxu0 %v1932
    %2268 = vmatpush.bf16.msra.mxu0 %v1928
    %2269 = vmatpush.bf16.msra.mxu0 %v1924
    %2270 = vmatpush.bf16.msra.mxu0 %v1920
    %2271 = vmatmul.bf16.gmra.mxu0 %v2236
    %v2272 = vpop.f32.mrf.mxu0
    %v2273 = vadd.f32 0.0, %v2272
    %v2274 = vpop.f32.mrf.mxu0
    %2275 = vdwg.mxu0
    %2276 = vmatpush.bf16.msra.mxu0 %v1949
    %2277 = vmatpush.bf16.msra.mxu0 %v1945
    %2278 = vmatpush.bf16.msra.mxu0 %v1941
    %2279 = vmatpush.bf16.msra.mxu0 %v1937
    %2280 = vmatpush.bf16.msra.mxu0 %v1933
    %2281 = vmatpush.bf16.msra.mxu0 %v1929
    %2282 = vmatpush.bf16.msra.mxu0 %v1925
    %2283 = vmatpush.bf16.msra.mxu0 %v1921
    %2284 = vmatmul.bf16.gmra.mxu0 %v2236
    %v2285 = vpop.f32.mrf.mxu0
    %v2286 = vadd.f32 0.0, %v2285
    %v2287 = vpop.f32.mrf.mxu0
    %2288 = vdwg.mxu0
    %v2289 = vadd.f32 %v2232, %v2247
    %v2290 = vadd.f32 %v2233, %v2260
    %v2291 = vadd.f32 %v2234, %v2273
    %v2292 = vadd.f32 %v2235, %v2286
    %v2293 = vxor.u32 %v2289, 2147483648
    %v2294 = vmul.f32 %v2293, 1.442695
    %v2295 = vpow.pop %v2294
    %v2296 = vadd.f32 %v2295, 1.0
    %v2297 = vrcp.pop %v2296
    %v2298 = vmul.f32 %v2296, %v2297
    %v2299 = vsub.f32 1.0, %v2298
    %v2300 = vmul.f32 %v2297, %v2299
    %v2301 = vadd.f32 %v2297, %v2300
    %vm2302 = vweird.f32 %v2296
    %vm2303 = vweird.f32 %v2297
    %vm2304 = vmor %vm2302, %vm2303
    %v2305 = vsel %vm2304, %v2297, %v2301
    %v2306 = vand.u32 2147483647, %v2296
    %vm2307 = vcmp.eq.f32.partialorder %v2306, 8.507059e+37
    %v2308 = vand.u32 %v2296, 2147483648
    %v2309 = vor.u32 1.1754944e-38, %v2308
    %v2310 = vsel %vm2307, %v2309, %v2305
    %v2311 = vmul.f32 1.0, %v2310
    %v2312 = vxor.u32 %v2290, 2147483648
    %v2313 = vmul.f32 %v2312, 1.442695
    %v2314 = vpow.pop %v2313
    %v2315 = vadd.f32 %v2314, 1.0
    %v2316 = vrcp.pop %v2315
    %v2317 = vmul.f32 %v2315, %v2316
    %v2318 = vsub.f32 1.0, %v2317
    %v2319 = vmul.f32 %v2316, %v2318
    %v2320 = vadd.f32 %v2316, %v2319
    %vm2321 = vweird.f32 %v2315
    %vm2322 = vweird.f32 %v2316
    %vm2323 = vmor %vm2321, %vm2322
    %v2324 = vsel %vm2323, %v2316, %v2320
    %v2325 = vand.u32 2147483647, %v2315
    %vm2326 = vcmp.eq.f32.partialorder %v2325, 8.507059e+37
    %v2327 = vand.u32 %v2315, 2147483648
    %v2328 = vor.u32 1.1754944e-38, %v2327
    %v2329 = vsel %vm2326, %v2328, %v2324
    %v2330 = vmul.f32 1.0, %v2329
    %v2331 = vtanh.pop %v2291
    %v2332 = vxor.u32 %v2292, 2147483648
    %v2333 = vmul.f32 %v2332, 1.442695
    %v2334 = vpow.pop %v2333
    %v2335 = vadd.f32 %v2334, 1.0
    %v2336 = vrcp.pop %v2335
    %v2337 = vmul.f32 %v2335, %v2336
    %v2338 = vsub.f32 1.0, %v2337
    %v2339 = vmul.f32 %v2336, %v2338
    %v2340 = vadd.f32 %v2336, %v2339
    %vm2341 = vweird.f32 %v2335
    %vm2342 = vweird.f32 %v2336
    %vm2343 = vmor %vm2341, %vm2342
    %v2344 = vsel %vm2343, %v2336, %v2340
    %v2345 = vand.u32 2147483647, %v2335
    %vm2346 = vcmp.eq.f32.partialorder %v2345, 8.507059e+37
    %v2347 = vand.u32 %v2335, 2147483648
    %v2348 = vor.u32 1.1754944e-38, %v2347
    %v2349 = vsel %vm2346, %v2348, %v2344
    %v2350 = vmul.f32 1.0, %v2349
    %v2351 = vmul.f32 %v2330, %v2225
    %v2352 = vmul.f32 %v2311, %v2331
    %v2353 = vadd.f32 %v2351, %v2352
    %v2354 = vtanh.pop %v2353
    %v2355 = vmul.f32 %v2350, %v2354
    %s2356 = scalar_lea.vmem [#allocation4], 16
    %2357 = vst [vmem:[%s2356] sm:$0xff] %v2355
    %s2358 = smul.addr %s1180, 8
    %s2359 = scalar_lea.vmem [#allocation3], %s2358
    %v2360 = vld [vmem:[%s2359] sm:$0xff]
    %v2361 = vld [vmem:[%s2359 + $0x8] sm:$0xff]
    %v2362 = vld [vmem:[%s2359 + $0x10] sm:$0xff]
    %v2363 = vld [vmem:[%s2359 + $0x18] sm:$0xff]
    %v2364 = vpack.c.bf16 %v2355, %v2355
    %2365 = vmatpush.bf16.msra.mxu0 %v1946
    %2366 = vmatpush.bf16.msra.mxu0 %v1942
    %2367 = vmatpush.bf16.msra.mxu0 %v1938
    %2368 = vmatpush.bf16.msra.mxu0 %v1934
    %2369 = vmatpush.bf16.msra.mxu0 %v1930
    %2370 = vmatpush.bf16.msra.mxu0 %v1926
    %2371 = vmatpush.bf16.msra.mxu0 %v1922
    %2372 = vmatpush.bf16.msra.mxu0 %v1918
    %2373 = vmatmul.bf16.gmra.mxu0 %v2364
    %v2374 = vpop.f32.mrf.mxu0
    %v2375 = vadd.f32 0.0, %v2374
    %v2376 = vpop.f32.mrf.mxu0
    %2377 = vdwg.mxu0
    %2378 = vmatpush.bf16.msra.mxu0 %v1947
    %2379 = vmatpush.bf16.msra.mxu0 %v1943
    %2380 = vmatpush.bf16.msra.mxu0 %v1939
    %2381 = vmatpush.bf16.msra.mxu0 %v1935
    %2382 = vmatpush.bf16.msra.mxu0 %v1931
    %2383 = vmatpush.bf16.msra.mxu0 %v1927
    %2384 = vmatpush.bf16.msra.mxu0 %v1923
    %2385 = vmatpush.bf16.msra.mxu0 %v1919
    %2386 = vmatmul.bf16.gmra.mxu0 %v2364
    %v2387 = vpop.f32.mrf.mxu0
    %v2388 = vadd.f32 0.0, %v2387
    %v2389 = vpop.f32.mrf.mxu0
    %2390 = vdwg.mxu0
    %2391 = vmatpush.bf16.msra.mxu0 %v1948
    %2392 = vmatpush.bf16.msra.mxu0 %v1944
    %2393 = vmatpush.bf16.msra.mxu0 %v1940
    %2394 = vmatpush.bf16.msra.mxu0 %v1936
    %2395 = vmatpush.bf16.msra.mxu0 %v1932
    %2396 = vmatpush.bf16.msra.mxu0 %v1928
    %2397 = vmatpush.bf16.msra.mxu0 %v1924
    %2398 = vmatpush.bf16.msra.mxu0 %v1920
    %2399 = vmatmul.bf16.gmra.mxu0 %v2364
    %v2400 = vpop.f32.mrf.mxu0
    %v2401 = vadd.f32 0.0, %v2400
    %v2402 = vpop.f32.mrf.mxu0
    %2403 = vdwg.mxu0
    %2404 = vmatpush.bf16.msra.mxu0 %v1949
    %2405 = vmatpush.bf16.msra.mxu0 %v1945
    %2406 = vmatpush.bf16.msra.mxu0 %v1941
    %2407 = vmatpush.bf16.msra.mxu0 %v1937
    %2408 = vmatpush.bf16.msra.mxu0 %v1933
    %2409 = vmatpush.bf16.msra.mxu0 %v1929
    %2410 = vmatpush.bf16.msra.mxu0 %v1925
    %2411 = vmatpush.bf16.msra.mxu0 %v1921
    %2412 = vmatmul.bf16.gmra.mxu0 %v2364
    %v2413 = vpop.f32.mrf.mxu0
    %v2414 = vadd.f32 0.0, %v2413
    %v2415 = vpop.f32.mrf.mxu0
    %2416 = vdwg.mxu0
    %v2417 = vadd.f32 %v2360, %v2375
    %v2418 = vadd.f32 %v2361, %v2388
    %v2419 = vadd.f32 %v2362, %v2401
    %v2420 = vadd.f32 %v2363, %v2414
    %v2421 = vxor.u32 %v2417, 2147483648
    %v2422 = vmul.f32 %v2421, 1.442695
    %v2423 = vpow.pop %v2422
    %v2424 = vadd.f32 %v2423, 1.0
    %v2425 = vrcp.pop %v2424
    %v2426 = vmul.f32 %v2424, %v2425
    %v2427 = vsub.f32 1.0, %v2426
    %v2428 = vmul.f32 %v2425, %v2427
    %v2429 = vadd.f32 %v2425, %v2428
    %vm2430 = vweird.f32 %v2424
    %vm2431 = vweird.f32 %v2425
    %vm2432 = vmor %vm2430, %vm2431
    %v2433 = vsel %vm2432, %v2425, %v2429
    %v2434 = vand.u32 2147483647, %v2424
    %vm2435 = vcmp.eq.f32.partialorder %v2434, 8.507059e+37
    %v2436 = vand.u32 %v2424, 2147483648
    %v2437 = vor.u32 1.1754944e-38, %v2436
    %v2438 = vsel %vm2435, %v2437, %v2433
    %v2439 = vmul.f32 1.0, %v2438
    %v2440 = vxor.u32 %v2418, 2147483648
    %v2441 = vmul.f32 %v2440, 1.442695
    %v2442 = vpow.pop %v2441
    %v2443 = vadd.f32 %v2442, 1.0
    %v2444 = vrcp.pop %v2443
    %v2445 = vmul.f32 %v2443, %v2444
    %v2446 = vsub.f32 1.0, %v2445
    %v2447 = vmul.f32 %v2444, %v2446
    %v2448 = vadd.f32 %v2444, %v2447
    %vm2449 = vweird.f32 %v2443
    %vm2450 = vweird.f32 %v2444
    %vm2451 = vmor %vm2449, %vm2450
    %v2452 = vsel %vm2451, %v2444, %v2448
    %v2453 = vand.u32 2147483647, %v2443
    %vm2454 = vcmp.eq.f32.partialorder %v2453, 8.507059e+37
    %v2455 = vand.u32 %v2443, 2147483648
    %v2456 = vor.u32 1.1754944e-38, %v2455
    %v2457 = vsel %vm2454, %v2456, %v2452
    %v2458 = vmul.f32 1.0, %v2457
    %v2459 = vtanh.pop %v2419
    %v2460 = vxor.u32 %v2420, 2147483648
    %v2461 = vmul.f32 %v2460, 1.442695
    %v2462 = vpow.pop %v2461
    %v2463 = vadd.f32 %v2462, 1.0
    %v2464 = vrcp.pop %v2463
    %v2465 = vmul.f32 %v2463, %v2464
    %v2466 = vsub.f32 1.0, %v2465
    %v2467 = vmul.f32 %v2464, %v2466
    %v2468 = vadd.f32 %v2464, %v2467
    %vm2469 = vweird.f32 %v2463
    %vm2470 = vweird.f32 %v2464
    %vm2471 = vmor %vm2469, %vm2470
    %v2472 = vsel %vm2471, %v2464, %v2468
    %v2473 = vand.u32 2147483647, %v2463
    %vm2474 = vcmp.eq.f32.partialorder %v2473, 8.507059e+37
    %v2475 = vand.u32 %v2463, 2147483648
    %v2476 = vor.u32 1.1754944e-38, %v2475
    %v2477 = vsel %vm2474, %v2476, %v2472
    %v2478 = vmul.f32 1.0, %v2477
    %v2479 = vmul.f32 %v2458, %v2353
    %v2480 = vmul.f32 %v2439, %v2459
    %v2481 = vadd.f32 %v2479, %v2480
    %v2482 = vtanh.pop %v2481
    %v2483 = vmul.f32 %v2478, %v2482
    %s2484 = scalar_lea.vmem [#allocation4], 24
    %2485 = vst [vmem:[%s2484] sm:$0xff] %v2483
    %s2486 = smul.addr %s1307, 8
    %s2487 = scalar_lea.vmem [#allocation3], %s2486
    %v2488 = vld [vmem:[%s2487] sm:$0xff]
    %v2489 = vld [vmem:[%s2487 + $0x8] sm:$0xff]
    %v2490 = vld [vmem:[%s2487 + $0x10] sm:$0xff]
    %v2491 = vld [vmem:[%s2487 + $0x18] sm:$0xff]
    %v2492 = vpack.c.bf16 %v2483, %v2483
    %2493 = vmatpush.bf16.msra.mxu0 %v1946
    %2494 = vmatpush.bf16.msra.mxu0 %v1942
    %2495 = vmatpush.bf16.msra.mxu0 %v1938
    %2496 = vmatpush.bf16.msra.mxu0 %v1934
    %2497 = vmatpush.bf16.msra.mxu0 %v1930
    %2498 = vmatpush.bf16.msra.mxu0 %v1926
    %2499 = vmatpush.bf16.msra.mxu0 %v1922
    %2500 = vmatpush.bf16.msra.mxu0 %v1918
    %2501 = vmatmul.bf16.gmra.mxu0 %v2492
    %v2502 = vpop.f32.mrf.mxu0
    %v2503 = vadd.f32 0.0, %v2502
    %v2504 = vpop.f32.mrf.mxu0
    %2505 = vdwg.mxu0
    %2506 = vmatpush.bf16.msra.mxu0 %v1947
    %2507 = vmatpush.bf16.msra.mxu0 %v1943
    %2508 = vmatpush.bf16.msra.mxu0 %v1939
    %2509 = vmatpush.bf16.msra.mxu0 %v1935
    %2510 = vmatpush.bf16.msra.mxu0 %v1931
    %2511 = vmatpush.bf16.msra.mxu0 %v1927
    %2512 = vmatpush.bf16.msra.mxu0 %v1923
    %2513 = vmatpush.bf16.msra.mxu0 %v1919
    %2514 = vmatmul.bf16.gmra.mxu0 %v2492
    %v2515 = vpop.f32.mrf.mxu0
    %v2516 = vadd.f32 0.0, %v2515
    %v2517 = vpop.f32.mrf.mxu0
    %2518 = vdwg.mxu0
    %2519 = vmatpush.bf16.msra.mxu0 %v1948
    %2520 = vmatpush.bf16.msra.mxu0 %v1944
    %2521 = vmatpush.bf16.msra.mxu0 %v1940
    %2522 = vmatpush.bf16.msra.mxu0 %v1936
    %2523 = vmatpush.bf16.msra.mxu0 %v1932
    %2524 = vmatpush.bf16.msra.mxu0 %v1928
    %2525 = vmatpush.bf16.msra.mxu0 %v1924
    %2526 = vmatpush.bf16.msra.mxu0 %v1920
    %2527 = vmatmul.bf16.gmra.mxu0 %v2492
    %v2528 = vpop.f32.mrf.mxu0
    %v2529 = vadd.f32 0.0, %v2528
    %v2530 = vpop.f32.mrf.mxu0
    %2531 = vdwg.mxu0
    %2532 = vmatpush.bf16.msra.mxu0 %v1949
    %2533 = vmatpush.bf16.msra.mxu0 %v1945
    %2534 = vmatpush.bf16.msra.mxu0 %v1941
    %2535 = vmatpush.bf16.msra.mxu0 %v1937
    %2536 = vmatpush.bf16.msra.mxu0 %v1933
    %2537 = vmatpush.bf16.msra.mxu0 %v1929
    %2538 = vmatpush.bf16.msra.mxu0 %v1925
    %2539 = vmatpush.bf16.msra.mxu0 %v1921
    %2540 = vmatmul.bf16.gmra.mxu0 %v2492
    %v2541 = vpop.f32.mrf.mxu0
    %v2542 = vadd.f32 0.0, %v2541
    %v2543 = vpop.f32.mrf.mxu0
    %2544 = vdwg.mxu0
    %v2545 = vadd.f32 %v2488, %v2503
    %v2546 = vadd.f32 %v2489, %v2516
    %v2547 = vadd.f32 %v2490, %v2529
    %v2548 = vadd.f32 %v2491, %v2542
    %v2549 = vxor.u32 %v2545, 2147483648
    %v2550 = vmul.f32 %v2549, 1.442695
    %v2551 = vpow.pop %v2550
    %v2552 = vadd.f32 %v2551, 1.0
    %v2553 = vrcp.pop %v2552
    %v2554 = vmul.f32 %v2552, %v2553
    %v2555 = vsub.f32 1.0, %v2554
    %v2556 = vmul.f32 %v2553, %v2555
    %v2557 = vadd.f32 %v2553, %v2556
    %vm2558 = vweird.f32 %v2552
    %vm2559 = vweird.f32 %v2553
    %vm2560 = vmor %vm2558, %vm2559
    %v2561 = vsel %vm2560, %v2553, %v2557
    %v2562 = vand.u32 2147483647, %v2552
    %vm2563 = vcmp.eq.f32.partialorder %v2562, 8.507059e+37
    %v2564 = vand.u32 %v2552, 2147483648
    %v2565 = vor.u32 1.1754944e-38, %v2564
    %v2566 = vsel %vm2563, %v2565, %v2561
    %v2567 = vmul.f32 1.0, %v2566
    %v2568 = vxor.u32 %v2546, 2147483648
    %v2569 = vmul.f32 %v2568, 1.442695
    %v2570 = vpow.pop %v2569
    %v2571 = vadd.f32 %v2570, 1.0
    %v2572 = vrcp.pop %v2571
    %v2573 = vmul.f32 %v2571, %v2572
    %v2574 = vsub.f32 1.0, %v2573
    %v2575 = vmul.f32 %v2572, %v2574
    %v2576 = vadd.f32 %v2572, %v2575
    %vm2577 = vweird.f32 %v2571
    %vm2578 = vweird.f32 %v2572
    %vm2579 = vmor %vm2577, %vm2578
    %v2580 = vsel %vm2579, %v2572, %v2576
    %v2581 = vand.u32 2147483647, %v2571
    %vm2582 = vcmp.eq.f32.partialorder %v2581, 8.507059e+37
    %v2583 = vand.u32 %v2571, 2147483648
    %v2584 = vor.u32 1.1754944e-38, %v2583
    %v2585 = vsel %vm2582, %v2584, %v2580
    %v2586 = vmul.f32 1.0, %v2585
    %v2587 = vtanh.pop %v2547
    %v2588 = vxor.u32 %v2548, 2147483648
    %v2589 = vmul.f32 %v2588, 1.442695
    %v2590 = vpow.pop %v2589
    %v2591 = vadd.f32 %v2590, 1.0
    %v2592 = vrcp.pop %v2591
    %v2593 = vmul.f32 %v2591, %v2592
    %v2594 = vsub.f32 1.0, %v2593
    %v2595 = vmul.f32 %v2592, %v2594
    %v2596 = vadd.f32 %v2592, %v2595
    %vm2597 = vweird.f32 %v2591
    %vm2598 = vweird.f32 %v2592
    %vm2599 = vmor %vm2597, %vm2598
    %v2600 = vsel %vm2599, %v2592, %v2596
    %v2601 = vand.u32 2147483647, %v2591
    %vm2602 = vcmp.eq.f32.partialorder %v2601, 8.507059e+37
    %v2603 = vand.u32 %v2591, 2147483648
    %v2604 = vor.u32 1.1754944e-38, %v2603
    %v2605 = vsel %vm2602, %v2604, %v2600
    %v2606 = vmul.f32 1.0, %v2605
    %v2607 = vmul.f32 %v2586, %v2481
    %v2608 = vmul.f32 %v2567, %v2587
    %v2609 = vadd.f32 %v2607, %v2608
    %v2610 = vtanh.pop %v2609
    %v2611 = vmul.f32 %v2606, %v2610
    %s2612 = scalar_lea.vmem [#allocation4], 32
    %2613 = vst [vmem:[%s2612] sm:$0xff] %v2611
    %s2614 = smul.addr %s1434, 8
    %s2615 = scalar_lea.vmem [#allocation3], %s2614
    %v2616 = vld [vmem:[%s2615] sm:$0xff]
    %v2617 = vld [vmem:[%s2615 + $0x8] sm:$0xff]
    %v2618 = vld [vmem:[%s2615 + $0x10] sm:$0xff]
    %v2619 = vld [vmem:[%s2615 + $0x18] sm:$0xff]
    %v2620 = vpack.c.bf16 %v2611, %v2611
    %2621 = vmatpush.bf16.msra.mxu0 %v1946
    %2622 = vmatpush.bf16.msra.mxu0 %v1942
    %2623 = vmatpush.bf16.msra.mxu0 %v1938
    %2624 = vmatpush.bf16.msra.mxu0 %v1934
    %2625 = vmatpush.bf16.msra.mxu0 %v1930
    %2626 = vmatpush.bf16.msra.mxu0 %v1926
    %2627 = vmatpush.bf16.msra.mxu0 %v1922
    %2628 = vmatpush.bf16.msra.mxu0 %v1918
    %2629 = vmatmul.bf16.gmra.mxu0 %v2620
    %v2630 = vpop.f32.mrf.mxu0
    %v2631 = vadd.f32 0.0, %v2630
    %v2632 = vpop.f32.mrf.mxu0
    %2633 = vdwg.mxu0
    %2634 = vmatpush.bf16.msra.mxu0 %v1947
    %2635 = vmatpush.bf16.msra.mxu0 %v1943
    %2636 = vmatpush.bf16.msra.mxu0 %v1939
    %2637 = vmatpush.bf16.msra.mxu0 %v1935
    %2638 = vmatpush.bf16.msra.mxu0 %v1931
    %2639 = vmatpush.bf16.msra.mxu0 %v1927
    %2640 = vmatpush.bf16.msra.mxu0 %v1923
    %2641 = vmatpush.bf16.msra.mxu0 %v1919
    %2642 = vmatmul.bf16.gmra.mxu0 %v2620
    %v2643 = vpop.f32.mrf.mxu0
    %v2644 = vadd.f32 0.0, %v2643
    %v2645 = vpop.f32.mrf.mxu0
    %2646 = vdwg.mxu0
    %2647 = vmatpush.bf16.msra.mxu0 %v1948
    %2648 = vmatpush.bf16.msra.mxu0 %v1944
    %2649 = vmatpush.bf16.msra.mxu0 %v1940
    %2650 = vmatpush.bf16.msra.mxu0 %v1936
    %2651 = vmatpush.bf16.msra.mxu0 %v1932
    %2652 = vmatpush.bf16.msra.mxu0 %v1928
    %2653 = vmatpush.bf16.msra.mxu0 %v1924
    %2654 = vmatpush.bf16.msra.mxu0 %v1920
    %2655 = vmatmul.bf16.gmra.mxu0 %v2620
    %v2656 = vpop.f32.mrf.mxu0
    %v2657 = vadd.f32 0.0, %v2656
    %v2658 = vpop.f32.mrf.mxu0
    %2659 = vdwg.mxu0
    %2660 = vmatpush.bf16.msra.mxu0 %v1949
    %2661 = vmatpush.bf16.msra.mxu0 %v1945
    %2662 = vmatpush.bf16.msra.mxu0 %v1941
    %2663 = vmatpush.bf16.msra.mxu0 %v1937
    %2664 = vmatpush.bf16.msra.mxu0 %v1933
    %2665 = vmatpush.bf16.msra.mxu0 %v1929
    %2666 = vmatpush.bf16.msra.mxu0 %v1925
    %2667 = vmatpush.bf16.msra.mxu0 %v1921
    %2668 = vmatmul.bf16.gmra.mxu0 %v2620
    %v2669 = vpop.f32.mrf.mxu0
    %v2670 = vadd.f32 0.0, %v2669
    %v2671 = vpop.f32.mrf.mxu0
    %2672 = vdwg.mxu0
    %v2673 = vadd.f32 %v2616, %v2631
    %v2674 = vadd.f32 %v2617, %v2644
    %v2675 = vadd.f32 %v2618, %v2657
    %v2676 = vadd.f32 %v2619, %v2670
    %v2677 = vxor.u32 %v2673, 2147483648
    %v2678 = vmul.f32 %v2677, 1.442695
    %v2679 = vpow.pop %v2678
    %v2680 = vadd.f32 %v2679, 1.0
    %v2681 = vrcp.pop %v2680
    %v2682 = vmul.f32 %v2680, %v2681
    %v2683 = vsub.f32 1.0, %v2682
    %v2684 = vmul.f32 %v2681, %v2683
    %v2685 = vadd.f32 %v2681, %v2684
    %vm2686 = vweird.f32 %v2680
    %vm2687 = vweird.f32 %v2681
    %vm2688 = vmor %vm2686, %vm2687
    %v2689 = vsel %vm2688, %v2681, %v2685
    %v2690 = vand.u32 2147483647, %v2680
    %vm2691 = vcmp.eq.f32.partialorder %v2690, 8.507059e+37
    %v2692 = vand.u32 %v2680, 2147483648
    %v2693 = vor.u32 1.1754944e-38, %v2692
    %v2694 = vsel %vm2691, %v2693, %v2689
    %v2695 = vmul.f32 1.0, %v2694
    %v2696 = vxor.u32 %v2674, 2147483648
    %v2697 = vmul.f32 %v2696, 1.442695
    %v2698 = vpow.pop %v2697
    %v2699 = vadd.f32 %v2698, 1.0
    %v2700 = vrcp.pop %v2699
    %v2701 = vmul.f32 %v2699, %v2700
    %v2702 = vsub.f32 1.0, %v2701
    %v2703 = vmul.f32 %v2700, %v2702
    %v2704 = vadd.f32 %v2700, %v2703
    %vm2705 = vweird.f32 %v2699
    %vm2706 = vweird.f32 %v2700
    %vm2707 = vmor %vm2705, %vm2706
    %v2708 = vsel %vm2707, %v2700, %v2704
    %v2709 = vand.u32 2147483647, %v2699
    %vm2710 = vcmp.eq.f32.partialorder %v2709, 8.507059e+37
    %v2711 = vand.u32 %v2699, 2147483648
    %v2712 = vor.u32 1.1754944e-38, %v2711
    %v2713 = vsel %vm2710, %v2712, %v2708
    %v2714 = vmul.f32 1.0, %v2713
    %v2715 = vtanh.pop %v2675
    %v2716 = vxor.u32 %v2676, 2147483648
    %v2717 = vmul.f32 %v2716, 1.442695
    %v2718 = vpow.pop %v2717
    %v2719 = vadd.f32 %v2718, 1.0
    %v2720 = vrcp.pop %v2719
    %v2721 = vmul.f32 %v2719, %v2720
    %v2722 = vsub.f32 1.0, %v2721
    %v2723 = vmul.f32 %v2720, %v2722
    %v2724 = vadd.f32 %v2720, %v2723
    %vm2725 = vweird.f32 %v2719
    %vm2726 = vweird.f32 %v2720
    %vm2727 = vmor %vm2725, %vm2726
    %v2728 = vsel %vm2727, %v2720, %v2724
    %v2729 = vand.u32 2147483647, %v2719
    %vm2730 = vcmp.eq.f32.partialorder %v2729, 8.507059e+37
    %v2731 = vand.u32 %v2719, 2147483648
    %v2732 = vor.u32 1.1754944e-38, %v2731
    %v2733 = vsel %vm2730, %v2732, %v2728
    %v2734 = vmul.f32 1.0, %v2733
    %v2735 = vmul.f32 %v2714, %v2609
    %v2736 = vmul.f32 %v2695, %v2715
    %v2737 = vadd.f32 %v2735, %v2736
    %v2738 = vtanh.pop %v2737
    %v2739 = vmul.f32 %v2734, %v2738
    %s2740 = scalar_lea.vmem [#allocation4], 40
    %2741 = vst [vmem:[%s2740] sm:$0xff] %v2739
    %s2742 = smul.addr %s1561, 8
    %s2743 = scalar_lea.vmem [#allocation3], %s2742
    %v2744 = vld [vmem:[%s2743] sm:$0xff]
    %v2745 = vld [vmem:[%s2743 + $0x8] sm:$0xff]
    %v2746 = vld [vmem:[%s2743 + $0x10] sm:$0xff]
    %v2747 = vld [vmem:[%s2743 + $0x18] sm:$0xff]
    %v2748 = vpack.c.bf16 %v2739, %v2739
    %2749 = vmatpush.bf16.msra.mxu0 %v1946
    %2750 = vmatpush.bf16.msra.mxu0 %v1942
    %2751 = vmatpush.bf16.msra.mxu0 %v1938
    %2752 = vmatpush.bf16.msra.mxu0 %v1934
    %2753 = vmatpush.bf16.msra.mxu0 %v1930
    %2754 = vmatpush.bf16.msra.mxu0 %v1926
    %2755 = vmatpush.bf16.msra.mxu0 %v1922
    %2756 = vmatpush.bf16.msra.mxu0 %v1918
    %2757 = vmatmul.bf16.gmra.mxu0 %v2748
    %v2758 = vpop.f32.mrf.mxu0
    %v2759 = vadd.f32 0.0, %v2758
    %v2760 = vpop.f32.mrf.mxu0
    %2761 = vdwg.mxu0
    %2762 = vmatpush.bf16.msra.mxu0 %v1947
    %2763 = vmatpush.bf16.msra.mxu0 %v1943
    %2764 = vmatpush.bf16.msra.mxu0 %v1939
    %2765 = vmatpush.bf16.msra.mxu0 %v1935
    %2766 = vmatpush.bf16.msra.mxu0 %v1931
    %2767 = vmatpush.bf16.msra.mxu0 %v1927
    %2768 = vmatpush.bf16.msra.mxu0 %v1923
    %2769 = vmatpush.bf16.msra.mxu0 %v1919
    %2770 = vmatmul.bf16.gmra.mxu0 %v2748
    %v2771 = vpop.f32.mrf.mxu0
    %v2772 = vadd.f32 0.0, %v2771
    %v2773 = vpop.f32.mrf.mxu0
    %2774 = vdwg.mxu0
    %2775 = vmatpush.bf16.msra.mxu0 %v1948
    %2776 = vmatpush.bf16.msra.mxu0 %v1944
    %2777 = vmatpush.bf16.msra.mxu0 %v1940
    %2778 = vmatpush.bf16.msra.mxu0 %v1936
    %2779 = vmatpush.bf16.msra.mxu0 %v1932
    %2780 = vmatpush.bf16.msra.mxu0 %v1928
    %2781 = vmatpush.bf16.msra.mxu0 %v1924
    %2782 = vmatpush.bf16.msra.mxu0 %v1920
    %2783 = vmatmul.bf16.gmra.mxu0 %v2748
    %v2784 = vpop.f32.mrf.mxu0
    %v2785 = vadd.f32 0.0, %v2784
    %v2786 = vpop.f32.mrf.mxu0
    %2787 = vdwg.mxu0
    %2788 = vmatpush.bf16.msra.mxu0 %v1949
    %2789 = vmatpush.bf16.msra.mxu0 %v1945
    %2790 = vmatpush.bf16.msra.mxu0 %v1941
    %2791 = vmatpush.bf16.msra.mxu0 %v1937
    %2792 = vmatpush.bf16.msra.mxu0 %v1933
    %2793 = vmatpush.bf16.msra.mxu0 %v1929
    %2794 = vmatpush.bf16.msra.mxu0 %v1925
    %2795 = vmatpush.bf16.msra.mxu0 %v1921
    %2796 = vmatmul.bf16.gmra.mxu0 %v2748
    %v2797 = vpop.f32.mrf.mxu0
    %v2798 = vadd.f32 0.0, %v2797
    %v2799 = vpop.f32.mrf.mxu0
    %2800 = vdwg.mxu0
    %v2801 = vadd.f32 %v2744, %v2759
    %v2802 = vadd.f32 %v2745, %v2772
    %v2803 = vadd.f32 %v2746, %v2785
    %v2804 = vadd.f32 %v2747, %v2798
    %v2805 = vxor.u32 %v2801, 2147483648
    %v2806 = vmul.f32 %v2805, 1.442695
    %v2807 = vpow.pop %v2806
    %v2808 = vadd.f32 %v2807, 1.0
    %v2809 = vrcp.pop %v2808
    %v2810 = vmul.f32 %v2808, %v2809
    %v2811 = vsub.f32 1.0, %v2810
    %v2812 = vmul.f32 %v2809, %v2811
    %v2813 = vadd.f32 %v2809, %v2812
    %vm2814 = vweird.f32 %v2808
    %vm2815 = vweird.f32 %v2809
    %vm2816 = vmor %vm2814, %vm2815
    %v2817 = vsel %vm2816, %v2809, %v2813
    %v2818 = vand.u32 2147483647, %v2808
    %vm2819 = vcmp.eq.f32.partialorder %v2818, 8.507059e+37
    %v2820 = vand.u32 %v2808, 2147483648
    %v2821 = vor.u32 1.1754944e-38, %v2820
    %v2822 = vsel %vm2819, %v2821, %v2817
    %v2823 = vmul.f32 1.0, %v2822
    %v2824 = vxor.u32 %v2802, 2147483648
    %v2825 = vmul.f32 %v2824, 1.442695
    %v2826 = vpow.pop %v2825
    %v2827 = vadd.f32 %v2826, 1.0
    %v2828 = vrcp.pop %v2827
    %v2829 = vmul.f32 %v2827, %v2828
    %v2830 = vsub.f32 1.0, %v2829
    %v2831 = vmul.f32 %v2828, %v2830
    %v2832 = vadd.f32 %v2828, %v2831
    %vm2833 = vweird.f32 %v2827
    %vm2834 = vweird.f32 %v2828
    %vm2835 = vmor %vm2833, %vm2834
    %v2836 = vsel %vm2835, %v2828, %v2832
    %v2837 = vand.u32 2147483647, %v2827
    %vm2838 = vcmp.eq.f32.partialorder %v2837, 8.507059e+37
    %v2839 = vand.u32 %v2827, 2147483648
    %v2840 = vor.u32 1.1754944e-38, %v2839
    %v2841 = vsel %vm2838, %v2840, %v2836
    %v2842 = vmul.f32 1.0, %v2841
    %v2843 = vtanh.pop %v2803
    %v2844 = vxor.u32 %v2804, 2147483648
    %v2845 = vmul.f32 %v2844, 1.442695
    %v2846 = vpow.pop %v2845
    %v2847 = vadd.f32 %v2846, 1.0
    %v2848 = vrcp.pop %v2847
    %v2849 = vmul.f32 %v2847, %v2848
    %v2850 = vsub.f32 1.0, %v2849
    %v2851 = vmul.f32 %v2848, %v2850
    %v2852 = vadd.f32 %v2848, %v2851
    %vm2853 = vweird.f32 %v2847
    %vm2854 = vweird.f32 %v2848
    %vm2855 = vmor %vm2853, %vm2854
    %v2856 = vsel %vm2855, %v2848, %v2852
    %v2857 = vand.u32 2147483647, %v2847
    %vm2858 = vcmp.eq.f32.partialorder %v2857, 8.507059e+37
    %v2859 = vand.u32 %v2847, 2147483648
    %v2860 = vor.u32 1.1754944e-38, %v2859
    %v2861 = vsel %vm2858, %v2860, %v2856
    %v2862 = vmul.f32 1.0, %v2861
    %v2863 = vmul.f32 %v2842, %v2737
    %v2864 = vmul.f32 %v2823, %v2843
    %v2865 = vadd.f32 %v2863, %v2864
    %v2866 = vtanh.pop %v2865
    %v2867 = vmul.f32 %v2862, %v2866
    %s2868 = scalar_lea.vmem [#allocation4], 48
    %2869 = vst [vmem:[%s2868] sm:$0xff] %v2867
    %s2870 = smul.addr %s1688, 8
    %s2871 = scalar_lea.vmem [#allocation3], %s2870
    %v2872 = vld [vmem:[%s2871] sm:$0xff]
    %v2873 = vld [vmem:[%s2871 + $0x8] sm:$0xff]
    %v2874 = vld [vmem:[%s2871 + $0x10] sm:$0xff]
    %v2875 = vld [vmem:[%s2871 + $0x18] sm:$0xff]
    %v2876 = vpack.c.bf16 %v2867, %v2867
    %2877 = vmatpush.bf16.msra.mxu0 %v1946
    %2878 = vmatpush.bf16.msra.mxu0 %v1942
    %2879 = vmatpush.bf16.msra.mxu0 %v1938
    %2880 = vmatpush.bf16.msra.mxu0 %v1934
    %2881 = vmatpush.bf16.msra.mxu0 %v1930
    %2882 = vmatpush.bf16.msra.mxu0 %v1926
    %2883 = vmatpush.bf16.msra.mxu0 %v1922
    %2884 = vmatpush.bf16.msra.mxu0 %v1918
    %2885 = vmatmul.bf16.gmra.mxu0 %v2876
    %v2886 = vpop.f32.mrf.mxu0
    %v2887 = vadd.f32 0.0, %v2886
    %v2888 = vpop.f32.mrf.mxu0
    %2889 = vdwg.mxu0
    %2890 = vmatpush.bf16.msra.mxu0 %v1947
    %2891 = vmatpush.bf16.msra.mxu0 %v1943
    %2892 = vmatpush.bf16.msra.mxu0 %v1939
    %2893 = vmatpush.bf16.msra.mxu0 %v1935
    %2894 = vmatpush.bf16.msra.mxu0 %v1931
    %2895 = vmatpush.bf16.msra.mxu0 %v1927
    %2896 = vmatpush.bf16.msra.mxu0 %v1923
    %2897 = vmatpush.bf16.msra.mxu0 %v1919
    %2898 = vmatmul.bf16.gmra.mxu0 %v2876
    %v2899 = vpop.f32.mrf.mxu0
    %v2900 = vadd.f32 0.0, %v2899
    %v2901 = vpop.f32.mrf.mxu0
    %2902 = vdwg.mxu0
    %2903 = vmatpush.bf16.msra.mxu0 %v1948
    %2904 = vmatpush.bf16.msra.mxu0 %v1944
    %2905 = vmatpush.bf16.msra.mxu0 %v1940
    %2906 = vmatpush.bf16.msra.mxu0 %v1936
    %2907 = vmatpush.bf16.msra.mxu0 %v1932
    %2908 = vmatpush.bf16.msra.mxu0 %v1928
    %2909 = vmatpush.bf16.msra.mxu0 %v1924
    %2910 = vmatpush.bf16.msra.mxu0 %v1920
    %2911 = vmatmul.bf16.gmra.mxu0 %v2876
    %v2912 = vpop.f32.mrf.mxu0
    %v2913 = vadd.f32 0.0, %v2912
    %v2914 = vpop.f32.mrf.mxu0
    %2915 = vdwg.mxu0
    %2916 = vmatpush.bf16.msra.mxu0 %v1949
    %2917 = vmatpush.bf16.msra.mxu0 %v1945
    %2918 = vmatpush.bf16.msra.mxu0 %v1941
    %2919 = vmatpush.bf16.msra.mxu0 %v1937
    %2920 = vmatpush.bf16.msra.mxu0 %v1933
    %2921 = vmatpush.bf16.msra.mxu0 %v1929
    %2922 = vmatpush.bf16.msra.mxu0 %v1925
    %2923 = vmatpush.bf16.msra.mxu0 %v1921
    %2924 = vmatmul.bf16.gmra.mxu0 %v2876
    %v2925 = vpop.f32.mrf.mxu0
    %v2926 = vadd.f32 0.0, %v2925
    %v2927 = vpop.f32.mrf.mxu0
    %2928 = vdwg.mxu0
    %v2929 = vadd.f32 %v2872, %v2887
    %v2930 = vadd.f32 %v2873, %v2900
    %v2931 = vadd.f32 %v2874, %v2913
    %v2932 = vadd.f32 %v2875, %v2926
    %v2933 = vxor.u32 %v2929, 2147483648
    %v2934 = vmul.f32 %v2933, 1.442695
    %v2935 = vpow.pop %v2934
    %v2936 = vadd.f32 %v2935, 1.0
    %v2937 = vrcp.pop %v2936
    %v2938 = vmul.f32 %v2936, %v2937
    %v2939 = vsub.f32 1.0, %v2938
    %v2940 = vmul.f32 %v2937, %v2939
    %v2941 = vadd.f32 %v2937, %v2940
    %vm2942 = vweird.f32 %v2936
    %vm2943 = vweird.f32 %v2937
    %vm2944 = vmor %vm2942, %vm2943
    %v2945 = vsel %vm2944, %v2937, %v2941
    %v2946 = vand.u32 2147483647, %v2936
    %vm2947 = vcmp.eq.f32.partialorder %v2946, 8.507059e+37
    %v2948 = vand.u32 %v2936, 2147483648
    %v2949 = vor.u32 1.1754944e-38, %v2948
    %v2950 = vsel %vm2947, %v2949, %v2945
    %v2951 = vmul.f32 1.0, %v2950
    %v2952 = vxor.u32 %v2930, 2147483648
    %v2953 = vmul.f32 %v2952, 1.442695
    %v2954 = vpow.pop %v2953
    %v2955 = vadd.f32 %v2954, 1.0
    %v2956 = vrcp.pop %v2955
    %v2957 = vmul.f32 %v2955, %v2956
    %v2958 = vsub.f32 1.0, %v2957
    %v2959 = vmul.f32 %v2956, %v2958
    %v2960 = vadd.f32 %v2956, %v2959
    %vm2961 = vweird.f32 %v2955
    %vm2962 = vweird.f32 %v2956
    %vm2963 = vmor %vm2961, %vm2962
    %v2964 = vsel %vm2963, %v2956, %v2960
    %v2965 = vand.u32 2147483647, %v2955
    %vm2966 = vcmp.eq.f32.partialorder %v2965, 8.507059e+37
    %v2967 = vand.u32 %v2955, 2147483648
    %v2968 = vor.u32 1.1754944e-38, %v2967
    %v2969 = vsel %vm2966, %v2968, %v2964
    %v2970 = vmul.f32 1.0, %v2969
    %v2971 = vtanh.pop %v2931
    %v2972 = vxor.u32 %v2932, 2147483648
    %v2973 = vmul.f32 %v2972, 1.442695
    %v2974 = vpow.pop %v2973
    %v2975 = vadd.f32 %v2974, 1.0
    %v2976 = vrcp.pop %v2975
    %v2977 = vmul.f32 %v2975, %v2976
    %v2978 = vsub.f32 1.0, %v2977
    %v2979 = vmul.f32 %v2976, %v2978
    %v2980 = vadd.f32 %v2976, %v2979
    %vm2981 = vweird.f32 %v2975
    %vm2982 = vweird.f32 %v2976
    %vm2983 = vmor %vm2981, %vm2982
    %v2984 = vsel %vm2983, %v2976, %v2980
    %v2985 = vand.u32 2147483647, %v2975
    %vm2986 = vcmp.eq.f32.partialorder %v2985, 8.507059e+37
    %v2987 = vand.u32 %v2975, 2147483648
    %v2988 = vor.u32 1.1754944e-38, %v2987
    %v2989 = vsel %vm2986, %v2988, %v2984
    %v2990 = vmul.f32 1.0, %v2989
    %v2991 = vmul.f32 %v2970, %v2865
    %v2992 = vmul.f32 %v2951, %v2971
    %v2993 = vadd.f32 %v2991, %v2992
    %v2994 = vtanh.pop %v2993
    %v2995 = vmul.f32 %v2990, %v2994
    %s2996 = scalar_lea.vmem [#allocation4], 56
    %2997 = vst [vmem:[%s2996] sm:$0xff] %v2995
    %v2998 = vld [vmem:[#allocation4] sm:$0xff]
    %v2999 = vld [vmem:[#allocation4 + $0x8] sm:$0xff]
    %v3000 = vld [vmem:[#allocation4 + $0x10] sm:$0xff]
    %v3001 = vld [vmem:[#allocation4 + $0x18] sm:$0xff]
    %v3002 = vld [vmem:[#allocation4 + $0x20] sm:$0xff]
    %v3003 = vld [vmem:[#allocation4 + $0x28] sm:$0xff]
    %v3004 = vld [vmem:[#allocation4 + $0x30] sm:$0xff]
    %v3005 = vld [vmem:[#allocation4 + $0x38] sm:$0xff]
    %v3006 = vld [vmem:[%s8] sm:$0xff]
    %v3007 = vld [vmem:[%s8 + $0x8] sm:$0xff]
    %v3008 = vld [vmem:[%s8 + $0x10] sm:$0xff]
    %v3009 = vld [vmem:[%s8 + $0x18] sm:$0xff]
    %v3010 = vld [vmem:[%s8 + $0x20] sm:$0xff]
    %v3011 = vld [vmem:[%s8 + $0x28] sm:$0xff]
    %v3012 = vld [vmem:[%s8 + $0x30] sm:$0xff]
    %v3013 = vld [vmem:[%s8 + $0x38] sm:$0xff]
    %v3014 = vld [vmem:[%s8 + $0x40] sm:$0xff]
    %v3015 = vld [vmem:[%s8 + $0x48] sm:$0xff]
    %v3016 = vld [vmem:[%s8 + $0x50] sm:$0xff]
    %v3017 = vld [vmem:[%s8 + $0x58] sm:$0xff]
    %v3018 = vld [vmem:[%s8 + $0x60] sm:$0xff]
    %v3019 = vld [vmem:[%s8 + $0x68] sm:$0xff]
    %v3020 = vld [vmem:[%s8 + $0x70] sm:$0xff]
    %v3021 = vld [vmem:[%s8 + $0x78] sm:$0xff]
    %v3022 = vld [vmem:[#allocation5] sm:$0x1]
    %v3024 = vperm.slane %v3022, 0
    %3026 = vmatpush.msra.mxu0 %v3021
    %3027 = vmatpush.msra.mxu0 %v3020
    %3028 = vmatpush.msra.mxu0 %v3019
    %3029 = vmatpush.msra.mxu0 %v3018
    %3030 = vmatpush.msra.mxu0 %v3017
    %3031 = vmatpush.msra.mxu0 %v3016
    %3032 = vmatpush.msra.mxu0 %v3015
    %3033 = vmatpush.msra.mxu0 %v3014
    %3034 = vmatpush.msra.mxu0 %v3013
    %3035 = vmatpush.msra.mxu0 %v3012
    %3036 = vmatpush.msra.mxu0 %v3011
    %3037 = vmatpush.msra.mxu0 %v3010
    %3038 = vmatpush.msra.mxu0 %v3009
    %3039 = vmatpush.msra.mxu0 %v3008
    %3040 = vmatpush.msra.mxu0 %v3007
    %3041 = vmatpush.msra.mxu0 %v3006
    %3042 = vmatmul.f32.gmra.mxu0 %v2998
    %v3043 = vpop.f32.mrf.mxu0
    %v3044 = vadd.f32 %v3024, %v3043
    %3045 = vmatmul.f32.gmra.mxu0 %v2999
    %v3046 = vpop.f32.mrf.mxu0
    %v3047 = vadd.f32 %v3024, %v3046
    %3048 = vmatmul.f32.gmra.mxu0 %v3000
    %v3049 = vpop.f32.mrf.mxu0
    %v3050 = vadd.f32 %v3024, %v3049
    %3051 = vmatmul.f32.gmra.mxu0 %v3001
    %v3052 = vpop.f32.mrf.mxu0
    %v3053 = vadd.f32 %v3024, %v3052
    %3054 = vmatmul.f32.gmra.mxu0 %v3002
    %v3055 = vpop.f32.mrf.mxu0
    %v3056 = vadd.f32 %v3024, %v3055
    %3057 = vmatmul.f32.gmra.mxu0 %v3003
    %v3058 = vpop.f32.mrf.mxu0
    %v3059 = vadd.f32 %v3024, %v3058
    %3060 = vmatmul.f32.gmra.mxu0 %v3004
    %v3061 = vpop.f32.mrf.mxu0
    %v3062 = vadd.f32 %v3024, %v3061
    %3063 = vmatmul.f32.gmra.mxu0 %v3005
    %v3064 = vpop.f32.mrf.mxu0
    %v3065 = vadd.f32 %v3024, %v3064
    %3066 = vdwg.mxu0
    %3067 = vst.msk [vmem:[%s10] sm:$0xff] %vm158, %v3044
    %3068 = vst.msk [vmem:[%s10 + $0x8] sm:$0xff] %vm158, %v3047
    %3069 = vst.msk [vmem:[%s10 + $0x10] sm:$0xff] %vm158, %v3050
    %3070 = vst.msk [vmem:[%s10 + $0x18] sm:$0xff] %vm158, %v3053
    %3071 = vst.msk [vmem:[%s10 + $0x20] sm:$0xff] %vm158, %v3056
    %3072 = vst.msk [vmem:[%s10 + $0x28] sm:$0xff] %vm158, %v3059
    %3073 = vst.msk [vmem:[%s10 + $0x30] sm:$0xff] %vm158, %v3062
    %3074 = vst.msk [vmem:[%s10 + $0x38] sm:$0xff] %vm158, %v3065
    // Predicated region
    $region50: #{seq2seq_forward.1} parent=1 // pred_check
      _
    $region51: #{seq2seq_forward.1} parent=1 // pred_check_branch
      %3076 = sbr.rel (0) target = $region53
    $region52: #{seq2seq_forward.1} parent=1 // pred_region
      _
    $region53: #{seq2seq_forward.1} parent=1 // pred_fallthru
      _
    // Predicated region
    $region54: #{seq2seq_forward.1} parent=1 // pred_check
      _
    $region55: #{seq2seq_forward.1} parent=1 // pred_check_branch
      %3078 = sbr.rel (0) target = $region57
    $region56: #{seq2seq_forward.1} parent=1 // pred_region
      _
    $region57: #{seq2seq_forward.1} parent=1 // pred_fallthru
      _
    %3079 = vsyncpa [#allocation7], 1
    %3080 = vsyncpa [#allocation9], 1

</llo_original>
